<compile_context>
chip_gen: v6e
topology: v6e:2x2x1
jax: 0.10.0
libtpu: 0.0.40
codegen_flags: <defaults>
</compile_context>

<pallas_src>
import functools

import numpy as np
import jax
import jax.numpy as jnp
from jax.scipy.linalg import block_diag
from jax.experimental import pallas as pl
from jax.experimental.pallas import tpu as pltpu

EPS = 1e-5
SLOPE = 0.01  # LeakyReLU default negative_slope


def _round_up(n, m):
    return ((n + m - 1) // m) * m


# ----------------------------------------------------------------------------
# Single fused kernel
# ----------------------------------------------------------------------------
def _exnet_kernel(C, PW, ZW, act_ref, wwide_ref, wtall_ref, pvec_ref, o_ref):
    f32 = jnp.float32
    bf16 = jnp.bfloat16
    B = act_ref.shape[0]

    def dotb(a, w):  # single-pass bf16 MXU matmul, f32 accumulation
        return jnp.dot(a.astype(bf16), w, preferred_element_type=f32)

    def lrelu(v):
        return jnp.where(v >= 0, v, SLOPE * v)

    def bn_rows(v, g, b):  # BatchNorm1d, training-mode biased per-call stats
        mu = jnp.mean(v, axis=0, keepdims=True)
        d = v - mu
        var = jnp.mean(d * d, axis=0, keepdims=True)
        return d * jax.lax.rsqrt(var + EPS) * g + b

    # ---- packed 1-row params (f32, each row 128-lane zero padded) ----------
    gc, bc = pvec_ref[0:1, :], pvec_ref[1:2, :]
    bcx5 = pvec_ref[2:3, :]
    bcat, gcat, becat = pvec_ref[3:4, :], pvec_ref[4:5, :], pvec_ref[5:6, :]
    bfc, g7, be7 = pvec_ref[6:7, :], pvec_ref[7:8, :], pvec_ref[8:9, :]
    bfc2, bout = pvec_ref[9:10, :], pvec_ref[10:11, :]
    padmask = pvec_ref[11:12, :]

    # ---- packed bf16 weight slabs (all slices 128/16-row tile aligned) -----
    t01 = wwide_ref[0:PW, :]                  # (PW, ZW) block-diag Toeplitz
    sbc = wwide_ref[PW:PW + 128, :]           # (128, ZW) group -> lane broadcast
    sred = wtall_ref[0:ZW, :]                 # (ZW, 128) lane -> group reduce
    wcx = wtall_ref[ZW:2 * ZW, :]             # (ZW, 128) block-diag cx
    base = 2 * ZW
    gsel = wtall_ref[base:base + 128, :]          # per-branch |.|^2 broadcast
    w1p = wtall_ref[base + 128:base + 256, :]     # l1 placed at cols [0,C)
    w2p = wtall_ref[base + 256:base + 384, :]     # l2 placed at cols [C,2C)
    w3p = wtall_ref[base + 384:base + 512, :]     # l3 placed at cols [2C,3C)
    w456p = wtall_ref[base + 512:base + 640, :]   # l4,l5,l6 placed block-diag
    wfcp = wtall_ref[base + 640:base + 768, :]
    wfc2p = wtall_ref[base + 768:base + 896, :]
    woutp = wtall_ref[base + 896:base + 1024, :]

    # ---- activation slab (f32, 128-aligned sections) ------------------------
    p5bd = act_ref[:, 0:PW]                   # (B, PW)  [xpad|ypad_i] x 5
    y5 = act_ref[:, PW:PW + 128]              # (B, 128) y flattened, 0-padded
    xt = act_ref[:, PW + 128:PW + 256]        # (B, 128) x tiled 5x, 0-padded
    pss = act_ref[:, PW + 256:PW + 384]       # (B, 128) [p|s|zs], 0-padded

    # ---- conv branch: c1+c2 over all 5 (x, y_i) pairings in ONE matmul -----
    z = dotb(p5bd, t01)                       # (B, ZW); lanes=(branch,chan,w)

    # BatchNorm2d per (branch, conv, channel): 80 groups of B*C elements.
    rs = jnp.sum(z, axis=0, keepdims=True)          # (1, ZW)
    rsq = jnp.sum(z * z, axis=0, keepdims=True)     # (1, ZW)
    inv_n = 1.0 / (B * C)
    mean = dotb(rs, sred) * inv_n                   # (1, 128)
    var = dotb(rsq, sred) * inv_n - mean * mean
    scale = gc * jax.lax.rsqrt(var + EPS)           # (1, 128)
    shift = bc - mean * scale
    a = lrelu(z * dotb(scale, sbc) + dotb(shift, sbc))   # (B, ZW)

    # cx for all 5 branches via block-diag weight -> lane-contiguous (B, 5C)
    x1 = dotb(a, wcx) + bcx5                  # (B, 128), real lanes [0, 5C)

    # ---- elementwise feature blocks x2 / x3 ---------------------------------
    x2 = y5 - xt
    ssy = dotb(y5 * y5, gsel)                 # per-branch |y_i|^2, broadcast
    ssx = dotb(xt * xt, gsel)                 # |x|^2 broadcast across lanes
    # padmask = 1 on the zero-padded lanes so rsqrt never sees 0 there.
    x3 = (xt * y5) * jax.lax.rsqrt(ssx * ssy + padmask)

    # ---- fused l1..l6 + bn1..bn6 + LeakyReLU (no feats concatenate) --------
    h = (dotb(x1, w1p) + dotb(x2, w2p) + dotb(x3, w3p) + dotb(pss, w456p)
         + bcat)                              # (B, 128), real lanes [0, 6C)
    nx = lrelu(bn_rows(h, gcat, becat))

    # ---- fc -> bn7 -> fc2 -> out (all 128-lane dense) ------------------------
    u = lrelu(dotb(nx, wfcp) + bfc)
    ui = bn_rows(u, g7, be7)
    nx2 = lrelu(dotb(ui, wfc2p) + bfc2)
    o_ref[...] = dotb(nx2, woutp) + bout      # (B, 128) lane-dense store


# ----------------------------------------------------------------------------
# Trace-time operand packing (weight re-layout is done once, outside the
# kernel; in production these slabs would be cached across calls).
# ----------------------------------------------------------------------------
def _build_toeplitz(wc1, wc2, C):
    """Combined c1/c2 conv weight as a (2*(C+4), 16*C) Toeplitz matrix."""
    k1 = wc1[:, 0]                                            # (8,2,5)
    k2 = jnp.pad(wc2[:, 0], ((0, 0), (0, 0), (1, 1)))         # (8,2,5) centered
    K = jnp.concatenate([k1, k2], axis=0)                     # (16,2,5)
    P = C + 4
    tap = np.arange(P)[:, None] - np.arange(C)[None, :]       # (P,C)
    valid = jnp.asarray((tap >= 0) & (tap <= 4), jnp.float32)
    tap_c = np.clip(tap, 0, 4)
    rows = []
    for kh in range(2):
        g = K[:, kh, :][:, tap_c] * valid[None]               # (16,P,C)
        rows.append(jnp.transpose(g, (1, 0, 2)).reshape(P, 16 * C))
    return jnp.concatenate(rows, axis=0)                      # (2P,16C)


def _prepare(x, y, p, s, zs, pr):
    f32 = jnp.float32
    bf16 = jnp.bfloat16
    B, _, C = x.shape
    ncls = pr["Wout"].shape[0]
    P = C + 4
    T = 2 * P                         # lanes per branch block in p5bd
    PW = _round_up(5 * T, 128)        # padded conv K dimension
    ZW = _round_up(80 * C, 128)       # padded conv output width
    NG = 80                           # (branch, conv, channel) BN groups
    assert 5 * C <= 128 and 6 * C <= 128 and ncls <= 128 and 80 * C == ZW

    # ---- activation slab (B, PW + 3*128) f32: [p5bd | y5 | xt | pss] -------
    x_row = x[:, 0, :].astype(f32)                             # (B,C)
    xpad = jnp.pad(x_row, ((0, 0), (2, 2)))                    # (B,P)
    ypad = jnp.pad(y.astype(f32), ((0, 0), (0, 0), (2, 2)))    # (B,5,P)
    xb = jnp.broadcast_to(xpad[:, None, :], (B, 5, P))
    p5bd = jnp.concatenate([xb, ypad], axis=-1).reshape(B, 5 * T)
    y5 = y.reshape(B, 5 * C).astype(f32)
    xt = jnp.tile(x_row, (1, 5))
    pss = jnp.concatenate([p.reshape(B, -1), s.reshape(B, -1),
                           zs.reshape(B, -1)], axis=1).astype(f32)
    act = jnp.zeros((B, PW + 3 * 128), f32)
    act = act.at[:, :5 * T].set(p5bd)
    act = act.at[:, PW:PW + 5 * C].set(y5)
    act = act.at[:, PW + 128:PW + 128 + 5 * C].set(xt)
    act = act.at[:, PW + 256:PW + 256 + pss.shape[1]].set(pss)

    # ---- wide bf16 slab (PW+128, ZW): [block-diag Toeplitz ; sbc] ----------
    t01 = _build_toeplitz(pr["Wc1"], pr["Wc2"], C)             # (2P,16C)
    t01_bd = block_diag(*([t01] * 5))                          # (5T,80C)
    sbc = np.kron(np.eye(NG, dtype=np.float32),
                  np.ones((1, C), np.float32))                 # (80,80C)
    wwide = jnp.zeros((PW + 128, ZW), f32)
    wwide = wwide.at[:5 * T, :80 * C].set(t01_bd)
    wwide = wwide.at[PW:PW + NG, :80 * C].set(jnp.asarray(sbc))
    wwide = wwide.astype(bf16)

    # ---- tall bf16 slab (2*ZW + 8*128, 128) ---------------------------------
    sred = np.kron(np.eye(NG, dtype=np.float32),
                   np.ones((C, 1), np.float32))                # (80C,80)
    wcx_bd = block_diag(*([pr["Wcx"].T] * 5))                  # (80C,5C)
    gsel = np.kron(np.eye(5, dtype=np.float32),
                   np.ones((C, C), np.float32))                # (5C,5C)
    wtall = jnp.zeros((2 * ZW + 8 * 128, 128), f32)
    wtall = wtall.at[:80 * C, :NG].set(jnp.asarray(sred))
    wtall = wtall.at[ZW:ZW + 80 * C, :5 * C].set(wcx_bd)
    base = 2 * ZW
    wtall = wtall.at[base:base + 5 * C, :5 * C].set(jnp.asarray(gsel))
    wtall = wtall.at[base + 128:base + 128 + 5 * C, 0 * C:1 * C].set(pr["W1"].T)
    wtall = wtall.at[base + 256:base + 256 + 5 * C, 1 * C:2 * C].set(pr["W2"].T)
    wtall = wtall.at[base + 384:base + 384 + 5 * C, 2 * C:3 * C].set(pr["W3"].T)
    o4 = base + 512
    wtall = wtall.at[o4:o4 + 15, 3 * C:4 * C].set(pr["W4"].T)
    wtall = wtall.at[o4 + 15:o4 + 45, 4 * C:5 * C].set(pr["W5"].T)
    wtall = wtall.at[o4 + 45:o4 + 75, 5 * C:6 * C].set(pr["W6"].T)
    wtall = wtall.at[base + 640:base + 640 + 6 * C, :2 * C].set(pr["Wfc"].T)
    wtall = wtall.at[base + 768:base + 768 + 2 * C, :C].set(pr["Wfc2"].T)
    wtall = wtall.at[base + 896:base + 896 + C, :ncls].set(pr["Wout"].T)
    wtall = wtall.astype(bf16)

    # ---- all 1-row params packed as rows of one (16,128) f32 slab ----------
    def row(v):
        return jnp.zeros((128,), f32).at[:v.shape[0]].set(v.astype(f32))

    pvec = jnp.stack([
        row(jnp.tile(jnp.concatenate([pr["bnc_g"], pr["bnc_g"]]), 5)),   # 0
        row(jnp.tile(jnp.concatenate([pr["bnc_b"], pr["bnc_b"]]), 5)),   # 1
        row(jnp.tile(pr["bcx"], 5)),                                     # 2
        row(jnp.concatenate([pr["b1"], pr["b2"], pr["b3"],
                             pr["b4"], pr["b5"], pr["b6"]])),            # 3
        row(jnp.concatenate([pr["g1"], pr["g2"], pr["g3"],
                             pr["g4"], pr["g5"], pr["g6"]])),            # 4
        row(jnp.concatenate([pr["be1"], pr["be2"], pr["be3"],
                             pr["be4"], pr["be5"], pr["be6"]])),         # 5
        row(pr["bfc"]),                                                  # 6
        row(pr["g7"]),                                                   # 7
        row(pr["be7"]),                                                  # 8
        row(pr["bfc2"]),                                                 # 9
        row(pr["bout"]),                                                 # 10
        jnp.zeros((128,), f32).at[5 * C:].set(1.0),                      # 11 pad mask
        jnp.zeros((128,), f32), jnp.zeros((128,), f32),
        jnp.zeros((128,), f32), jnp.zeros((128,), f32),
    ], axis=0)                                                           # (16,128)

    return act, wwide, wtall, pvec


def exnet_forward_pallas(x, y, p, s, zs, pr):
    B, _, C = x.shape
    ncls = pr["Wout"].shape[0]
    PW = _round_up(10 * (C + 4), 128)
    ZW = _round_up(80 * C, 128)
    act, wwide, wtall, pvec = _prepare(x, y, p, s, zs, pr)

    flops = 2 * (B * PW * ZW + B * ZW * 128 + 4 * ZW * 128 + 9 * B * 128 * 128)
    bytes_accessed = (act.size * 4 + wwide.size * 2 + wtall.size * 2
                      + pvec.size * 4 + B * 128 * 4)
    transcendentals = 3 * 128 + 2 * B * 128

    vmem = pl.BlockSpec(memory_space=pltpu.MemorySpace.VMEM)
    out = pl.pallas_call(
        functools.partial(_exnet_kernel, C, PW, ZW),
        out_shape=jax.ShapeDtypeStruct((B, 128), jnp.float32),
        in_specs=[vmem, vmem, vmem, vmem],
        out_specs=vmem,
        cost_estimate=pl.CostEstimate(flops=flops,
                                      transcendentals=transcendentals,
                                      bytes_accessed=bytes_accessed),
    )(act, wwide, wtall, pvec)
    return out[:, :ncls]


# ----------------------------------------------------------------------------
# Pure-JAX reference (mirrors the PyTorch forward exactly)
# ----------------------------------------------------------------------------
def reference_forward(x, y, p, s, zs, pr):
    def lrelu(v):
        return jnp.where(v >= 0, v, SLOPE * v)

    def bn1d(v, g, b):
        mu = v.mean(0)
        var = ((v - mu) ** 2).mean(0)
        return (v - mu) / jnp.sqrt(var + EPS) * g + b

    def bn2d(v, g, b):
        mu = v.mean(axis=(0, 2, 3), keepdims=True)
        var = ((v - mu) ** 2).mean(axis=(0, 2, 3), keepdims=True)
        return (v - mu) / jnp.sqrt(var + EPS) * g.reshape(1, -1, 1, 1) \
            + b.reshape(1, -1, 1, 1)

    def conv(v, w, pad):
        return jax.lax.conv_general_dilated(
            v, w, (1, 1), ((0, 0), (pad, pad)),
            dimension_numbers=("NCHW", "OIHW", "NCHW"))

    B = x.shape[0]
    outs = []
    for i in range(5):
        x0 = jnp.concatenate([x, y[:, i:i + 1, :]], axis=1)   # (B, 2, C)
        xi = x0[:, None, :, :]                                # (B, 1, 2, C)
        a1 = lrelu(bn2d(conv(xi, pr["Wc1"], 2), pr["bnc_g"], pr["bnc_b"]))
        a2 = lrelu(bn2d(conv(xi, pr["Wc2"], 1), pr["bnc_g"], pr["bnc_b"]))
        cat = jnp.concatenate([a1, a2], axis=1).reshape(B, -1)
        outs.append(cat @ pr["Wcx"].T + pr["bcx"])
    x1 = jnp.concatenate(outs, axis=1)
    x2 = (y - x).reshape(B, -1)
    xx = jnp.sqrt((x * x).sum(2))
    yy = jnp.sqrt((y * y).sum(2))
    x3 = ((x * y) / (xx * yy)[..., None]).reshape(B, -1)
    x4 = p.reshape(B, -1)
    x5 = s.reshape(B, -1)
    x6 = zs.reshape(B, -1)
    h1 = lrelu(bn1d(x1 @ pr["W1"].T + pr["b1"], pr["g1"], pr["be1"]))
    h2 = lrelu(bn1d(x2 @ pr["W2"].T + pr["b2"], pr["g2"], pr["be2"]))
    h3 = lrelu(bn1d(x3 @ pr["W3"].T + pr["b3"], pr["g3"], pr["be3"]))
    h4 = lrelu(bn1d(x4 @ pr["W4"].T + pr["b4"], pr["g4"], pr["be4"]))
    h5 = lrelu(bn1d(x5 @ pr["W5"].T + pr["b5"], pr["g5"], pr["be5"]))
    h6 = lrelu(bn1d(x6 @ pr["W6"].T + pr["b6"], pr["g6"], pr["be6"]))
    nx = jnp.concatenate([h1, h2, h3, h4, h5, h6], axis=1)
    ui = bn1d(lrelu(nx @ pr["Wfc"].T + pr["bfc"]), pr["g7"], pr["be7"])
    nx = lrelu(ui @ pr["Wfc2"].T + pr["bfc2"])
    return nx @ pr["Wout"].T + pr["bout"]


# ----------------------------------------------------------------------------
# Deterministic parameter construction (PyTorch weight-layout shapes)
# ----------------------------------------------------------------------------
def make_params(key, C, ncls):
    keys = iter(jax.random.split(key, 64))

    def w(shape, scale=0.1):
        return (scale * jax.random.normal(next(keys), shape)).astype(jnp.float32)

    pr = dict(
        Wc1=w((8, 1, 2, 5)), Wc2=w((8, 1, 2, 3)),
        bnc_g=(1.0 + w((8,))), bnc_b=w((8,)),
        Wcx=w((C, 16 * C)), bcx=w((C,)),
        W1=w((C, 5 * C)), W2=w((C, 5 * C)), W3=w((C, 5 * C)),
        W4=w((C, 15)), W5=w((C, 30)), W6=w((C, 30)),
        b1=w((C,)), b2=w((C,)), b3=w((C,)), b4=w((C,)), b5=w((C,)), b6=w((C,)),
        g1=(1.0 + w((C,))), g2=(1.0 + w((C,))), g3=(1.0 + w((C,))),
        g4=(1.0 + w((C,))), g5=(1.0 + w((C,))), g6=(1.0 + w((C,))),
        be1=w((C,)), be2=w((C,)), be3=w((C,)), be4=w((C,)), be5=w((C,)), be6=w((C,)),
        Wfc=w((2 * C, 6 * C)), bfc=w((2 * C,)),
        g7=(1.0 + w((2 * C,))), be7=w((2 * C,)),
        Wfc2=w((C, 2 * C)), bfc2=w((C,)),
        Wout=w((ncls, C)), bout=w((ncls,)),
    )
    return pr


if __name__ == "__main__":
    B, C, NCLS = 8, 16, 4
    key = jax.random.PRNGKey(0)
    kx, ky, kp, ks, kz, kw = jax.random.split(key, 6)
    x = jax.random.normal(kx, (B, 1, C), jnp.float32)
    y = jax.random.normal(ky, (B, 5, C), jnp.float32)
    p = jax.random.normal(kp, (B, 5, 3), jnp.float32)
    s = jax.random.normal(ks, (B, 5, 6), jnp.float32)
    zs = jax.random.normal(kz, (B, 5, 6), jnp.float32)
    pr = make_params(kw, C, NCLS)

    fwd = jax.jit(exnet_forward_pallas)
    f = fwd(x, y, p, s, zs, pr)
    jax.block_until_ready(f)

    # Golden reference in full f32; kernel dots run single-pass bf16 with f32
    # accumulation, so allow bf16-operand rounding through the whole chain.
    with jax.default_matmul_precision("highest"):
        ref = reference_forward(x, y, p, s, zs, pr)
    np.testing.assert_allclose(np.asarray(f), np.asarray(ref), rtol=3e-2, atol=3e-2)
    print("KERNEL_OK")
</pallas_src>

<mosaic_0001>
module attributes {stable_mosaic.version = 11 : i64} {
  func.func @_exnet_kernel(%arg0: memref<8x640xf32, #tpu.memory_space<vmem>>, %arg1: memref<384x1280xbf16, #tpu.memory_space<vmem>>, %arg2: memref<3584x128xbf16, #tpu.memory_space<vmem>>, %arg3: memref<16x128xf32, #tpu.memory_space<vmem>>, %arg4: memref<8x128xf32, #tpu.memory_space<vmem>>) attributes {dimension_semantics = [], scalar_prefetch = 0 : i64, scratch_operands = 0 : i64, tpu.core_type = #tpu.core_type<tc>} {
    %c0 = arith.constant 0 : index
    %c0_0 = arith.constant 0 : index
    %0 = vector.load %arg3[%c0, %c0_0] : memref<16x128xf32, #tpu.memory_space<vmem>>, vector<1x128xf32>
    %c1 = arith.constant 1 : index
    %c0_1 = arith.constant 0 : index
    %1 = vector.load %arg3[%c1, %c0_1] : memref<16x128xf32, #tpu.memory_space<vmem>>, vector<1x128xf32>
    %c2 = arith.constant 2 : index
    %c0_2 = arith.constant 0 : index
    %2 = vector.load %arg3[%c2, %c0_2] : memref<16x128xf32, #tpu.memory_space<vmem>>, vector<1x128xf32>
    %c3 = arith.constant 3 : index
    %c0_3 = arith.constant 0 : index
    %3 = vector.load %arg3[%c3, %c0_3] : memref<16x128xf32, #tpu.memory_space<vmem>>, vector<1x128xf32>
    %c4 = arith.constant 4 : index
    %c0_4 = arith.constant 0 : index
    %4 = vector.load %arg3[%c4, %c0_4] : memref<16x128xf32, #tpu.memory_space<vmem>>, vector<1x128xf32>
    %c5 = arith.constant 5 : index
    %c0_5 = arith.constant 0 : index
    %5 = vector.load %arg3[%c5, %c0_5] : memref<16x128xf32, #tpu.memory_space<vmem>>, vector<1x128xf32>
    %c6 = arith.constant 6 : index
    %c0_6 = arith.constant 0 : index
    %6 = vector.load %arg3[%c6, %c0_6] : memref<16x128xf32, #tpu.memory_space<vmem>>, vector<1x128xf32>
    %c7 = arith.constant 7 : index
    %c0_7 = arith.constant 0 : index
    %7 = vector.load %arg3[%c7, %c0_7] : memref<16x128xf32, #tpu.memory_space<vmem>>, vector<1x128xf32>
    %c8 = arith.constant 8 : index
    %c0_8 = arith.constant 0 : index
    %8 = vector.load %arg3[%c8, %c0_8] : memref<16x128xf32, #tpu.memory_space<vmem>>, vector<1x128xf32>
    %c9 = arith.constant 9 : index
    %c0_9 = arith.constant 0 : index
    %9 = vector.load %arg3[%c9, %c0_9] : memref<16x128xf32, #tpu.memory_space<vmem>>, vector<1x128xf32>
    %c10 = arith.constant 10 : index
    %c0_10 = arith.constant 0 : index
    %10 = vector.load %arg3[%c10, %c0_10] : memref<16x128xf32, #tpu.memory_space<vmem>>, vector<1x128xf32>
    %c11 = arith.constant 11 : index
    %c0_11 = arith.constant 0 : index
    %11 = vector.load %arg3[%c11, %c0_11] : memref<16x128xf32, #tpu.memory_space<vmem>>, vector<1x128xf32>
    %c0_12 = arith.constant 0 : index
    %c0_13 = arith.constant 0 : index
    %12 = vector.load %arg1[%c0_12, %c0_13] : memref<384x1280xbf16, #tpu.memory_space<vmem>>, vector<256x1280xbf16>
    %c256 = arith.constant 256 : index
    %c0_14 = arith.constant 0 : index
    %13 = vector.load %arg1[%c256, %c0_14] : memref<384x1280xbf16, #tpu.memory_space<vmem>>, vector<128x1280xbf16>
    %c0_15 = arith.constant 0 : index
    %c0_16 = arith.constant 0 : index
    %14 = vector.load %arg2[%c0_15, %c0_16] : memref<3584x128xbf16, #tpu.memory_space<vmem>>, vector<1280x128xbf16>
    %c1280 = arith.constant 1280 : index
    %c0_17 = arith.constant 0 : index
    %15 = vector.load %arg2[%c1280, %c0_17] : memref<3584x128xbf16, #tpu.memory_space<vmem>>, vector<1280x128xbf16>
    %c2560 = arith.constant 2560 : index
    %c0_18 = arith.constant 0 : index
    %16 = vector.load %arg2[%c2560, %c0_18] : memref<3584x128xbf16, #tpu.memory_space<vmem>>, vector<128x128xbf16>
    %c2688 = arith.constant 2688 : index
    %c0_19 = arith.constant 0 : index
    %17 = vector.load %arg2[%c2688, %c0_19] : memref<3584x128xbf16, #tpu.memory_space<vmem>>, vector<128x128xbf16>
    %c2816 = arith.constant 2816 : index
    %c0_20 = arith.constant 0 : index
    %18 = vector.load %arg2[%c2816, %c0_20] : memref<3584x128xbf16, #tpu.memory_space<vmem>>, vector<128x128xbf16>
    %c2944 = arith.constant 2944 : index
    %c0_21 = arith.constant 0 : index
    %19 = vector.load %arg2[%c2944, %c0_21] : memref<3584x128xbf16, #tpu.memory_space<vmem>>, vector<128x128xbf16>
    %c3072 = arith.constant 3072 : index
    %c0_22 = arith.constant 0 : index
    %20 = vector.load %arg2[%c3072, %c0_22] : memref<3584x128xbf16, #tpu.memory_space<vmem>>, vector<128x128xbf16>
    %c3200 = arith.constant 3200 : index
    %c0_23 = arith.constant 0 : index
    %21 = vector.load %arg2[%c3200, %c0_23] : memref<3584x128xbf16, #tpu.memory_space<vmem>>, vector<128x128xbf16>
    %c3328 = arith.constant 3328 : index
    %c0_24 = arith.constant 0 : index
    %22 = vector.load %arg2[%c3328, %c0_24] : memref<3584x128xbf16, #tpu.memory_space<vmem>>, vector<128x128xbf16>
    %c3456 = arith.constant 3456 : index
    %c0_25 = arith.constant 0 : index
    %23 = vector.load %arg2[%c3456, %c0_25] : memref<3584x128xbf16, #tpu.memory_space<vmem>>, vector<128x128xbf16>
    %c0_26 = arith.constant 0 : index
    %c0_27 = arith.constant 0 : index
    %24 = vector.load %arg0[%c0_26, %c0_27] : memref<8x640xf32, #tpu.memory_space<vmem>>, vector<8x256xf32>
    %c0_28 = arith.constant 0 : index
    %c256_29 = arith.constant 256 : index
    %25 = vector.load %arg0[%c0_28, %c256_29] : memref<8x640xf32, #tpu.memory_space<vmem>>, vector<8x128xf32>
    %c0_30 = arith.constant 0 : index
    %c384 = arith.constant 384 : index
    %26 = vector.load %arg0[%c0_30, %c384] : memref<8x640xf32, #tpu.memory_space<vmem>>, vector<8x128xf32>
    %c0_31 = arith.constant 0 : index
    %c512 = arith.constant 512 : index
    %27 = vector.load %arg0[%c0_31, %c512] : memref<8x640xf32, #tpu.memory_space<vmem>>, vector<8x128xf32>
    %28 = arith.truncf %24 : vector<8x256xf32> to vector<8x256xbf16>
    %cst = arith.constant dense<0.000000e+00> : vector<8x1280xf32>
    %29 = tpu.matmul %28, %12, %cst {dimension_numbers = #tpu.dot_dimension_numbers<[1], [0], [0], [1], [0, 0, 1, 1], [], []>} : vector<8x256xbf16>, vector<256x1280xbf16>, vector<8x1280xf32> -> vector<8x1280xf32>
    %cst_32 = arith.constant dense<0.000000e+00> : vector<1280xf32>
    %30 = vector.multi_reduction <add>, %29, %cst_32 [0] : vector<8x1280xf32> to vector<1280xf32>
    %31 = vector.shape_cast %30 : vector<1280xf32> to vector<1x1280xf32>
    %32 = arith.mulf %29, %29 : vector<8x1280xf32>
    %cst_33 = arith.constant dense<0.000000e+00> : vector<1280xf32>
    %33 = vector.multi_reduction <add>, %32, %cst_33 [0] : vector<8x1280xf32> to vector<1280xf32>
    %34 = vector.shape_cast %33 : vector<1280xf32> to vector<1x1280xf32>
    %35 = arith.truncf %31 : vector<1x1280xf32> to vector<1x1280xbf16>
    %cst_34 = arith.constant dense<0.000000e+00> : vector<1x128xf32>
    %36 = tpu.matmul %35, %14, %cst_34 {dimension_numbers = #tpu.dot_dimension_numbers<[1], [0], [0], [1], [0, 0, 1, 1], [], []>} : vector<1x1280xbf16>, vector<1280x128xbf16>, vector<1x128xf32> -> vector<1x128xf32>
    %cst_35 = arith.constant 7.812500e-03 : f32
    %37 = vector.broadcast %cst_35 : f32 to vector<1x128xf32>
    %38 = arith.mulf %36, %37 : vector<1x128xf32>
    %39 = arith.truncf %34 : vector<1x1280xf32> to vector<1x1280xbf16>
    %cst_36 = arith.constant dense<0.000000e+00> : vector<1x128xf32>
    %40 = tpu.matmul %39, %14, %cst_36 {dimension_numbers = #tpu.dot_dimension_numbers<[1], [0], [0], [1], [0, 0, 1, 1], [], []>} : vector<1x1280xbf16>, vector<1280x128xbf16>, vector<1x128xf32> -> vector<1x128xf32>
    %cst_37 = arith.constant 7.812500e-03 : f32
    %41 = vector.broadcast %cst_37 : f32 to vector<1x128xf32>
    %42 = arith.mulf %40, %41 : vector<1x128xf32>
    %43 = arith.mulf %38, %38 : vector<1x128xf32>
    %44 = arith.subf %42, %43 : vector<1x128xf32>
    %cst_38 = arith.constant 9.99999974E-6 : f32
    %45 = vector.broadcast %cst_38 : f32 to vector<1x128xf32>
    %46 = arith.addf %44, %45 : vector<1x128xf32>
    %47 = math.rsqrt %46 : vector<1x128xf32>
    %48 = arith.mulf %0, %47 : vector<1x128xf32>
    %49 = arith.mulf %38, %48 : vector<1x128xf32>
    %50 = arith.subf %1, %49 : vector<1x128xf32>
    %51 = arith.truncf %48 : vector<1x128xf32> to vector<1x128xbf16>
    %cst_39 = arith.constant dense<0.000000e+00> : vector<1x1280xf32>
    %52 = tpu.matmul %51, %13, %cst_39 {dimension_numbers = #tpu.dot_dimension_numbers<[1], [0], [0], [1], [0, 0, 1, 1], [], []>} : vector<1x128xbf16>, vector<128x1280xbf16>, vector<1x1280xf32> -> vector<1x1280xf32>
    %53 = vector.broadcast %52 : vector<1x1280xf32> to vector<8x1280xf32>
    %54 = arith.mulf %29, %53 : vector<8x1280xf32>
    %55 = arith.truncf %50 : vector<1x128xf32> to vector<1x128xbf16>
    %cst_40 = arith.constant dense<0.000000e+00> : vector<1x1280xf32>
    %56 = tpu.matmul %55, %13, %cst_40 {dimension_numbers = #tpu.dot_dimension_numbers<[1], [0], [0], [1], [0, 0, 1, 1], [], []>} : vector<1x128xbf16>, vector<128x1280xbf16>, vector<1x1280xf32> -> vector<1x1280xf32>
    %57 = vector.broadcast %56 : vector<1x1280xf32> to vector<8x1280xf32>
    %58 = arith.addf %54, %57 : vector<8x1280xf32>
    %cst_41 = arith.constant 0.000000e+00 : f32
    %59 = vector.broadcast %cst_41 : f32 to vector<8x1280xf32>
    %60 = arith.cmpf oge, %58, %59 : vector<8x1280xf32>
    %cst_42 = arith.constant 0.00999999977 : f32
    %61 = vector.broadcast %cst_42 : f32 to vector<8x1280xf32>
    %62 = arith.mulf %61, %58 : vector<8x1280xf32>
    %63 = arith.select %60, %58, %62 : vector<8x1280xi1>, vector<8x1280xf32>
    %64 = arith.truncf %63 : vector<8x1280xf32> to vector<8x1280xbf16>
    %cst_43 = arith.constant dense<0.000000e+00> : vector<8x128xf32>
    %65 = tpu.matmul %64, %15, %cst_43 {dimension_numbers = #tpu.dot_dimension_numbers<[1], [0], [0], [1], [0, 0, 1, 1], [], []>} : vector<8x1280xbf16>, vector<1280x128xbf16>, vector<8x128xf32> -> vector<8x128xf32>
    %66 = vector.broadcast %2 : vector<1x128xf32> to vector<8x128xf32>
    %67 = arith.addf %65, %66 : vector<8x128xf32>
    %68 = arith.subf %25, %26 : vector<8x128xf32>
    %69 = arith.mulf %25, %25 : vector<8x128xf32>
    %70 = arith.truncf %69 : vector<8x128xf32> to vector<8x128xbf16>
    %cst_44 = arith.constant dense<0.000000e+00> : vector<8x128xf32>
    %71 = tpu.matmul %70, %16, %cst_44 {dimension_numbers = #tpu.dot_dimension_numbers<[1], [0], [0], [1], [0, 0, 1, 1], [], []>} : vector<8x128xbf16>, vector<128x128xbf16>, vector<8x128xf32> -> vector<8x128xf32>
    %72 = arith.mulf %26, %26 : vector<8x128xf32>
    %73 = arith.truncf %72 : vector<8x128xf32> to vector<8x128xbf16>
    %cst_45 = arith.constant dense<0.000000e+00> : vector<8x128xf32>
    %74 = tpu.matmul %73, %16, %cst_45 {dimension_numbers = #tpu.dot_dimension_numbers<[1], [0], [0], [1], [0, 0, 1, 1], [], []>} : vector<8x128xbf16>, vector<128x128xbf16>, vector<8x128xf32> -> vector<8x128xf32>
    %75 = arith.mulf %26, %25 : vector<8x128xf32>
    %76 = arith.mulf %74, %71 : vector<8x128xf32>
    %77 = vector.broadcast %11 : vector<1x128xf32> to vector<8x128xf32>
    %78 = arith.addf %76, %77 : vector<8x128xf32>
    %79 = math.rsqrt %78 : vector<8x128xf32>
    %80 = arith.mulf %75, %79 : vector<8x128xf32>
    %81 = arith.truncf %67 : vector<8x128xf32> to vector<8x128xbf16>
    %cst_46 = arith.constant dense<0.000000e+00> : vector<8x128xf32>
    %82 = tpu.matmul %81, %17, %cst_46 {dimension_numbers = #tpu.dot_dimension_numbers<[1], [0], [0], [1], [0, 0, 1, 1], [], []>} : vector<8x128xbf16>, vector<128x128xbf16>, vector<8x128xf32> -> vector<8x128xf32>
    %83 = arith.truncf %68 : vector<8x128xf32> to vector<8x128xbf16>
    %cst_47 = arith.constant dense<0.000000e+00> : vector<8x128xf32>
    %84 = tpu.matmul %83, %18, %cst_47 {dimension_numbers = #tpu.dot_dimension_numbers<[1], [0], [0], [1], [0, 0, 1, 1], [], []>} : vector<8x128xbf16>, vector<128x128xbf16>, vector<8x128xf32> -> vector<8x128xf32>
    %85 = arith.addf %82, %84 : vector<8x128xf32>
    %86 = arith.truncf %80 : vector<8x128xf32> to vector<8x128xbf16>
    %cst_48 = arith.constant dense<0.000000e+00> : vector<8x128xf32>
    %87 = tpu.matmul %86, %19, %cst_48 {dimension_numbers = #tpu.dot_dimension_numbers<[1], [0], [0], [1], [0, 0, 1, 1], [], []>} : vector<8x128xbf16>, vector<128x128xbf16>, vector<8x128xf32> -> vector<8x128xf32>
    %88 = arith.addf %85, %87 : vector<8x128xf32>
    %89 = arith.truncf %27 : vector<8x128xf32> to vector<8x128xbf16>
    %cst_49 = arith.constant dense<0.000000e+00> : vector<8x128xf32>
    %90 = tpu.matmul %89, %20, %cst_49 {dimension_numbers = #tpu.dot_dimension_numbers<[1], [0], [0], [1], [0, 0, 1, 1], [], []>} : vector<8x128xbf16>, vector<128x128xbf16>, vector<8x128xf32> -> vector<8x128xf32>
    %91 = arith.addf %88, %90 : vector<8x128xf32>
    %92 = vector.broadcast %3 : vector<1x128xf32> to vector<8x128xf32>
    %93 = arith.addf %91, %92 : vector<8x128xf32>
    %cst_50 = arith.constant dense<0.000000e+00> : vector<128xf32>
    %94 = vector.multi_reduction <add>, %93, %cst_50 [0] : vector<8x128xf32> to vector<128xf32>
    %95 = vector.shape_cast %94 : vector<128xf32> to vector<1x128xf32>
    %cst_51 = arith.constant 8.000000e+00 : f32
    %96 = vector.broadcast %cst_51 : f32 to vector<1x128xf32>
    %97 = arith.divf %95, %96 : vector<1x128xf32>
    %98 = vector.broadcast %97 : vector<1x128xf32> to vector<8x128xf32>
    %99 = arith.subf %93, %98 : vector<8x128xf32>
    %100 = arith.mulf %99, %99 : vector<8x128xf32>
    %cst_52 = arith.constant dense<0.000000e+00> : vector<128xf32>
    %101 = vector.multi_reduction <add>, %100, %cst_52 [0] : vector<8x128xf32> to vector<128xf32>
    %102 = vector.shape_cast %101 : vector<128xf32> to vector<1x128xf32>
    %cst_53 = arith.constant 8.000000e+00 : f32
    %103 = vector.broadcast %cst_53 : f32 to vector<1x128xf32>
    %104 = arith.divf %102, %103 : vector<1x128xf32>
    %cst_54 = arith.constant 9.99999974E-6 : f32
    %105 = vector.broadcast %cst_54 : f32 to vector<1x128xf32>
    %106 = arith.addf %104, %105 : vector<1x128xf32>
    %107 = math.rsqrt %106 : vector<1x128xf32>
    %108 = vector.broadcast %107 : vector<1x128xf32> to vector<8x128xf32>
    %109 = arith.mulf %99, %108 : vector<8x128xf32>
    %110 = vector.broadcast %4 : vector<1x128xf32> to vector<8x128xf32>
    %111 = arith.mulf %109, %110 : vector<8x128xf32>
    %112 = vector.broadcast %5 : vector<1x128xf32> to vector<8x128xf32>
    %113 = arith.addf %111, %112 : vector<8x128xf32>
    %cst_55 = arith.constant 0.000000e+00 : f32
    %114 = vector.broadcast %cst_55 : f32 to vector<8x128xf32>
    %115 = arith.cmpf oge, %113, %114 : vector<8x128xf32>
    %cst_56 = arith.constant 0.00999999977 : f32
    %116 = vector.broadcast %cst_56 : f32 to vector<8x128xf32>
    %117 = arith.mulf %116, %113 : vector<8x128xf32>
    %118 = arith.select %115, %113, %117 : vector<8x128xi1>, vector<8x128xf32>
    %119 = arith.truncf %118 : vector<8x128xf32> to vector<8x128xbf16>
    %cst_57 = arith.constant dense<0.000000e+00> : vector<8x128xf32>
    %120 = tpu.matmul %119, %21, %cst_57 {dimension_numbers = #tpu.dot_dimension_numbers<[1], [0], [0], [1], [0, 0, 1, 1], [], []>} : vector<8x128xbf16>, vector<128x128xbf16>, vector<8x128xf32> -> vector<8x128xf32>
    %121 = vector.broadcast %6 : vector<1x128xf32> to vector<8x128xf32>
    %122 = arith.addf %120, %121 : vector<8x128xf32>
    %cst_58 = arith.constant 0.000000e+00 : f32
    %123 = vector.broadcast %cst_58 : f32 to vector<8x128xf32>
    %124 = arith.cmpf oge, %122, %123 : vector<8x128xf32>
    %cst_59 = arith.constant 0.00999999977 : f32
    %125 = vector.broadcast %cst_59 : f32 to vector<8x128xf32>
    %126 = arith.mulf %125, %122 : vector<8x128xf32>
    %127 = arith.select %124, %122, %126 : vector<8x128xi1>, vector<8x128xf32>
    %cst_60 = arith.constant dense<0.000000e+00> : vector<128xf32>
    %128 = vector.multi_reduction <add>, %127, %cst_60 [0] : vector<8x128xf32> to vector<128xf32>
    %129 = vector.shape_cast %128 : vector<128xf32> to vector<1x128xf32>
    %cst_61 = arith.constant 8.000000e+00 : f32
    %130 = vector.broadcast %cst_61 : f32 to vector<1x128xf32>
    %131 = arith.divf %129, %130 : vector<1x128xf32>
    %132 = vector.broadcast %131 : vector<1x128xf32> to vector<8x128xf32>
    %133 = arith.subf %127, %132 : vector<8x128xf32>
    %134 = arith.mulf %133, %133 : vector<8x128xf32>
    %cst_62 = arith.constant dense<0.000000e+00> : vector<128xf32>
    %135 = vector.multi_reduction <add>, %134, %cst_62 [0] : vector<8x128xf32> to vector<128xf32>
    %136 = vector.shape_cast %135 : vector<128xf32> to vector<1x128xf32>
    %cst_63 = arith.constant 8.000000e+00 : f32
    %137 = vector.broadcast %cst_63 : f32 to vector<1x128xf32>
    %138 = arith.divf %136, %137 : vector<1x128xf32>
    %cst_64 = arith.constant 9.99999974E-6 : f32
    %139 = vector.broadcast %cst_64 : f32 to vector<1x128xf32>
    %140 = arith.addf %138, %139 : vector<1x128xf32>
    %141 = math.rsqrt %140 : vector<1x128xf32>
    %142 = vector.broadcast %141 : vector<1x128xf32> to vector<8x128xf32>
    %143 = arith.mulf %133, %142 : vector<8x128xf32>
    %144 = vector.broadcast %7 : vector<1x128xf32> to vector<8x128xf32>
    %145 = arith.mulf %143, %144 : vector<8x128xf32>
    %146 = vector.broadcast %8 : vector<1x128xf32> to vector<8x128xf32>
    %147 = arith.addf %145, %146 : vector<8x128xf32>
    %148 = arith.truncf %147 : vector<8x128xf32> to vector<8x128xbf16>
    %cst_65 = arith.constant dense<0.000000e+00> : vector<8x128xf32>
    %149 = tpu.matmul %148, %22, %cst_65 {dimension_numbers = #tpu.dot_dimension_numbers<[1], [0], [0], [1], [0, 0, 1, 1], [], []>} : vector<8x128xbf16>, vector<128x128xbf16>, vector<8x128xf32> -> vector<8x128xf32>
    %150 = vector.broadcast %9 : vector<1x128xf32> to vector<8x128xf32>
    %151 = arith.addf %149, %150 : vector<8x128xf32>
    %cst_66 = arith.constant 0.000000e+00 : f32
    %152 = vector.broadcast %cst_66 : f32 to vector<8x128xf32>
    %153 = arith.cmpf oge, %151, %152 : vector<8x128xf32>
    %cst_67 = arith.constant 0.00999999977 : f32
    %154 = vector.broadcast %cst_67 : f32 to vector<8x128xf32>
    %155 = arith.mulf %154, %151 : vector<8x128xf32>
    %156 = arith.select %153, %151, %155 : vector<8x128xi1>, vector<8x128xf32>
    %157 = arith.truncf %156 : vector<8x128xf32> to vector<8x128xbf16>
    %cst_68 = arith.constant dense<0.000000e+00> : vector<8x128xf32>
    %158 = tpu.matmul %157, %23, %cst_68 {dimension_numbers = #tpu.dot_dimension_numbers<[1], [0], [0], [1], [0, 0, 1, 1], [], []>} : vector<8x128xbf16>, vector<128x128xbf16>, vector<8x128xf32> -> vector<8x128xf32>
    %159 = vector.broadcast %10 : vector<1x128xf32> to vector<8x128xf32>
    %160 = arith.addf %158, %159 : vector<8x128xf32>
    %c0_69 = arith.constant 0 : index
    %c0_70 = arith.constant 0 : index
    %161 = vector.load %arg4[%c0_69, %c0_70] : memref<8x128xf32, #tpu.memory_space<vmem>>, vector<8x128xf32>
    tpu.vector_store %arg4[%c0_69, %c0_70], %160 {strides = array<i32>} : memref<8x128xf32, #tpu.memory_space<vmem>>, vector<8x128xf32>,
    return
  }
}

</mosaic_0001>

<llo_original>
// kernel: tile.26
$region0: #{tile.26}
  #allocation0 [shape = 's32[1]{0}', space=sflag, size = 0x4, scoped, tag = 'scoped memory for tile.26']
  %s0 = inlined_call_operand.vmem [shape: f32[16], index: 0, kind: input, shape index: {}]
  %s1 = inlined_call_operand.vmem [shape: f32[5,16], index: 1, kind: output, shape index: {}]
  // Predicated region
  $region2: #{tile.26} parent=0 // pred_check
    _
  $region3: #{tile.26} parent=0 // pred_check_branch
    %3 = sbr.rel (0) target = $region5
  $region4: #{tile.26} parent=0 // pred_region
    _
  $region5: #{tile.26} parent=0 // pred_fallthru
    _
  %v4 = vld [vmem:[%s0] ss:$0 sm:$0xff]
  %5 = vst [vmem:[%s1] sm:$0xff] %v4

// kernel: exnet_forward_pallas.1
$region0: #{exnet_forward_pallas.1}
  #allocation0 [shape = 'u32[]', space=smem, size = 0x4, offset = 0x4, fixed_abs, tag = 'smem constant byte address 0x4 - core index']
  #allocation1 [shape = 'u32[144,128]{1,0:T(1,128)}', space=vmem, size = 0x12000, scoped, tag = 'internal scratch']
  %s0 = inlined_call_operand.vmem [shape: f32[8,640], index: 0, kind: input, shape index: {}]
  %s1 = inlined_call_operand.vmem [shape: bf16[384,1280], index: 1, kind: input, shape index: {}]
  %s2 = inlined_call_operand.vmem [shape: bf16[3584,128], index: 2, kind: input, shape index: {}]
  %s3 = inlined_call_operand.vmem [shape: f32[16,128], index: 3, kind: input, shape index: {}]
  %s4 = inlined_call_operand.vmem [shape: f32[8,128], index: 4, kind: output, shape index: {}]
  %s5 = sld [smem:[#allocation0]]
  $region26: #{exnet_forward_pallas.1} parent=0
    _
  %s7 = ssub.s32 1, %s5
  %s8 = scalar_select 0, %s7, %s5
  // Predicated region
  $region2: #{exnet_forward_pallas.1} parent=0 // pred_check
    _
  $region3: #{exnet_forward_pallas.1} parent=0 // pred_check_branch
    %10 = sbr.rel (0) target = $region5
  $region4: #{exnet_forward_pallas.1} parent=0 // pred_region
    _
  $region5: #{exnet_forward_pallas.1} parent=0 // pred_fallthru
    _
  // Predicated region
  $region6: #{exnet_forward_pallas.1} parent=0 // pred_check
    _
  $region7: #{exnet_forward_pallas.1} parent=0 // pred_check_branch
    %12 = sbr.rel (0) target = $region9
  $region8: #{exnet_forward_pallas.1} parent=0 // pred_region
    _
  $region9: #{exnet_forward_pallas.1} parent=0 // pred_fallthru
    _
  // Predicated region
  $region10: #{exnet_forward_pallas.1} parent=0 // pred_check
    _
  $region11: #{exnet_forward_pallas.1} parent=0 // pred_check_branch
    %14 = sbr.rel (0) target = $region13
  $region12: #{exnet_forward_pallas.1} parent=0 // pred_region
    _
  $region13: #{exnet_forward_pallas.1} parent=0 // pred_fallthru
    _
  // Predicated region
  $region14: #{exnet_forward_pallas.1} parent=0 // pred_check
    _
  $region15: #{exnet_forward_pallas.1} parent=0 // pred_check_branch
    %16 = sbr.rel (0) target = $region17
  $region16: #{exnet_forward_pallas.1} parent=0 // pred_region
    _
  $region17: #{exnet_forward_pallas.1} parent=0 // pred_fallthru
    _
  %v18 = vld [vmem:[%s3] sm:$0x1]
  %v19 = vld [vmem:[%s3 + $0x1] sm:$0x1]
  %v20 = vld [vmem:[%s3 + $0x2] sm:$0x1]
  %v21 = vld [vmem:[%s3 + $0x3] sm:$0x1]
  %v22 = vld [vmem:[%s3 + $0x4] sm:$0x1]
  %v23 = vld [vmem:[%s3 + $0x5] sm:$0x1]
  %v24 = vld [vmem:[%s3 + $0x6] sm:$0x1]
  %v25 = vld [vmem:[%s3 + $0x7] sm:$0x1]
  %v26 = vld [vmem:[%s3 + $0x8] sm:$0x1]
  %v27 = vld [vmem:[%s3 + $0x9] sm:$0x1]
  %v28 = vld [vmem:[%s3 + $0xa] sm:$0x1]
  %v29 = vld [vmem:[%s3 + $0xb] sm:$0x1]
  %v30 = vld [vmem:[%s1] sm:$0xff]
  %v31 = vld [vmem:[%s1 + $0x8] sm:$0xff]
  %v32 = vld [vmem:[%s1 + $0x10] sm:$0xff]
  %v33 = vld [vmem:[%s1 + $0x18] sm:$0xff]
  %v34 = vld [vmem:[%s1 + $0x20] sm:$0xff]
  %v35 = vld [vmem:[%s1 + $0x28] sm:$0xff]
  %v36 = vld [vmem:[%s1 + $0x30] sm:$0xff]
  %v37 = vld [vmem:[%s1 + $0x38] sm:$0xff]
  %v38 = vld [vmem:[%s1 + $0x40] sm:$0xff]
  %v39 = vld [vmem:[%s1 + $0x48] sm:$0xff]
  %v40 = vld [vmem:[%s1 + $0x50] sm:$0xff]
  %v41 = vld [vmem:[%s1 + $0x58] sm:$0xff]
  %v42 = vld [vmem:[%s1 + $0x60] sm:$0xff]
  %v43 = vld [vmem:[%s1 + $0x68] sm:$0xff]
  %v44 = vld [vmem:[%s1 + $0x70] sm:$0xff]
  %v45 = vld [vmem:[%s1 + $0x78] sm:$0xff]
  %v46 = vld [vmem:[%s1 + $0x80] sm:$0xff]
  %v47 = vld [vmem:[%s1 + $0x88] sm:$0xff]
  %v48 = vld [vmem:[%s1 + $0x90] sm:$0xff]
  %v49 = vld [vmem:[%s1 + $0x98] sm:$0xff]
  %v50 = vld [vmem:[%s1 + $0xa0] sm:$0xff]
  %v51 = vld [vmem:[%s1 + $0xa8] sm:$0xff]
  %v52 = vld [vmem:[%s1 + $0xb0] sm:$0xff]
  %v53 = vld [vmem:[%s1 + $0xb8] sm:$0xff]
  %v54 = vld [vmem:[%s1 + $0xc0] sm:$0xff]
  %v55 = vld [vmem:[%s1 + $0xc8] sm:$0xff]
  %v56 = vld [vmem:[%s1 + $0xd0] sm:$0xff]
  %v57 = vld [vmem:[%s1 + $0xd8] sm:$0xff]
  %v58 = vld [vmem:[%s1 + $0xe0] sm:$0xff]
  %v59 = vld [vmem:[%s1 + $0xe8] sm:$0xff]
  %v60 = vld [vmem:[%s1 + $0xf0] sm:$0xff]
  %v61 = vld [vmem:[%s1 + $0xf8] sm:$0xff]
  %v62 = vld [vmem:[%s1 + $0x100] sm:$0xff]
  %v63 = vld [vmem:[%s1 + $0x108] sm:$0xff]
  %v64 = vld [vmem:[%s1 + $0x110] sm:$0xff]
  %v65 = vld [vmem:[%s1 + $0x118] sm:$0xff]
  %v66 = vld [vmem:[%s1 + $0x120] sm:$0xff]
  %v67 = vld [vmem:[%s1 + $0x128] sm:$0xff]
  %v68 = vld [vmem:[%s1 + $0x130] sm:$0xff]
  %v69 = vld [vmem:[%s1 + $0x138] sm:$0xff]
  %v70 = vld [vmem:[%s1 + $0x140] sm:$0xff]
  %v71 = vld [vmem:[%s1 + $0x148] sm:$0xff]
  %v72 = vld [vmem:[%s1 + $0x150] sm:$0xff]
  %v73 = vld [vmem:[%s1 + $0x158] sm:$0xff]
  %v74 = vld [vmem:[%s1 + $0x160] sm:$0xff]
  %v75 = vld [vmem:[%s1 + $0x168] sm:$0xff]
  %v76 = vld [vmem:[%s1 + $0x170] sm:$0xff]
  %v77 = vld [vmem:[%s1 + $0x178] sm:$0xff]
  %v78 = vld [vmem:[%s1 + $0x180] sm:$0xff]
  %v79 = vld [vmem:[%s1 + $0x188] sm:$0xff]
  %v80 = vld [vmem:[%s1 + $0x190] sm:$0xff]
  %v81 = vld [vmem:[%s1 + $0x198] sm:$0xff]
  %v82 = vld [vmem:[%s1 + $0x1a0] sm:$0xff]
  %v83 = vld [vmem:[%s1 + $0x1a8] sm:$0xff]
  %v84 = vld [vmem:[%s1 + $0x1b0] sm:$0xff]
  %v85 = vld [vmem:[%s1 + $0x1b8] sm:$0xff]
  %v86 = vld [vmem:[%s1 + $0x1c0] sm:$0xff]
  %v87 = vld [vmem:[%s1 + $0x1c8] sm:$0xff]
  %v88 = vld [vmem:[%s1 + $0x1d0] sm:$0xff]
  %v89 = vld [vmem:[%s1 + $0x1d8] sm:$0xff]
  %v90 = vld [vmem:[%s1 + $0x1e0] sm:$0xff]
  %v91 = vld [vmem:[%s1 + $0x1e8] sm:$0xff]
  %v92 = vld [vmem:[%s1 + $0x1f0] sm:$0xff]
  %v93 = vld [vmem:[%s1 + $0x1f8] sm:$0xff]
  %v94 = vld [vmem:[%s1 + $0x200] sm:$0xff]
  %v95 = vld [vmem:[%s1 + $0x208] sm:$0xff]
  %v96 = vld [vmem:[%s1 + $0x210] sm:$0xff]
  %v97 = vld [vmem:[%s1 + $0x218] sm:$0xff]
  %v98 = vld [vmem:[%s1 + $0x220] sm:$0xff]
  %v99 = vld [vmem:[%s1 + $0x228] sm:$0xff]
  %v100 = vld [vmem:[%s1 + $0x230] sm:$0xff]
  %v101 = vld [vmem:[%s1 + $0x238] sm:$0xff]
  %v102 = vld [vmem:[%s1 + $0x240] sm:$0xff]
  %v103 = vld [vmem:[%s1 + $0x248] sm:$0xff]
  %v104 = vld [vmem:[%s1 + $0x250] sm:$0xff]
  %v105 = vld [vmem:[%s1 + $0x258] sm:$0xff]
  %v106 = vld [vmem:[%s1 + $0x260] sm:$0xff]
  %v107 = vld [vmem:[%s1 + $0x268] sm:$0xff]
  %v108 = vld [vmem:[%s1 + $0x270] sm:$0xff]
  %v109 = vld [vmem:[%s1 + $0x278] sm:$0xff]
  %v110 = vld [vmem:[%s1 + $0x280] sm:$0xff]
  %v111 = vld [vmem:[%s1 + $0x288] sm:$0xff]
  %v112 = vld [vmem:[%s1 + $0x290] sm:$0xff]
  %v113 = vld [vmem:[%s1 + $0x298] sm:$0xff]
  %v114 = vld [vmem:[%s1 + $0x2a0] sm:$0xff]
  %v115 = vld [vmem:[%s1 + $0x2a8] sm:$0xff]
  %v116 = vld [vmem:[%s1 + $0x2b0] sm:$0xff]
  %v117 = vld [vmem:[%s1 + $0x2b8] sm:$0xff]
  %v118 = vld [vmem:[%s1 + $0x2c0] sm:$0xff]
  %v119 = vld [vmem:[%s1 + $0x2c8] sm:$0xff]
  %v120 = vld [vmem:[%s1 + $0x2d0] sm:$0xff]
  %v121 = vld [vmem:[%s1 + $0x2d8] sm:$0xff]
  %v122 = vld [vmem:[%s1 + $0x2e0] sm:$0xff]
  %v123 = vld [vmem:[%s1 + $0x2e8] sm:$0xff]
  %v124 = vld [vmem:[%s1 + $0x2f0] sm:$0xff]
  %v125 = vld [vmem:[%s1 + $0x2f8] sm:$0xff]
  %v126 = vld [vmem:[%s1 + $0x300] sm:$0xff]
  %v127 = vld [vmem:[%s1 + $0x308] sm:$0xff]
  %v128 = vld [vmem:[%s1 + $0x310] sm:$0xff]
  %v129 = vld [vmem:[%s1 + $0x318] sm:$0xff]
  %v130 = vld [vmem:[%s1 + $0x320] sm:$0xff]
  %v131 = vld [vmem:[%s1 + $0x328] sm:$0xff]
  %v132 = vld [vmem:[%s1 + $0x330] sm:$0xff]
  %v133 = vld [vmem:[%s1 + $0x338] sm:$0xff]
  %v134 = vld [vmem:[%s1 + $0x340] sm:$0xff]
  %v135 = vld [vmem:[%s1 + $0x348] sm:$0xff]
  %v136 = vld [vmem:[%s1 + $0x350] sm:$0xff]
  %v137 = vld [vmem:[%s1 + $0x358] sm:$0xff]
  %v138 = vld [vmem:[%s1 + $0x360] sm:$0xff]
  %v139 = vld [vmem:[%s1 + $0x368] sm:$0xff]
  %v140 = vld [vmem:[%s1 + $0x370] sm:$0xff]
  %v141 = vld [vmem:[%s1 + $0x378] sm:$0xff]
  %v142 = vld [vmem:[%s1 + $0x380] sm:$0xff]
  %v143 = vld [vmem:[%s1 + $0x388] sm:$0xff]
  %v144 = vld [vmem:[%s1 + $0x390] sm:$0xff]
  %v145 = vld [vmem:[%s1 + $0x398] sm:$0xff]
  %v146 = vld [vmem:[%s1 + $0x3a0] sm:$0xff]
  %v147 = vld [vmem:[%s1 + $0x3a8] sm:$0xff]
  %v148 = vld [vmem:[%s1 + $0x3b0] sm:$0xff]
  %v149 = vld [vmem:[%s1 + $0x3b8] sm:$0xff]
  %v150 = vld [vmem:[%s1 + $0x3c0] sm:$0xff]
  %v151 = vld [vmem:[%s1 + $0x3c8] sm:$0xff]
  %v152 = vld [vmem:[%s1 + $0x3d0] sm:$0xff]
  %v153 = vld [vmem:[%s1 + $0x3d8] sm:$0xff]
  %v154 = vld [vmem:[%s1 + $0x3e0] sm:$0xff]
  %v155 = vld [vmem:[%s1 + $0x3e8] sm:$0xff]
  %v156 = vld [vmem:[%s1 + $0x3f0] sm:$0xff]
  %v157 = vld [vmem:[%s1 + $0x3f8] sm:$0xff]
  %v158 = vld [vmem:[%s1 + $0x400] sm:$0xff]
  %v159 = vld [vmem:[%s1 + $0x408] sm:$0xff]
  %v160 = vld [vmem:[%s1 + $0x410] sm:$0xff]
  %v161 = vld [vmem:[%s1 + $0x418] sm:$0xff]
  %v162 = vld [vmem:[%s1 + $0x420] sm:$0xff]
  %v163 = vld [vmem:[%s1 + $0x428] sm:$0xff]
  %v164 = vld [vmem:[%s1 + $0x430] sm:$0xff]
  %v165 = vld [vmem:[%s1 + $0x438] sm:$0xff]
  %v166 = vld [vmem:[%s1 + $0x440] sm:$0xff]
  %v167 = vld [vmem:[%s1 + $0x448] sm:$0xff]
  %v168 = vld [vmem:[%s1 + $0x450] sm:$0xff]
  %v169 = vld [vmem:[%s1 + $0x458] sm:$0xff]
  %v170 = vld [vmem:[%s1 + $0x460] sm:$0xff]
  %v171 = vld [vmem:[%s1 + $0x468] sm:$0xff]
  %v172 = vld [vmem:[%s1 + $0x470] sm:$0xff]
  %v173 = vld [vmem:[%s1 + $0x478] sm:$0xff]
  %v174 = vld [vmem:[%s1 + $0x480] sm:$0xff]
  %v175 = vld [vmem:[%s1 + $0x488] sm:$0xff]
  %v176 = vld [vmem:[%s1 + $0x490] sm:$0xff]
  %v177 = vld [vmem:[%s1 + $0x498] sm:$0xff]
  %v178 = vld [vmem:[%s1 + $0x4a0] sm:$0xff]
  %v179 = vld [vmem:[%s1 + $0x4a8] sm:$0xff]
  %v180 = vld [vmem:[%s1 + $0x4b0] sm:$0xff]
  %v181 = vld [vmem:[%s1 + $0x4b8] sm:$0xff]
  %v182 = vld [vmem:[%s1 + $0x4c0] sm:$0xff]
  %v183 = vld [vmem:[%s1 + $0x4c8] sm:$0xff]
  %v184 = vld [vmem:[%s1 + $0x4d0] sm:$0xff]
  %v185 = vld [vmem:[%s1 + $0x4d8] sm:$0xff]
  %v186 = vld [vmem:[%s1 + $0x4e0] sm:$0xff]
  %v187 = vld [vmem:[%s1 + $0x4e8] sm:$0xff]
  %v188 = vld [vmem:[%s1 + $0x4f0] sm:$0xff]
  %v189 = vld [vmem:[%s1 + $0x4f8] sm:$0xff]
  %v190 = vld [vmem:[%s1 + $0x500] sm:$0xff]
  %v191 = vld [vmem:[%s1 + $0x508] sm:$0xff]
  %v192 = vld [vmem:[%s1 + $0x510] sm:$0xff]
  %v193 = vld [vmem:[%s1 + $0x518] sm:$0xff]
  %v194 = vld [vmem:[%s1 + $0x520] sm:$0xff]
  %v195 = vld [vmem:[%s1 + $0x528] sm:$0xff]
  %v196 = vld [vmem:[%s1 + $0x530] sm:$0xff]
  %v197 = vld [vmem:[%s1 + $0x538] sm:$0xff]
  %v198 = vld [vmem:[%s1 + $0x540] sm:$0xff]
  %v199 = vld [vmem:[%s1 + $0x548] sm:$0xff]
  %v200 = vld [vmem:[%s1 + $0x550] sm:$0xff]
  %v201 = vld [vmem:[%s1 + $0x558] sm:$0xff]
  %v202 = vld [vmem:[%s1 + $0x560] sm:$0xff]
  %v203 = vld [vmem:[%s1 + $0x568] sm:$0xff]
  %v204 = vld [vmem:[%s1 + $0x570] sm:$0xff]
  %v205 = vld [vmem:[%s1 + $0x578] sm:$0xff]
  %v206 = vld [vmem:[%s1 + $0x580] sm:$0xff]
  %v207 = vld [vmem:[%s1 + $0x588] sm:$0xff]
  %v208 = vld [vmem:[%s1 + $0x590] sm:$0xff]
  %v209 = vld [vmem:[%s1 + $0x598] sm:$0xff]
  %v210 = vld [vmem:[%s1 + $0x5a0] sm:$0xff]
  %v211 = vld [vmem:[%s1 + $0x5a8] sm:$0xff]
  %v212 = vld [vmem:[%s1 + $0x5b0] sm:$0xff]
  %v213 = vld [vmem:[%s1 + $0x5b8] sm:$0xff]
  %v214 = vld [vmem:[%s1 + $0x5c0] sm:$0xff]
  %v215 = vld [vmem:[%s1 + $0x5c8] sm:$0xff]
  %v216 = vld [vmem:[%s1 + $0x5d0] sm:$0xff]
  %v217 = vld [vmem:[%s1 + $0x5d8] sm:$0xff]
  %v218 = vld [vmem:[%s1 + $0x5e0] sm:$0xff]
  %v219 = vld [vmem:[%s1 + $0x5e8] sm:$0xff]
  %v220 = vld [vmem:[%s1 + $0x5f0] sm:$0xff]
  %v221 = vld [vmem:[%s1 + $0x5f8] sm:$0xff]
  %v222 = vld [vmem:[%s1 + $0x600] sm:$0xff]
  %v223 = vld [vmem:[%s1 + $0x608] sm:$0xff]
  %v224 = vld [vmem:[%s1 + $0x610] sm:$0xff]
  %v225 = vld [vmem:[%s1 + $0x618] sm:$0xff]
  %v226 = vld [vmem:[%s1 + $0x620] sm:$0xff]
  %v227 = vld [vmem:[%s1 + $0x628] sm:$0xff]
  %v228 = vld [vmem:[%s1 + $0x630] sm:$0xff]
  %v229 = vld [vmem:[%s1 + $0x638] sm:$0xff]
  %v230 = vld [vmem:[%s1 + $0x640] sm:$0xff]
  %v231 = vld [vmem:[%s1 + $0x648] sm:$0xff]
  %v232 = vld [vmem:[%s1 + $0x650] sm:$0xff]
  %v233 = vld [vmem:[%s1 + $0x658] sm:$0xff]
  %v234 = vld [vmem:[%s1 + $0x660] sm:$0xff]
  %v235 = vld [vmem:[%s1 + $0x668] sm:$0xff]
  %v236 = vld [vmem:[%s1 + $0x670] sm:$0xff]
  %v237 = vld [vmem:[%s1 + $0x678] sm:$0xff]
  %v238 = vld [vmem:[%s1 + $0x680] sm:$0xff]
  %v239 = vld [vmem:[%s1 + $0x688] sm:$0xff]
  %v240 = vld [vmem:[%s1 + $0x690] sm:$0xff]
  %v241 = vld [vmem:[%s1 + $0x698] sm:$0xff]
  %v242 = vld [vmem:[%s1 + $0x6a0] sm:$0xff]
  %v243 = vld [vmem:[%s1 + $0x6a8] sm:$0xff]
  %v244 = vld [vmem:[%s1 + $0x6b0] sm:$0xff]
  %v245 = vld [vmem:[%s1 + $0x6b8] sm:$0xff]
  %v246 = vld [vmem:[%s1 + $0x6c0] sm:$0xff]
  %v247 = vld [vmem:[%s1 + $0x6c8] sm:$0xff]
  %v248 = vld [vmem:[%s1 + $0x6d0] sm:$0xff]
  %v249 = vld [vmem:[%s1 + $0x6d8] sm:$0xff]
  %v250 = vld [vmem:[%s1 + $0x6e0] sm:$0xff]
  %v251 = vld [vmem:[%s1 + $0x6e8] sm:$0xff]
  %v252 = vld [vmem:[%s1 + $0x6f0] sm:$0xff]
  %v253 = vld [vmem:[%s1 + $0x6f8] sm:$0xff]
  %v254 = vld [vmem:[%s1 + $0x700] sm:$0xff]
  %v255 = vld [vmem:[%s1 + $0x708] sm:$0xff]
  %v256 = vld [vmem:[%s1 + $0x710] sm:$0xff]
  %v257 = vld [vmem:[%s1 + $0x718] sm:$0xff]
  %v258 = vld [vmem:[%s1 + $0x720] sm:$0xff]
  %v259 = vld [vmem:[%s1 + $0x728] sm:$0xff]
  %v260 = vld [vmem:[%s1 + $0x730] sm:$0xff]
  %v261 = vld [vmem:[%s1 + $0x738] sm:$0xff]
  %v262 = vld [vmem:[%s1 + $0x740] sm:$0xff]
  %v263 = vld [vmem:[%s1 + $0x748] sm:$0xff]
  %v264 = vld [vmem:[%s1 + $0x750] sm:$0xff]
  %v265 = vld [vmem:[%s1 + $0x758] sm:$0xff]
  %v266 = vld [vmem:[%s1 + $0x760] sm:$0xff]
  %v267 = vld [vmem:[%s1 + $0x768] sm:$0xff]
  %v268 = vld [vmem:[%s1 + $0x770] sm:$0xff]
  %v269 = vld [vmem:[%s1 + $0x778] sm:$0xff]
  %v270 = vld [vmem:[%s2] sm:$0xf]
  %v271 = vld [vmem:[%s2 + $0x4] sm:$0xf]
  %v272 = vld [vmem:[%s2 + $0x8] sm:$0xf]
  %v273 = vld [vmem:[%s2 + $0xc] sm:$0xf]
  %v274 = vld [vmem:[%s2 + $0x10] sm:$0xf]
  %v275 = vld [vmem:[%s2 + $0x14] sm:$0xf]
  %v276 = vld [vmem:[%s2 + $0x18] sm:$0xf]
  %v277 = vld [vmem:[%s2 + $0x1c] sm:$0xf]
  %v278 = vld [vmem:[%s2 + $0x20] sm:$0xf]
  %v279 = vld [vmem:[%s2 + $0x24] sm:$0xf]
  %v280 = vld [vmem:[%s2 + $0x28] sm:$0xf]
  %v281 = vld [vmem:[%s2 + $0x2c] sm:$0xf]
  %v282 = vld [vmem:[%s2 + $0x30] sm:$0xf]
  %v283 = vld [vmem:[%s2 + $0x34] sm:$0xf]
  %v284 = vld [vmem:[%s2 + $0x38] sm:$0xf]
  %v285 = vld [vmem:[%s2 + $0x3c] sm:$0xf]
  %v286 = vld [vmem:[%s2 + $0x40] sm:$0xf]
  %v287 = vld [vmem:[%s2 + $0x44] sm:$0xf]
  %v288 = vld [vmem:[%s2 + $0x48] sm:$0xf]
  %v289 = vld [vmem:[%s2 + $0x4c] sm:$0xf]
  %v290 = vld [vmem:[%s2 + $0x50] sm:$0xf]
  %v291 = vld [vmem:[%s2 + $0x54] sm:$0xf]
  %v292 = vld [vmem:[%s2 + $0x58] sm:$0xf]
  %v293 = vld [vmem:[%s2 + $0x5c] sm:$0xf]
  %v294 = vld [vmem:[%s2 + $0x60] sm:$0xf]
  %v295 = vld [vmem:[%s2 + $0x64] sm:$0xf]
  %v296 = vld [vmem:[%s2 + $0x68] sm:$0xf]
  %v297 = vld [vmem:[%s2 + $0x6c] sm:$0xf]
  %v298 = vld [vmem:[%s2 + $0x70] sm:$0xf]
  %v299 = vld [vmem:[%s2 + $0x74] sm:$0xf]
  %v300 = vld [vmem:[%s2 + $0x78] sm:$0xf]
  %v301 = vld [vmem:[%s2 + $0x7c] sm:$0xf]
  %v302 = vld [vmem:[%s2 + $0x80] sm:$0xf]
  %v303 = vld [vmem:[%s2 + $0x84] sm:$0xf]
  %v304 = vld [vmem:[%s2 + $0x88] sm:$0xf]
  %v305 = vld [vmem:[%s2 + $0x8c] sm:$0xf]
  %v306 = vld [vmem:[%s2 + $0x90] sm:$0xf]
  %v307 = vld [vmem:[%s2 + $0x94] sm:$0xf]
  %v308 = vld [vmem:[%s2 + $0x98] sm:$0xf]
  %v309 = vld [vmem:[%s2 + $0x9c] sm:$0xf]
  %v310 = vld [vmem:[%s2 + $0xa0] sm:$0xf]
  %v311 = vld [vmem:[%s2 + $0xa4] sm:$0xf]
  %v312 = vld [vmem:[%s2 + $0xa8] sm:$0xf]
  %v313 = vld [vmem:[%s2 + $0xac] sm:$0xf]
  %v314 = vld [vmem:[%s2 + $0xb0] sm:$0xf]
  %v315 = vld [vmem:[%s2 + $0xb4] sm:$0xf]
  %v316 = vld [vmem:[%s2 + $0xb8] sm:$0xf]
  %v317 = vld [vmem:[%s2 + $0xbc] sm:$0xf]
  %v318 = vld [vmem:[%s2 + $0xc0] sm:$0xf]
  %v319 = vld [vmem:[%s2 + $0xc4] sm:$0xf]
  %v320 = vld [vmem:[%s2 + $0xc8] sm:$0xf]
  %v321 = vld [vmem:[%s2 + $0xcc] sm:$0xf]
  %v322 = vld [vmem:[%s2 + $0xd0] sm:$0xf]
  %v323 = vld [vmem:[%s2 + $0xd4] sm:$0xf]
  %v324 = vld [vmem:[%s2 + $0xd8] sm:$0xf]
  %v325 = vld [vmem:[%s2 + $0xdc] sm:$0xf]
  %v326 = vld [vmem:[%s2 + $0xe0] sm:$0xf]
  %v327 = vld [vmem:[%s2 + $0xe4] sm:$0xf]
  %v328 = vld [vmem:[%s2 + $0xe8] sm:$0xf]
  %v329 = vld [vmem:[%s2 + $0xec] sm:$0xf]
  %v330 = vld [vmem:[%s2 + $0xf0] sm:$0xf]
  %v331 = vld [vmem:[%s2 + $0xf4] sm:$0xf]
  %v332 = vld [vmem:[%s2 + $0xf8] sm:$0xf]
  %v333 = vld [vmem:[%s2 + $0xfc] sm:$0xf]
  %v334 = vld [vmem:[%s2 + $0x100] sm:$0xf]
  %v335 = vld [vmem:[%s2 + $0x104] sm:$0xf]
  %v336 = vld [vmem:[%s2 + $0x108] sm:$0xf]
  %v337 = vld [vmem:[%s2 + $0x10c] sm:$0xf]
  %v338 = vld [vmem:[%s2 + $0x110] sm:$0xf]
  %v339 = vld [vmem:[%s2 + $0x114] sm:$0xf]
  %v340 = vld [vmem:[%s2 + $0x118] sm:$0xf]
  %v341 = vld [vmem:[%s2 + $0x11c] sm:$0xf]
  %v342 = vld [vmem:[%s2 + $0x120] sm:$0xf]
  %v343 = vld [vmem:[%s2 + $0x124] sm:$0xf]
  %v344 = vld [vmem:[%s2 + $0x128] sm:$0xf]
  %v345 = vld [vmem:[%s2 + $0x12c] sm:$0xf]
  %v346 = vld [vmem:[%s2 + $0x130] sm:$0xf]
  %v347 = vld [vmem:[%s2 + $0x134] sm:$0xf]
  %v348 = vld [vmem:[%s2 + $0x138] sm:$0xf]
  %v349 = vld [vmem:[%s2 + $0x13c] sm:$0xf]
  %v350 = vld [vmem:[%s2 + $0x140] sm:$0xf]
  %v351 = vld [vmem:[%s2 + $0x144] sm:$0xf]
  %v352 = vld [vmem:[%s2 + $0x148] sm:$0xf]
  %v353 = vld [vmem:[%s2 + $0x14c] sm:$0xf]
  %v354 = vld [vmem:[%s2 + $0x150] sm:$0xf]
  %v355 = vld [vmem:[%s2 + $0x154] sm:$0xf]
  %v356 = vld [vmem:[%s2 + $0x158] sm:$0xf]
  %v357 = vld [vmem:[%s2 + $0x15c] sm:$0xf]
  %v358 = vld [vmem:[%s2 + $0x160] sm:$0xf]
  %v359 = vld [vmem:[%s2 + $0x164] sm:$0xf]
  %v360 = vld [vmem:[%s2 + $0x168] sm:$0xf]
  %v361 = vld [vmem:[%s2 + $0x16c] sm:$0xf]
  %v362 = vld [vmem:[%s2 + $0x170] sm:$0xf]
  %v363 = vld [vmem:[%s2 + $0x174] sm:$0xf]
  %v364 = vld [vmem:[%s2 + $0x178] sm:$0xf]
  %v365 = vld [vmem:[%s2 + $0x17c] sm:$0xf]
  %v366 = vld [vmem:[%s2 + $0x180] sm:$0xf]
  %v367 = vld [vmem:[%s2 + $0x184] sm:$0xf]
  %v368 = vld [vmem:[%s2 + $0x188] sm:$0xf]
  %v369 = vld [vmem:[%s2 + $0x18c] sm:$0xf]
  %v370 = vld [vmem:[%s2 + $0x190] sm:$0xf]
  %v371 = vld [vmem:[%s2 + $0x194] sm:$0xf]
  %v372 = vld [vmem:[%s2 + $0x198] sm:$0xf]
  %v373 = vld [vmem:[%s2 + $0x19c] sm:$0xf]
  %v374 = vld [vmem:[%s2 + $0x1a0] sm:$0xf]
  %v375 = vld [vmem:[%s2 + $0x1a4] sm:$0xf]
  %v376 = vld [vmem:[%s2 + $0x1a8] sm:$0xf]
  %v377 = vld [vmem:[%s2 + $0x1ac] sm:$0xf]
  %v378 = vld [vmem:[%s2 + $0x1b0] sm:$0xf]
  %v379 = vld [vmem:[%s2 + $0x1b4] sm:$0xf]
  %v380 = vld [vmem:[%s2 + $0x1b8] sm:$0xf]
  %v381 = vld [vmem:[%s2 + $0x1bc] sm:$0xf]
  %v382 = vld [vmem:[%s2 + $0x1c0] sm:$0xf]
  %v383 = vld [vmem:[%s2 + $0x1c4] sm:$0xf]
  %v384 = vld [vmem:[%s2 + $0x1c8] sm:$0xf]
  %v385 = vld [vmem:[%s2 + $0x1cc] sm:$0xf]
  %v386 = vld [vmem:[%s2 + $0x1d0] sm:$0xf]
  %v387 = vld [vmem:[%s2 + $0x1d4] sm:$0xf]
  %v388 = vld [vmem:[%s2 + $0x1d8] sm:$0xf]
  %v389 = vld [vmem:[%s2 + $0x1dc] sm:$0xf]
  %v390 = vld [vmem:[%s2 + $0x1e0] sm:$0xf]
  %v391 = vld [vmem:[%s2 + $0x1e4] sm:$0xf]
  %v392 = vld [vmem:[%s2 + $0x1e8] sm:$0xf]
  %v393 = vld [vmem:[%s2 + $0x1ec] sm:$0xf]
  %v394 = vld [vmem:[%s2 + $0x1f0] sm:$0xf]
  %v395 = vld [vmem:[%s2 + $0x1f4] sm:$0xf]
  %v396 = vld [vmem:[%s2 + $0x1f8] sm:$0xf]
  %v397 = vld [vmem:[%s2 + $0x1fc] sm:$0xf]
  %v398 = vld [vmem:[%s2 + $0x200] sm:$0xf]
  %v399 = vld [vmem:[%s2 + $0x204] sm:$0xf]
  %v400 = vld [vmem:[%s2 + $0x208] sm:$0xf]
  %v401 = vld [vmem:[%s2 + $0x20c] sm:$0xf]
  %v402 = vld [vmem:[%s2 + $0x210] sm:$0xf]
  %v403 = vld [vmem:[%s2 + $0x214] sm:$0xf]
  %v404 = vld [vmem:[%s2 + $0x218] sm:$0xf]
  %v405 = vld [vmem:[%s2 + $0x21c] sm:$0xf]
  %v406 = vld [vmem:[%s2 + $0x220] sm:$0xf]
  %v407 = vld [vmem:[%s2 + $0x224] sm:$0xf]
  %v408 = vld [vmem:[%s2 + $0x228] sm:$0xf]
  %v409 = vld [vmem:[%s2 + $0x22c] sm:$0xf]
  %v410 = vld [vmem:[%s2 + $0x230] sm:$0xf]
  %v411 = vld [vmem:[%s2 + $0x234] sm:$0xf]
  %v412 = vld [vmem:[%s2 + $0x238] sm:$0xf]
  %v413 = vld [vmem:[%s2 + $0x23c] sm:$0xf]
  %v414 = vld [vmem:[%s2 + $0x240] sm:$0xf]
  %v415 = vld [vmem:[%s2 + $0x244] sm:$0xf]
  %v416 = vld [vmem:[%s2 + $0x248] sm:$0xf]
  %v417 = vld [vmem:[%s2 + $0x24c] sm:$0xf]
  %v418 = vld [vmem:[%s2 + $0x250] sm:$0xf]
  %v419 = vld [vmem:[%s2 + $0x254] sm:$0xf]
  %v420 = vld [vmem:[%s2 + $0x258] sm:$0xf]
  %v421 = vld [vmem:[%s2 + $0x25c] sm:$0xf]
  %v422 = vld [vmem:[%s2 + $0x260] sm:$0xf]
  %v423 = vld [vmem:[%s2 + $0x264] sm:$0xf]
  %v424 = vld [vmem:[%s2 + $0x268] sm:$0xf]
  %v425 = vld [vmem:[%s2 + $0x26c] sm:$0xf]
  %v426 = vld [vmem:[%s2 + $0x270] sm:$0xf]
  %v427 = vld [vmem:[%s2 + $0x274] sm:$0xf]
  %v428 = vld [vmem:[%s2 + $0x278] sm:$0xf]
  %v429 = vld [vmem:[%s2 + $0x27c] sm:$0xf]
  %v430 = vld [vmem:[%s2 + $0x280] sm:$0xf]
  %v431 = vld [vmem:[%s2 + $0x284] sm:$0xf]
  %v432 = vld [vmem:[%s2 + $0x288] sm:$0xf]
  %v433 = vld [vmem:[%s2 + $0x28c] sm:$0xf]
  %v434 = vld [vmem:[%s2 + $0x290] sm:$0xf]
  %v435 = vld [vmem:[%s2 + $0x294] sm:$0xf]
  %v436 = vld [vmem:[%s2 + $0x298] sm:$0xf]
  %v437 = vld [vmem:[%s2 + $0x29c] sm:$0xf]
  %v438 = vld [vmem:[%s2 + $0x2a0] sm:$0xf]
  %v439 = vld [vmem:[%s2 + $0x2a4] sm:$0xf]
  %v440 = vld [vmem:[%s2 + $0x2a8] sm:$0xf]
  %v441 = vld [vmem:[%s2 + $0x2ac] sm:$0xf]
  %v442 = vld [vmem:[%s2 + $0x2b0] sm:$0xf]
  %v443 = vld [vmem:[%s2 + $0x2b4] sm:$0xf]
  %v444 = vld [vmem:[%s2 + $0x2b8] sm:$0xf]
  %v445 = vld [vmem:[%s2 + $0x2bc] sm:$0xf]
  %v446 = vld [vmem:[%s2 + $0x2c0] sm:$0xf]
  %v447 = vld [vmem:[%s2 + $0x2c4] sm:$0xf]
  %v448 = vld [vmem:[%s2 + $0x2c8] sm:$0xf]
  %v449 = vld [vmem:[%s2 + $0x2cc] sm:$0xf]
  %v450 = vld [vmem:[%s2 + $0x2d0] sm:$0xf]
  %v451 = vld [vmem:[%s2 + $0x2d4] sm:$0xf]
  %v452 = vld [vmem:[%s2 + $0x2d8] sm:$0xf]
  %v453 = vld [vmem:[%s2 + $0x2dc] sm:$0xf]
  %v454 = vld [vmem:[%s2 + $0x2e0] sm:$0xf]
  %v455 = vld [vmem:[%s2 + $0x2e4] sm:$0xf]
  %v456 = vld [vmem:[%s2 + $0x2e8] sm:$0xf]
  %v457 = vld [vmem:[%s2 + $0x2ec] sm:$0xf]
  %v458 = vld [vmem:[%s2 + $0x2f0] sm:$0xf]
  %v459 = vld [vmem:[%s2 + $0x2f4] sm:$0xf]
  %v460 = vld [vmem:[%s2 + $0x2f8] sm:$0xf]
  %v461 = vld [vmem:[%s2 + $0x2fc] sm:$0xf]
  %v462 = vld [vmem:[%s2 + $0x300] sm:$0xf]
  %v463 = vld [vmem:[%s2 + $0x304] sm:$0xf]
  %v464 = vld [vmem:[%s2 + $0x308] sm:$0xf]
  %v465 = vld [vmem:[%s2 + $0x30c] sm:$0xf]
  %v466 = vld [vmem:[%s2 + $0x310] sm:$0xf]
  %v467 = vld [vmem:[%s2 + $0x314] sm:$0xf]
  %v468 = vld [vmem:[%s2 + $0x318] sm:$0xf]
  %v469 = vld [vmem:[%s2 + $0x31c] sm:$0xf]
  %v470 = vld [vmem:[%s2 + $0x320] sm:$0xf]
  %v471 = vld [vmem:[%s2 + $0x324] sm:$0xf]
  %v472 = vld [vmem:[%s2 + $0x328] sm:$0xf]
  %v473 = vld [vmem:[%s2 + $0x32c] sm:$0xf]
  %v474 = vld [vmem:[%s2 + $0x330] sm:$0xf]
  %v475 = vld [vmem:[%s2 + $0x334] sm:$0xf]
  %v476 = vld [vmem:[%s2 + $0x338] sm:$0xf]
  %v477 = vld [vmem:[%s2 + $0x33c] sm:$0xf]
  %v478 = vld [vmem:[%s2 + $0x340] sm:$0xf]
  %v479 = vld [vmem:[%s2 + $0x344] sm:$0xf]
  %v480 = vld [vmem:[%s2 + $0x348] sm:$0xf]
  %v481 = vld [vmem:[%s2 + $0x34c] sm:$0xf]
  %v482 = vld [vmem:[%s2 + $0x350] sm:$0xf]
  %v483 = vld [vmem:[%s2 + $0x354] sm:$0xf]
  %v484 = vld [vmem:[%s2 + $0x358] sm:$0xf]
  %v485 = vld [vmem:[%s2 + $0x35c] sm:$0xf]
  %v486 = vld [vmem:[%s2 + $0x360] sm:$0xf]
  %v487 = vld [vmem:[%s2 + $0x364] sm:$0xf]
  %v488 = vld [vmem:[%s2 + $0x368] sm:$0xf]
  %v489 = vld [vmem:[%s2 + $0x36c] sm:$0xf]
  %v490 = vld [vmem:[%s2 + $0x370] sm:$0xf]
  %v491 = vld [vmem:[%s2 + $0x374] sm:$0xf]
  %v492 = vld [vmem:[%s2 + $0x378] sm:$0xf]
  %v493 = vld [vmem:[%s2 + $0x37c] sm:$0xf]
  %v494 = vld [vmem:[%s2 + $0x380] sm:$0xf]
  %v495 = vld [vmem:[%s2 + $0x384] sm:$0xf]
  %v496 = vld [vmem:[%s2 + $0x388] sm:$0xf]
  %v497 = vld [vmem:[%s2 + $0x38c] sm:$0xf]
  %v498 = vld [vmem:[%s2 + $0x390] sm:$0xf]
  %v499 = vld [vmem:[%s2 + $0x394] sm:$0xf]
  %v500 = vld [vmem:[%s2 + $0x398] sm:$0xf]
  %v501 = vld [vmem:[%s2 + $0x39c] sm:$0xf]
  %v502 = vld [vmem:[%s2 + $0x3a0] sm:$0xf]
  %v503 = vld [vmem:[%s2 + $0x3a4] sm:$0xf]
  %v504 = vld [vmem:[%s2 + $0x3a8] sm:$0xf]
  %v505 = vld [vmem:[%s2 + $0x3ac] sm:$0xf]
  %v506 = vld [vmem:[%s2 + $0x3b0] sm:$0xf]
  %v507 = vld [vmem:[%s2 + $0x3b4] sm:$0xf]
  %v508 = vld [vmem:[%s2 + $0x3b8] sm:$0xf]
  %v509 = vld [vmem:[%s2 + $0x3bc] sm:$0xf]
  %v510 = vld [vmem:[%s2 + $0x3c0] sm:$0xf]
  %v511 = vld [vmem:[%s2 + $0x3c4] sm:$0xf]
  %v512 = vld [vmem:[%s2 + $0x3c8] sm:$0xf]
  %v513 = vld [vmem:[%s2 + $0x3cc] sm:$0xf]
  %v514 = vld [vmem:[%s2 + $0x3d0] sm:$0xf]
  %v515 = vld [vmem:[%s2 + $0x3d4] sm:$0xf]
  %v516 = vld [vmem:[%s2 + $0x3d8] sm:$0xf]
  %v517 = vld [vmem:[%s2 + $0x3dc] sm:$0xf]
  %v518 = vld [vmem:[%s2 + $0x3e0] sm:$0xf]
  %v519 = vld [vmem:[%s2 + $0x3e4] sm:$0xf]
  %v520 = vld [vmem:[%s2 + $0x3e8] sm:$0xf]
  %v521 = vld [vmem:[%s2 + $0x3ec] sm:$0xf]
  %v522 = vld [vmem:[%s2 + $0x3f0] sm:$0xf]
  %v523 = vld [vmem:[%s2 + $0x3f4] sm:$0xf]
  %v524 = vld [vmem:[%s2 + $0x3f8] sm:$0xf]
  %v525 = vld [vmem:[%s2 + $0x3fc] sm:$0xf]
  %v526 = vld [vmem:[%s2 + $0x400] sm:$0xf]
  %v527 = vld [vmem:[%s2 + $0x404] sm:$0xf]
  %v528 = vld [vmem:[%s2 + $0x408] sm:$0xf]
  %v529 = vld [vmem:[%s2 + $0x40c] sm:$0xf]
  %v530 = vld [vmem:[%s2 + $0x410] sm:$0xf]
  %v531 = vld [vmem:[%s2 + $0x414] sm:$0xf]
  %v532 = vld [vmem:[%s2 + $0x418] sm:$0xf]
  %v533 = vld [vmem:[%s2 + $0x41c] sm:$0xf]
  %v534 = vld [vmem:[%s2 + $0x420] sm:$0xf]
  %v535 = vld [vmem:[%s2 + $0x424] sm:$0xf]
  %v536 = vld [vmem:[%s2 + $0x428] sm:$0xf]
  %v537 = vld [vmem:[%s2 + $0x42c] sm:$0xf]
  %v538 = vld [vmem:[%s2 + $0x430] sm:$0xf]
  %v539 = vld [vmem:[%s2 + $0x434] sm:$0xf]
  %v540 = vld [vmem:[%s2 + $0x438] sm:$0xf]
  %v541 = vld [vmem:[%s2 + $0x43c] sm:$0xf]
  %v542 = vld [vmem:[%s2 + $0x440] sm:$0xf]
  %v543 = vld [vmem:[%s2 + $0x444] sm:$0xf]
  %v544 = vld [vmem:[%s2 + $0x448] sm:$0xf]
  %v545 = vld [vmem:[%s2 + $0x44c] sm:$0xf]
  %v546 = vld [vmem:[%s2 + $0x450] sm:$0xf]
  %v547 = vld [vmem:[%s2 + $0x454] sm:$0xf]
  %v548 = vld [vmem:[%s2 + $0x458] sm:$0xf]
  %v549 = vld [vmem:[%s2 + $0x45c] sm:$0xf]
  %v550 = vld [vmem:[%s2 + $0x460] sm:$0xf]
  %v551 = vld [vmem:[%s2 + $0x464] sm:$0xf]
  %v552 = vld [vmem:[%s2 + $0x468] sm:$0xf]
  %v553 = vld [vmem:[%s2 + $0x46c] sm:$0xf]
  %v554 = vld [vmem:[%s2 + $0x470] sm:$0xf]
  %v555 = vld [vmem:[%s2 + $0x474] sm:$0xf]
  %v556 = vld [vmem:[%s2 + $0x478] sm:$0xf]
  %v557 = vld [vmem:[%s2 + $0x47c] sm:$0xf]
  %v558 = vld [vmem:[%s2 + $0x480] sm:$0xf]
  %v559 = vld [vmem:[%s2 + $0x484] sm:$0xf]
  %v560 = vld [vmem:[%s2 + $0x488] sm:$0xf]
  %v561 = vld [vmem:[%s2 + $0x48c] sm:$0xf]
  %v562 = vld [vmem:[%s2 + $0x490] sm:$0xf]
  %v563 = vld [vmem:[%s2 + $0x494] sm:$0xf]
  %v564 = vld [vmem:[%s2 + $0x498] sm:$0xf]
  %v565 = vld [vmem:[%s2 + $0x49c] sm:$0xf]
  %v566 = vld [vmem:[%s2 + $0x4a0] sm:$0xf]
  %v567 = vld [vmem:[%s2 + $0x4a4] sm:$0xf]
  %v568 = vld [vmem:[%s2 + $0x4a8] sm:$0xf]
  %v569 = vld [vmem:[%s2 + $0x4ac] sm:$0xf]
  %v570 = vld [vmem:[%s2 + $0x4b0] sm:$0xf]
  %v571 = vld [vmem:[%s2 + $0x4b4] sm:$0xf]
  %v572 = vld [vmem:[%s2 + $0x4b8] sm:$0xf]
  %v573 = vld [vmem:[%s2 + $0x4bc] sm:$0xf]
  %v574 = vld [vmem:[%s2 + $0x4c0] sm:$0xf]
  %v575 = vld [vmem:[%s2 + $0x4c4] sm:$0xf]
  %v576 = vld [vmem:[%s2 + $0x4c8] sm:$0xf]
  %v577 = vld [vmem:[%s2 + $0x4cc] sm:$0xf]
  %v578 = vld [vmem:[%s2 + $0x4d0] sm:$0xf]
  %v579 = vld [vmem:[%s2 + $0x4d4] sm:$0xf]
  %v580 = vld [vmem:[%s2 + $0x4d8] sm:$0xf]
  %v581 = vld [vmem:[%s2 + $0x4dc] sm:$0xf]
  %v582 = vld [vmem:[%s2 + $0x4e0] sm:$0xf]
  %v583 = vld [vmem:[%s2 + $0x4e4] sm:$0xf]
  %v584 = vld [vmem:[%s2 + $0x4e8] sm:$0xf]
  %v585 = vld [vmem:[%s2 + $0x4ec] sm:$0xf]
  %v586 = vld [vmem:[%s2 + $0x4f0] sm:$0xf]
  %v587 = vld [vmem:[%s2 + $0x4f4] sm:$0xf]
  %v588 = vld [vmem:[%s2 + $0x4f8] sm:$0xf]
  %v589 = vld [vmem:[%s2 + $0x4fc] sm:$0xf]
  %v590 = vld [vmem:[%s2 + $0x500] sm:$0xf]
  %v591 = vld [vmem:[%s2 + $0x504] sm:$0xf]
  %v592 = vld [vmem:[%s2 + $0x508] sm:$0xf]
  %v593 = vld [vmem:[%s2 + $0x50c] sm:$0xf]
  %v594 = vld [vmem:[%s2 + $0x510] sm:$0xf]
  %v595 = vld [vmem:[%s2 + $0x514] sm:$0xf]
  %v596 = vld [vmem:[%s2 + $0x518] sm:$0xf]
  %v597 = vld [vmem:[%s2 + $0x51c] sm:$0xf]
  %v598 = vld [vmem:[%s2 + $0x520] sm:$0xf]
  %v599 = vld [vmem:[%s2 + $0x524] sm:$0xf]
  %v600 = vld [vmem:[%s2 + $0x528] sm:$0xf]
  %v601 = vld [vmem:[%s2 + $0x52c] sm:$0xf]
  %v602 = vld [vmem:[%s2 + $0x530] sm:$0xf]
  %v603 = vld [vmem:[%s2 + $0x534] sm:$0xf]
  %v604 = vld [vmem:[%s2 + $0x538] sm:$0xf]
  %v605 = vld [vmem:[%s2 + $0x53c] sm:$0xf]
  %v606 = vld [vmem:[%s2 + $0x540] sm:$0xf]
  %v607 = vld [vmem:[%s2 + $0x544] sm:$0xf]
  %v608 = vld [vmem:[%s2 + $0x548] sm:$0xf]
  %v609 = vld [vmem:[%s2 + $0x54c] sm:$0xf]
  %v610 = vld [vmem:[%s2 + $0x550] sm:$0xf]
  %v611 = vld [vmem:[%s2 + $0x554] sm:$0xf]
  %v612 = vld [vmem:[%s2 + $0x558] sm:$0xf]
  %v613 = vld [vmem:[%s2 + $0x55c] sm:$0xf]
  %v614 = vld [vmem:[%s2 + $0x560] sm:$0xf]
  %v615 = vld [vmem:[%s2 + $0x564] sm:$0xf]
  %v616 = vld [vmem:[%s2 + $0x568] sm:$0xf]
  %v617 = vld [vmem:[%s2 + $0x56c] sm:$0xf]
  %v618 = vld [vmem:[%s2 + $0x570] sm:$0xf]
  %v619 = vld [vmem:[%s2 + $0x574] sm:$0xf]
  %v620 = vld [vmem:[%s2 + $0x578] sm:$0xf]
  %v621 = vld [vmem:[%s2 + $0x57c] sm:$0xf]
  %v622 = vld [vmem:[%s2 + $0x580] sm:$0xf]
  %v623 = vld [vmem:[%s2 + $0x584] sm:$0xf]
  %v624 = vld [vmem:[%s2 + $0x588] sm:$0xf]
  %v625 = vld [vmem:[%s2 + $0x58c] sm:$0xf]
  %v626 = vld [vmem:[%s2 + $0x590] sm:$0xf]
  %v627 = vld [vmem:[%s2 + $0x594] sm:$0xf]
  %v628 = vld [vmem:[%s2 + $0x598] sm:$0xf]
  %v629 = vld [vmem:[%s2 + $0x59c] sm:$0xf]
  %v630 = vld [vmem:[%s2 + $0x5a0] sm:$0xf]
  %v631 = vld [vmem:[%s2 + $0x5a4] sm:$0xf]
  %v632 = vld [vmem:[%s2 + $0x5a8] sm:$0xf]
  %v633 = vld [vmem:[%s2 + $0x5ac] sm:$0xf]
  %v634 = vld [vmem:[%s2 + $0x5b0] sm:$0xf]
  %v635 = vld [vmem:[%s2 + $0x5b4] sm:$0xf]
  %v636 = vld [vmem:[%s2 + $0x5b8] sm:$0xf]
  %v637 = vld [vmem:[%s2 + $0x5bc] sm:$0xf]
  %v638 = vld [vmem:[%s2 + $0x5c0] sm:$0xf]
  %v639 = vld [vmem:[%s2 + $0x5c4] sm:$0xf]
  %v640 = vld [vmem:[%s2 + $0x5c8] sm:$0xf]
  %v641 = vld [vmem:[%s2 + $0x5cc] sm:$0xf]
  %v642 = vld [vmem:[%s2 + $0x5d0] sm:$0xf]
  %v643 = vld [vmem:[%s2 + $0x5d4] sm:$0xf]
  %v644 = vld [vmem:[%s2 + $0x5d8] sm:$0xf]
  %v645 = vld [vmem:[%s2 + $0x5dc] sm:$0xf]
  %v646 = vld [vmem:[%s2 + $0x5e0] sm:$0xf]
  %v647 = vld [vmem:[%s2 + $0x5e4] sm:$0xf]
  %v648 = vld [vmem:[%s2 + $0x5e8] sm:$0xf]
  %v649 = vld [vmem:[%s2 + $0x5ec] sm:$0xf]
  %v650 = vld [vmem:[%s2 + $0x5f0] sm:$0xf]
  %v651 = vld [vmem:[%s2 + $0x5f4] sm:$0xf]
  %v652 = vld [vmem:[%s2 + $0x5f8] sm:$0xf]
  %v653 = vld [vmem:[%s2 + $0x5fc] sm:$0xf]
  %v654 = vld [vmem:[%s2 + $0x600] sm:$0xf]
  %v655 = vld [vmem:[%s2 + $0x604] sm:$0xf]
  %v656 = vld [vmem:[%s2 + $0x608] sm:$0xf]
  %v657 = vld [vmem:[%s2 + $0x60c] sm:$0xf]
  %v658 = vld [vmem:[%s2 + $0x610] sm:$0xf]
  %v659 = vld [vmem:[%s2 + $0x614] sm:$0xf]
  %v660 = vld [vmem:[%s2 + $0x618] sm:$0xf]
  %v661 = vld [vmem:[%s2 + $0x61c] sm:$0xf]
  %v662 = vld [vmem:[%s2 + $0x620] sm:$0xf]
  %v663 = vld [vmem:[%s2 + $0x624] sm:$0xf]
  %v664 = vld [vmem:[%s2 + $0x628] sm:$0xf]
  %v665 = vld [vmem:[%s2 + $0x62c] sm:$0xf]
  %v666 = vld [vmem:[%s2 + $0x630] sm:$0xf]
  %v667 = vld [vmem:[%s2 + $0x634] sm:$0xf]
  %v668 = vld [vmem:[%s2 + $0x638] sm:$0xf]
  %v669 = vld [vmem:[%s2 + $0x63c] sm:$0xf]
  %v670 = vld [vmem:[%s2 + $0x640] sm:$0xf]
  %v671 = vld [vmem:[%s2 + $0x644] sm:$0xf]
  %v672 = vld [vmem:[%s2 + $0x648] sm:$0xf]
  %v673 = vld [vmem:[%s2 + $0x64c] sm:$0xf]
  %v674 = vld [vmem:[%s2 + $0x650] sm:$0xf]
  %v675 = vld [vmem:[%s2 + $0x654] sm:$0xf]
  %v676 = vld [vmem:[%s2 + $0x658] sm:$0xf]
  %v677 = vld [vmem:[%s2 + $0x65c] sm:$0xf]
  %v678 = vld [vmem:[%s2 + $0x660] sm:$0xf]
  %v679 = vld [vmem:[%s2 + $0x664] sm:$0xf]
  %v680 = vld [vmem:[%s2 + $0x668] sm:$0xf]
  %v681 = vld [vmem:[%s2 + $0x66c] sm:$0xf]
  %v682 = vld [vmem:[%s2 + $0x670] sm:$0xf]
  %v683 = vld [vmem:[%s2 + $0x674] sm:$0xf]
  %v684 = vld [vmem:[%s2 + $0x678] sm:$0xf]
  %v685 = vld [vmem:[%s2 + $0x67c] sm:$0xf]
  %v686 = vld [vmem:[%s2 + $0x680] sm:$0xf]
  %v687 = vld [vmem:[%s2 + $0x684] sm:$0xf]
  %v688 = vld [vmem:[%s2 + $0x688] sm:$0xf]
  %v689 = vld [vmem:[%s2 + $0x68c] sm:$0xf]
  %v690 = vld [vmem:[%s2 + $0x690] sm:$0xf]
  %v691 = vld [vmem:[%s2 + $0x694] sm:$0xf]
  %v692 = vld [vmem:[%s2 + $0x698] sm:$0xf]
  %v693 = vld [vmem:[%s2 + $0x69c] sm:$0xf]
  %v694 = vld [vmem:[%s2 + $0x6a0] sm:$0xf]
  %v695 = vld [vmem:[%s2 + $0x6a4] sm:$0xf]
  %v696 = vld [vmem:[%s2 + $0x6a8] sm:$0xf]
  %v697 = vld [vmem:[%s2 + $0x6ac] sm:$0xf]
  %v698 = vld [vmem:[%s2 + $0x6b0] sm:$0xf]
  %v699 = vld [vmem:[%s2 + $0x6b4] sm:$0xf]
  %v700 = vld [vmem:[%s2 + $0x6b8] sm:$0xf]
  %v701 = vld [vmem:[%s2 + $0x6bc] sm:$0xf]
  %v702 = vld [vmem:[%s2 + $0x6c0] sm:$0xf]
  %v703 = vld [vmem:[%s2 + $0x6c4] sm:$0xf]
  %v704 = vld [vmem:[%s2 + $0x6c8] sm:$0xf]
  %v705 = vld [vmem:[%s2 + $0x6cc] sm:$0xf]
  %v706 = vld [vmem:[%s2 + $0x6d0] sm:$0xf]
  %v707 = vld [vmem:[%s2 + $0x6d4] sm:$0xf]
  %v708 = vld [vmem:[%s2 + $0x6d8] sm:$0xf]
  %v709 = vld [vmem:[%s2 + $0x6dc] sm:$0xf]
  %v710 = vld [vmem:[%s2 + $0x6e0] sm:$0xf]
  %v711 = vld [vmem:[%s2 + $0x6e4] sm:$0xf]
  %v712 = vld [vmem:[%s2 + $0x6e8] sm:$0xf]
  %v713 = vld [vmem:[%s2 + $0x6ec] sm:$0xf]
  %v714 = vld [vmem:[%s2 + $0x6f0] sm:$0xf]
  %v715 = vld [vmem:[%s2 + $0x6f4] sm:$0xf]
  %v716 = vld [vmem:[%s2 + $0x6f8] sm:$0xf]
  %v717 = vld [vmem:[%s2 + $0x6fc] sm:$0xf]
  %v718 = vld [vmem:[%s0] sm:$0xff]
  %v719 = vld [vmem:[%s0 + $0x8] sm:$0xff]
  %v720 = vld [vmem:[%s0 + $0x10] sm:$0xff]
  %v721 = vld [vmem:[%s0 + $0x18] sm:$0xff]
  %v722 = vld [vmem:[%s0 + $0x20] sm:$0xff]
  %v723 = vpack.c.bf16 %v718, %v718
  %v724 = vpack.c.bf16 %v719, %v719
  %v885 = vunpack.c.l.b16 %v30
  %v886 = vunpack.c.h.b16 %v30
  %v887 = vunpack.c.l.b16 %v31
  %v888 = vunpack.c.h.b16 %v31
  %v889 = vunpack.c.l.b16 %v32
  %v890 = vunpack.c.h.b16 %v32
  %v891 = vunpack.c.l.b16 %v33
  %v892 = vunpack.c.h.b16 %v33
  %v893 = vunpack.c.l.b16 %v34
  %v894 = vunpack.c.h.b16 %v34
  %v895 = vunpack.c.l.b16 %v35
  %v896 = vunpack.c.h.b16 %v35
  %v897 = vunpack.c.l.b16 %v36
  %v898 = vunpack.c.h.b16 %v36
  %v899 = vunpack.c.l.b16 %v37
  %v900 = vunpack.c.h.b16 %v37
  %v901 = vunpack.c.l.b16 %v38
  %v902 = vunpack.c.h.b16 %v38
  %v903 = vunpack.c.l.b16 %v39
  %v904 = vunpack.c.h.b16 %v39
  %v905 = vunpack.c.l.b16 %v40
  %v906 = vunpack.c.h.b16 %v40
  %v907 = vunpack.c.l.b16 %v41
  %v908 = vunpack.c.h.b16 %v41
  %v909 = vunpack.c.l.b16 %v42
  %v910 = vunpack.c.h.b16 %v42
  %v911 = vunpack.c.l.b16 %v43
  %v912 = vunpack.c.h.b16 %v43
  %v913 = vunpack.c.l.b16 %v44
  %v914 = vunpack.c.h.b16 %v44
  %v915 = vunpack.c.l.b16 %v45
  %v916 = vunpack.c.h.b16 %v45
  %v917 = vunpack.c.l.b16 %v46
  %v918 = vunpack.c.h.b16 %v46
  %v919 = vunpack.c.l.b16 %v47
  %v920 = vunpack.c.h.b16 %v47
  %v921 = vunpack.c.l.b16 %v48
  %v922 = vunpack.c.h.b16 %v48
  %v923 = vunpack.c.l.b16 %v49
  %v924 = vunpack.c.h.b16 %v49
  %v925 = vunpack.c.l.b16 %v50
  %v926 = vunpack.c.h.b16 %v50
  %v927 = vunpack.c.l.b16 %v51
  %v928 = vunpack.c.h.b16 %v51
  %v929 = vunpack.c.l.b16 %v52
  %v930 = vunpack.c.h.b16 %v52
  %v931 = vunpack.c.l.b16 %v53
  %v932 = vunpack.c.h.b16 %v53
  %v933 = vunpack.c.l.b16 %v54
  %v934 = vunpack.c.h.b16 %v54
  %v935 = vunpack.c.l.b16 %v55
  %v936 = vunpack.c.h.b16 %v55
  %v937 = vunpack.c.l.b16 %v56
  %v938 = vunpack.c.h.b16 %v56
  %v939 = vunpack.c.l.b16 %v57
  %v940 = vunpack.c.h.b16 %v57
  %v941 = vunpack.c.l.b16 %v58
  %v942 = vunpack.c.h.b16 %v58
  %v943 = vunpack.c.l.b16 %v59
  %v944 = vunpack.c.h.b16 %v59
  %v945 = vunpack.c.l.b16 %v60
  %v946 = vunpack.c.h.b16 %v60
  %v947 = vunpack.c.l.b16 %v61
  %v948 = vunpack.c.h.b16 %v61
  %v949 = vunpack.c.l.b16 %v62
  %v950 = vunpack.c.h.b16 %v62
  %v951 = vunpack.c.l.b16 %v63
  %v952 = vunpack.c.h.b16 %v63
  %v953 = vunpack.c.l.b16 %v64
  %v954 = vunpack.c.h.b16 %v64
  %v955 = vunpack.c.l.b16 %v65
  %v956 = vunpack.c.h.b16 %v65
  %v957 = vunpack.c.l.b16 %v66
  %v958 = vunpack.c.h.b16 %v66
  %v959 = vunpack.c.l.b16 %v67
  %v960 = vunpack.c.h.b16 %v67
  %v961 = vunpack.c.l.b16 %v68
  %v962 = vunpack.c.h.b16 %v68
  %v963 = vunpack.c.l.b16 %v69
  %v964 = vunpack.c.h.b16 %v69
  %v965 = vunpack.c.l.b16 %v70
  %v966 = vunpack.c.h.b16 %v70
  %v967 = vunpack.c.l.b16 %v71
  %v968 = vunpack.c.h.b16 %v71
  %v969 = vunpack.c.l.b16 %v72
  %v970 = vunpack.c.h.b16 %v72
  %v971 = vunpack.c.l.b16 %v73
  %v972 = vunpack.c.h.b16 %v73
  %v973 = vunpack.c.l.b16 %v74
  %v974 = vunpack.c.h.b16 %v74
  %v975 = vunpack.c.l.b16 %v75
  %v976 = vunpack.c.h.b16 %v75
  %v977 = vunpack.c.l.b16 %v76
  %v978 = vunpack.c.h.b16 %v76
  %v979 = vunpack.c.l.b16 %v77
  %v980 = vunpack.c.h.b16 %v77
  %v981 = vunpack.c.l.b16 %v78
  %v982 = vunpack.c.h.b16 %v78
  %v983 = vunpack.c.l.b16 %v79
  %v984 = vunpack.c.h.b16 %v79
  %v985 = vunpack.c.l.b16 %v80
  %v986 = vunpack.c.h.b16 %v80
  %v987 = vunpack.c.l.b16 %v81
  %v988 = vunpack.c.h.b16 %v81
  %v989 = vunpack.c.l.b16 %v82
  %v990 = vunpack.c.h.b16 %v82
  %v991 = vunpack.c.l.b16 %v83
  %v992 = vunpack.c.h.b16 %v83
  %v993 = vunpack.c.l.b16 %v84
  %v994 = vunpack.c.h.b16 %v84
  %v995 = vunpack.c.l.b16 %v85
  %v996 = vunpack.c.h.b16 %v85
  %v997 = vunpack.c.l.b16 %v86
  %v998 = vunpack.c.h.b16 %v86
  %v999 = vunpack.c.l.b16 %v87
  %v1000 = vunpack.c.h.b16 %v87
  %v1001 = vunpack.c.l.b16 %v88
  %v1002 = vunpack.c.h.b16 %v88
  %v1003 = vunpack.c.l.b16 %v89
  %v1004 = vunpack.c.h.b16 %v89
  %v1005 = vunpack.c.l.b16 %v90
  %v1006 = vunpack.c.h.b16 %v90
  %v1007 = vunpack.c.l.b16 %v91
  %v1008 = vunpack.c.h.b16 %v91
  %v1009 = vunpack.c.l.b16 %v92
  %v1010 = vunpack.c.h.b16 %v92
  %v1011 = vunpack.c.l.b16 %v93
  %v1012 = vunpack.c.h.b16 %v93
  %v1013 = vunpack.c.l.b16 %v94
  %v1014 = vunpack.c.h.b16 %v94
  %v1015 = vunpack.c.l.b16 %v95
  %v1016 = vunpack.c.h.b16 %v95
  %v1017 = vunpack.c.l.b16 %v96
  %v1018 = vunpack.c.h.b16 %v96
  %v1019 = vunpack.c.l.b16 %v97
  %v1020 = vunpack.c.h.b16 %v97
  %v1021 = vunpack.c.l.b16 %v98
  %v1022 = vunpack.c.h.b16 %v98
  %v1023 = vunpack.c.l.b16 %v99
  %v1024 = vunpack.c.h.b16 %v99
  %v1025 = vunpack.c.l.b16 %v100
  %v1026 = vunpack.c.h.b16 %v100
  %v1027 = vunpack.c.l.b16 %v101
  %v1028 = vunpack.c.h.b16 %v101
  %v1029 = vunpack.c.l.b16 %v102
  %v1030 = vunpack.c.h.b16 %v102
  %v1031 = vunpack.c.l.b16 %v103
  %v1032 = vunpack.c.h.b16 %v103
  %v1033 = vunpack.c.l.b16 %v104
  %v1034 = vunpack.c.h.b16 %v104
  %v1035 = vunpack.c.l.b16 %v105
  %v1036 = vunpack.c.h.b16 %v105
  %v1037 = vunpack.c.l.b16 %v106
  %v1038 = vunpack.c.h.b16 %v106
  %v1039 = vunpack.c.l.b16 %v107
  %v1040 = vunpack.c.h.b16 %v107
  %v1041 = vunpack.c.l.b16 %v108
  %v1042 = vunpack.c.h.b16 %v108
  %v1043 = vunpack.c.l.b16 %v109
  %v1044 = vunpack.c.h.b16 %v109
  %v1045 = vunpack.c.l.b16 %v110
  %v1046 = vunpack.c.h.b16 %v110
  %v1047 = vunpack.c.l.b16 %v111
  %v1048 = vunpack.c.h.b16 %v111
  %v1049 = vunpack.c.l.b16 %v112
  %v1050 = vunpack.c.h.b16 %v112
  %v1051 = vunpack.c.l.b16 %v113
  %v1052 = vunpack.c.h.b16 %v113
  %v1053 = vunpack.c.l.b16 %v114
  %v1054 = vunpack.c.h.b16 %v114
  %v1055 = vunpack.c.l.b16 %v115
  %v1056 = vunpack.c.h.b16 %v115
  %v1057 = vunpack.c.l.b16 %v116
  %v1058 = vunpack.c.h.b16 %v116
  %v1059 = vunpack.c.l.b16 %v117
  %v1060 = vunpack.c.h.b16 %v117
  %v1061 = vunpack.c.l.b16 %v118
  %v1062 = vunpack.c.h.b16 %v118
  %v1063 = vunpack.c.l.b16 %v119
  %v1064 = vunpack.c.h.b16 %v119
  %v1065 = vunpack.c.l.b16 %v120
  %v1066 = vunpack.c.h.b16 %v120
  %v1067 = vunpack.c.l.b16 %v121
  %v1068 = vunpack.c.h.b16 %v121
  %v1069 = vunpack.c.l.b16 %v122
  %v1070 = vunpack.c.h.b16 %v122
  %v1071 = vunpack.c.l.b16 %v123
  %v1072 = vunpack.c.h.b16 %v123
  %v1073 = vunpack.c.l.b16 %v124
  %v1074 = vunpack.c.h.b16 %v124
  %v1075 = vunpack.c.l.b16 %v125
  %v1076 = vunpack.c.h.b16 %v125
  %v1077 = vunpack.c.l.b16 %v126
  %v1078 = vunpack.c.h.b16 %v126
  %v1079 = vunpack.c.l.b16 %v127
  %v1080 = vunpack.c.h.b16 %v127
  %v1081 = vunpack.c.l.b16 %v128
  %v1082 = vunpack.c.h.b16 %v128
  %v1083 = vunpack.c.l.b16 %v129
  %v1084 = vunpack.c.h.b16 %v129
  %v1085 = vunpack.c.l.b16 %v130
  %v1086 = vunpack.c.h.b16 %v130
  %v1087 = vunpack.c.l.b16 %v131
  %v1088 = vunpack.c.h.b16 %v131
  %v1089 = vunpack.c.l.b16 %v132
  %v1090 = vunpack.c.h.b16 %v132
  %v1091 = vunpack.c.l.b16 %v133
  %v1092 = vunpack.c.h.b16 %v133
  %v1093 = vunpack.c.l.b16 %v134
  %v1094 = vunpack.c.h.b16 %v134
  %v1095 = vunpack.c.l.b16 %v135
  %v1096 = vunpack.c.h.b16 %v135
  %v1097 = vunpack.c.l.b16 %v136
  %v1098 = vunpack.c.h.b16 %v136
  %v1099 = vunpack.c.l.b16 %v137
  %v1100 = vunpack.c.h.b16 %v137
  %v1101 = vunpack.c.l.b16 %v138
  %v1102 = vunpack.c.h.b16 %v138
  %v1103 = vunpack.c.l.b16 %v139
  %v1104 = vunpack.c.h.b16 %v139
  %v1105 = vunpack.c.l.b16 %v140
  %v1106 = vunpack.c.h.b16 %v140
  %v1107 = vunpack.c.l.b16 %v141
  %v1108 = vunpack.c.h.b16 %v141
  %v1109 = vunpack.c.l.b16 %v142
  %v1110 = vunpack.c.h.b16 %v142
  %v1111 = vunpack.c.l.b16 %v143
  %v1112 = vunpack.c.h.b16 %v143
  %v1113 = vunpack.c.l.b16 %v144
  %v1114 = vunpack.c.h.b16 %v144
  %v1115 = vunpack.c.l.b16 %v145
  %v1116 = vunpack.c.h.b16 %v145
  %v1117 = vunpack.c.l.b16 %v146
  %v1118 = vunpack.c.h.b16 %v146
  %v1119 = vunpack.c.l.b16 %v147
  %v1120 = vunpack.c.h.b16 %v147
  %v1121 = vunpack.c.l.b16 %v148
  %v1122 = vunpack.c.h.b16 %v148
  %v1123 = vunpack.c.l.b16 %v149
  %v1124 = vunpack.c.h.b16 %v149
  %v1125 = vunpack.c.l.b16 %v150
  %v1126 = vunpack.c.h.b16 %v150
  %v1127 = vunpack.c.l.b16 %v151
  %v1128 = vunpack.c.h.b16 %v151
  %v1129 = vunpack.c.l.b16 %v152
  %v1130 = vunpack.c.h.b16 %v152
  %v1131 = vunpack.c.l.b16 %v153
  %v1132 = vunpack.c.h.b16 %v153
  %v1133 = vunpack.c.l.b16 %v154
  %v1134 = vunpack.c.h.b16 %v154
  %v1135 = vunpack.c.l.b16 %v155
  %v1136 = vunpack.c.h.b16 %v155
  %v1137 = vunpack.c.l.b16 %v156
  %v1138 = vunpack.c.h.b16 %v156
  %v1139 = vunpack.c.l.b16 %v157
  %v1140 = vunpack.c.h.b16 %v157
  %v1141 = vunpack.c.l.b16 %v158
  %v1142 = vunpack.c.h.b16 %v158
  %v1143 = vunpack.c.l.b16 %v159
  %v1144 = vunpack.c.h.b16 %v159
  %v1145 = vunpack.c.l.b16 %v160
  %v1146 = vunpack.c.h.b16 %v160
  %v1147 = vunpack.c.l.b16 %v161
  %v1148 = vunpack.c.h.b16 %v161
  %v1149 = vunpack.c.l.b16 %v162
  %v1150 = vunpack.c.h.b16 %v162
  %v1151 = vunpack.c.l.b16 %v163
  %v1152 = vunpack.c.h.b16 %v163
  %v1153 = vunpack.c.l.b16 %v164
  %v1154 = vunpack.c.h.b16 %v164
  %v1155 = vunpack.c.l.b16 %v165
  %v1156 = vunpack.c.h.b16 %v165
  %v1157 = vunpack.c.l.b16 %v166
  %v1158 = vunpack.c.h.b16 %v166
  %v1159 = vunpack.c.l.b16 %v167
  %v1160 = vunpack.c.h.b16 %v167
  %v1161 = vunpack.c.l.b16 %v168
  %v1162 = vunpack.c.h.b16 %v168
  %v1163 = vunpack.c.l.b16 %v169
  %v1164 = vunpack.c.h.b16 %v169
  %v1165 = vunpack.c.l.b16 %v170
  %v1166 = vunpack.c.h.b16 %v170
  %v1167 = vunpack.c.l.b16 %v171
  %v1168 = vunpack.c.h.b16 %v171
  %v1169 = vunpack.c.l.b16 %v172
  %v1170 = vunpack.c.h.b16 %v172
  %v1171 = vunpack.c.l.b16 %v173
  %v1172 = vunpack.c.h.b16 %v173
  %v1173 = vunpack.c.l.b16 %v174
  %v1174 = vunpack.c.h.b16 %v174
  %v1175 = vunpack.c.l.b16 %v175
  %v1176 = vunpack.c.h.b16 %v175
  %v1177 = vunpack.c.l.b16 %v176
  %v1178 = vunpack.c.h.b16 %v176
  %v1179 = vunpack.c.l.b16 %v177
  %v1180 = vunpack.c.h.b16 %v177
  %v1181 = vunpack.c.l.b16 %v178
  %v1182 = vunpack.c.h.b16 %v178
  %v1183 = vunpack.c.l.b16 %v179
  %v1184 = vunpack.c.h.b16 %v179
  %v1185 = vunpack.c.l.b16 %v180
  %v1186 = vunpack.c.h.b16 %v180
  %v1187 = vunpack.c.l.b16 %v181
  %v1188 = vunpack.c.h.b16 %v181
  %v1189 = vunpack.c.l.b16 %v182
  %v1190 = vunpack.c.h.b16 %v182
  %v1191 = vunpack.c.l.b16 %v183
  %v1192 = vunpack.c.h.b16 %v183
  %v1193 = vunpack.c.l.b16 %v184
  %v1194 = vunpack.c.h.b16 %v184
  %v1195 = vunpack.c.l.b16 %v185
  %v1196 = vunpack.c.h.b16 %v185
  %v1197 = vunpack.c.l.b16 %v186
  %v1198 = vunpack.c.h.b16 %v186
  %v1199 = vunpack.c.l.b16 %v187
  %v1200 = vunpack.c.h.b16 %v187
  %v1201 = vunpack.c.l.b16 %v188
  %v1202 = vunpack.c.h.b16 %v188
  %v1203 = vunpack.c.l.b16 %v189
  %v1204 = vunpack.c.h.b16 %v189
  %v1205 = vpack.c.b16 %v895, %v885
  %v1206 = vpack.c.b16 %v896, %v886
  %v1207 = vpack.c.b16 %v897, %v887
  %v1208 = vpack.c.b16 %v898, %v888
  %v1209 = vpack.c.b16 %v899, %v889
  %v1210 = vpack.c.b16 %v900, %v890
  %v1211 = vpack.c.b16 %v901, %v891
  %v1212 = vpack.c.b16 %v902, %v892
  %v1213 = vpack.c.b16 %v903, %v893
  %v1214 = vpack.c.b16 %v904, %v894
  %v1215 = vpack.c.b16 %v915, %v905
  %v1216 = vpack.c.b16 %v916, %v906
  %v1217 = vpack.c.b16 %v917, %v907
  %v1218 = vpack.c.b16 %v918, %v908
  %v1219 = vpack.c.b16 %v919, %v909
  %v1220 = vpack.c.b16 %v920, %v910
  %v1221 = vpack.c.b16 %v921, %v911
  %v1222 = vpack.c.b16 %v922, %v912
  %v1223 = vpack.c.b16 %v923, %v913
  %v1224 = vpack.c.b16 %v924, %v914
  %v1225 = vpack.c.b16 %v935, %v925
  %v1226 = vpack.c.b16 %v936, %v926
  %v1227 = vpack.c.b16 %v937, %v927
  %v1228 = vpack.c.b16 %v938, %v928
  %v1229 = vpack.c.b16 %v939, %v929
  %v1230 = vpack.c.b16 %v940, %v930
  %v1231 = vpack.c.b16 %v941, %v931
  %v1232 = vpack.c.b16 %v942, %v932
  %v1233 = vpack.c.b16 %v943, %v933
  %v1234 = vpack.c.b16 %v944, %v934
  %v1235 = vpack.c.b16 %v955, %v945
  %v1236 = vpack.c.b16 %v956, %v946
  %v1237 = vpack.c.b16 %v957, %v947
  %v1238 = vpack.c.b16 %v958, %v948
  %v1239 = vpack.c.b16 %v959, %v949
  %v1240 = vpack.c.b16 %v960, %v950
  %v1241 = vpack.c.b16 %v961, %v951
  %v1242 = vpack.c.b16 %v962, %v952
  %v1243 = vpack.c.b16 %v963, %v953
  %v1244 = vpack.c.b16 %v964, %v954
  %v1245 = vpack.c.b16 %v975, %v965
  %v1246 = vpack.c.b16 %v976, %v966
  %v1247 = vpack.c.b16 %v977, %v967
  %v1248 = vpack.c.b16 %v978, %v968
  %v1249 = vpack.c.b16 %v979, %v969
  %v1250 = vpack.c.b16 %v980, %v970
  %v1251 = vpack.c.b16 %v981, %v971
  %v1252 = vpack.c.b16 %v982, %v972
  %v1253 = vpack.c.b16 %v983, %v973
  %v1254 = vpack.c.b16 %v984, %v974
  %v1255 = vpack.c.b16 %v995, %v985
  %v1256 = vpack.c.b16 %v996, %v986
  %v1257 = vpack.c.b16 %v997, %v987
  %v1258 = vpack.c.b16 %v998, %v988
  %v1259 = vpack.c.b16 %v999, %v989
  %v1260 = vpack.c.b16 %v1000, %v990
  %v1261 = vpack.c.b16 %v1001, %v991
  %v1262 = vpack.c.b16 %v1002, %v992
  %v1263 = vpack.c.b16 %v1003, %v993
  %v1264 = vpack.c.b16 %v1004, %v994
  %v1265 = vpack.c.b16 %v1015, %v1005
  %v1266 = vpack.c.b16 %v1016, %v1006
  %v1267 = vpack.c.b16 %v1017, %v1007
  %v1268 = vpack.c.b16 %v1018, %v1008
  %v1269 = vpack.c.b16 %v1019, %v1009
  %v1270 = vpack.c.b16 %v1020, %v1010
  %v1271 = vpack.c.b16 %v1021, %v1011
  %v1272 = vpack.c.b16 %v1022, %v1012
  %v1273 = vpack.c.b16 %v1023, %v1013
  %v1274 = vpack.c.b16 %v1024, %v1014
  %v1275 = vpack.c.b16 %v1035, %v1025
  %v1276 = vpack.c.b16 %v1036, %v1026
  %v1277 = vpack.c.b16 %v1037, %v1027
  %v1278 = vpack.c.b16 %v1038, %v1028
  %v1279 = vpack.c.b16 %v1039, %v1029
  %v1280 = vpack.c.b16 %v1040, %v1030
  %v1281 = vpack.c.b16 %v1041, %v1031
  %v1282 = vpack.c.b16 %v1042, %v1032
  %v1283 = vpack.c.b16 %v1043, %v1033
  %v1284 = vpack.c.b16 %v1044, %v1034
  %v1285 = vpack.c.b16 %v1055, %v1045
  %v1286 = vpack.c.b16 %v1056, %v1046
  %v1287 = vpack.c.b16 %v1057, %v1047
  %v1288 = vpack.c.b16 %v1058, %v1048
  %v1289 = vpack.c.b16 %v1059, %v1049
  %v1290 = vpack.c.b16 %v1060, %v1050
  %v1291 = vpack.c.b16 %v1061, %v1051
  %v1292 = vpack.c.b16 %v1062, %v1052
  %v1293 = vpack.c.b16 %v1063, %v1053
  %v1294 = vpack.c.b16 %v1064, %v1054
  %v1295 = vpack.c.b16 %v1075, %v1065
  %v1296 = vpack.c.b16 %v1076, %v1066
  %v1297 = vpack.c.b16 %v1077, %v1067
  %v1298 = vpack.c.b16 %v1078, %v1068
  %v1299 = vpack.c.b16 %v1079, %v1069
  %v1300 = vpack.c.b16 %v1080, %v1070
  %v1301 = vpack.c.b16 %v1081, %v1071
  %v1302 = vpack.c.b16 %v1082, %v1072
  %v1303 = vpack.c.b16 %v1083, %v1073
  %v1304 = vpack.c.b16 %v1084, %v1074
  %v1305 = vpack.c.b16 %v1095, %v1085
  %v1306 = vpack.c.b16 %v1096, %v1086
  %v1307 = vpack.c.b16 %v1097, %v1087
  %v1308 = vpack.c.b16 %v1098, %v1088
  %v1309 = vpack.c.b16 %v1099, %v1089
  %v1310 = vpack.c.b16 %v1100, %v1090
  %v1311 = vpack.c.b16 %v1101, %v1091
  %v1312 = vpack.c.b16 %v1102, %v1092
  %v1313 = vpack.c.b16 %v1103, %v1093
  %v1314 = vpack.c.b16 %v1104, %v1094
  %v1315 = vpack.c.b16 %v1115, %v1105
  %v1316 = vpack.c.b16 %v1116, %v1106
  %v1317 = vpack.c.b16 %v1117, %v1107
  %v1318 = vpack.c.b16 %v1118, %v1108
  %v1319 = vpack.c.b16 %v1119, %v1109
  %v1320 = vpack.c.b16 %v1120, %v1110
  %v1321 = vpack.c.b16 %v1121, %v1111
  %v1322 = vpack.c.b16 %v1122, %v1112
  %v1323 = vpack.c.b16 %v1123, %v1113
  %v1324 = vpack.c.b16 %v1124, %v1114
  %v1325 = vpack.c.b16 %v1135, %v1125
  %v1326 = vpack.c.b16 %v1136, %v1126
  %v1327 = vpack.c.b16 %v1137, %v1127
  %v1328 = vpack.c.b16 %v1138, %v1128
  %v1329 = vpack.c.b16 %v1139, %v1129
  %v1330 = vpack.c.b16 %v1140, %v1130
  %v1331 = vpack.c.b16 %v1141, %v1131
  %v1332 = vpack.c.b16 %v1142, %v1132
  %v1333 = vpack.c.b16 %v1143, %v1133
  %v1334 = vpack.c.b16 %v1144, %v1134
  %v1335 = vpack.c.b16 %v1155, %v1145
  %v1336 = vpack.c.b16 %v1156, %v1146
  %v1337 = vpack.c.b16 %v1157, %v1147
  %v1338 = vpack.c.b16 %v1158, %v1148
  %v1339 = vpack.c.b16 %v1159, %v1149
  %v1340 = vpack.c.b16 %v1160, %v1150
  %v1341 = vpack.c.b16 %v1161, %v1151
  %v1342 = vpack.c.b16 %v1162, %v1152
  %v1343 = vpack.c.b16 %v1163, %v1153
  %v1344 = vpack.c.b16 %v1164, %v1154
  %v1345 = vpack.c.b16 %v1175, %v1165
  %v1346 = vpack.c.b16 %v1176, %v1166
  %v1347 = vpack.c.b16 %v1177, %v1167
  %v1348 = vpack.c.b16 %v1178, %v1168
  %v1349 = vpack.c.b16 %v1179, %v1169
  %v1350 = vpack.c.b16 %v1180, %v1170
  %v1351 = vpack.c.b16 %v1181, %v1171
  %v1352 = vpack.c.b16 %v1182, %v1172
  %v1353 = vpack.c.b16 %v1183, %v1173
  %v1354 = vpack.c.b16 %v1184, %v1174
  %v1355 = vpack.c.b16 %v1195, %v1185
  %v1356 = vpack.c.b16 %v1196, %v1186
  %v1357 = vpack.c.b16 %v1197, %v1187
  %v1358 = vpack.c.b16 %v1198, %v1188
  %v1359 = vpack.c.b16 %v1199, %v1189
  %v1360 = vpack.c.b16 %v1200, %v1190
  %v1361 = vpack.c.b16 %v1201, %v1191
  %v1362 = vpack.c.b16 %v1202, %v1192
  %v1363 = vpack.c.b16 %v1203, %v1193
  %v1364 = vpack.c.b16 %v1204, %v1194
  %1525 = vmatprep.subr.bf16.mxu0 %v1276
  %1526 = vmatpush1.bf16.msra.mxu0 %v1275
  %1527 = vmatprep.subr.bf16.mxu0 %v1266
  %1528 = vmatpush1.bf16.msra.mxu0 %v1265
  %1529 = vmatprep.subr.bf16.mxu0 %v1256
  %1530 = vmatpush1.bf16.msra.mxu0 %v1255
  %1531 = vmatprep.subr.bf16.mxu0 %v1246
  %1532 = vmatpush1.bf16.msra.mxu0 %v1245
  %1533 = vmatprep.subr.bf16.mxu0 %v1236
  %1534 = vmatpush1.bf16.msra.mxu0 %v1235
  %1535 = vmatprep.subr.bf16.mxu0 %v1226
  %1536 = vmatpush1.bf16.msra.mxu0 %v1225
  %1537 = vmatprep.subr.bf16.mxu0 %v1216
  %1538 = vmatpush1.bf16.msra.mxu0 %v1215
  %1539 = vmatprep.subr.bf16.mxu0 %v1206
  %1540 = vmatpush1.bf16.msra.mxu0 %v1205
  %1541 = vmatprep.subr.bf16.mxu0 %v1356
  %1542 = vmatpush2.bf16.msra.mxu0 %v1355
  %1543 = vmatprep.subr.bf16.mxu0 %v1346
  %1544 = vmatpush2.bf16.msra.mxu0 %v1345
  %1545 = vmatprep.subr.bf16.mxu0 %v1336
  %1546 = vmatpush2.bf16.msra.mxu0 %v1335
  %1547 = vmatprep.subr.bf16.mxu0 %v1326
  %1548 = vmatpush2.bf16.msra.mxu0 %v1325
  %1549 = vmatprep.subr.bf16.mxu0 %v1316
  %1550 = vmatpush2.bf16.msra.mxu0 %v1315
  %1551 = vmatprep.subr.bf16.mxu0 %v1306
  %1552 = vmatpush2.bf16.msra.mxu0 %v1305
  %1553 = vmatprep.subr.bf16.mxu0 %v1296
  %1554 = vmatpush2.bf16.msra.mxu0 %v1295
  %1555 = vmatprep.subr.bf16.mxu0 %v1286
  %1556 = vmatpush2.bf16.msra.mxu0 %v1285
  %1557 = vmatprep.mubr.bf16.mxu0 %v724
  %1558 = vmatmul.mubr.bf16.gmra.mxu0 %v723
  %v1559 = vpop.f32.mrf.mxu0
  %v1560 = vadd.f32 0.0, %v1559
  %v1561 = vpop.f32.mrf.mxu0
  %v1562 = vadd.f32 0.0, %v1561
  %v1563 = vpop.f32.mrf.mxu0
  %v1564 = vpop.f32.mrf.mxu0
  %1565 = vdwg.mxu0
  %1566 = vmatprep.subr.bf16.mxu0 %v1278
  %1567 = vmatpush1.bf16.msra.mxu0 %v1277
  %1568 = vmatprep.subr.bf16.mxu0 %v1268
  %1569 = vmatpush1.bf16.msra.mxu0 %v1267
  %1570 = vmatprep.subr.bf16.mxu0 %v1258
  %1571 = vmatpush1.bf16.msra.mxu0 %v1257
  %1572 = vmatprep.subr.bf16.mxu0 %v1248
  %1573 = vmatpush1.bf16.msra.mxu0 %v1247
  %1574 = vmatprep.subr.bf16.mxu0 %v1238
  %1575 = vmatpush1.bf16.msra.mxu0 %v1237
  %1576 = vmatprep.subr.bf16.mxu0 %v1228
  %1577 = vmatpush1.bf16.msra.mxu0 %v1227
  %1578 = vmatprep.subr.bf16.mxu0 %v1218
  %1579 = vmatpush1.bf16.msra.mxu0 %v1217
  %1580 = vmatprep.subr.bf16.mxu0 %v1208
  %1581 = vmatpush1.bf16.msra.mxu0 %v1207
  %1582 = vmatprep.subr.bf16.mxu0 %v1358
  %1583 = vmatpush2.bf16.msra.mxu0 %v1357
  %1584 = vmatprep.subr.bf16.mxu0 %v1348
  %1585 = vmatpush2.bf16.msra.mxu0 %v1347
  %1586 = vmatprep.subr.bf16.mxu0 %v1338
  %1587 = vmatpush2.bf16.msra.mxu0 %v1337
  %1588 = vmatprep.subr.bf16.mxu0 %v1328
  %1589 = vmatpush2.bf16.msra.mxu0 %v1327
  %1590 = vmatprep.subr.bf16.mxu0 %v1318
  %1591 = vmatpush2.bf16.msra.mxu0 %v1317
  %1592 = vmatprep.subr.bf16.mxu0 %v1308
  %1593 = vmatpush2.bf16.msra.mxu0 %v1307
  %1594 = vmatprep.subr.bf16.mxu0 %v1298
  %1595 = vmatpush2.bf16.msra.mxu0 %v1297
  %1596 = vmatprep.subr.bf16.mxu0 %v1288
  %1597 = vmatpush2.bf16.msra.mxu0 %v1287
  %1598 = vmatprep.mubr.bf16.mxu0 %v724
  %1599 = vmatmul.mubr.bf16.gmra.mxu0 %v723
  %v1600 = vpop.f32.mrf.mxu0
  %v1601 = vadd.f32 0.0, %v1600
  %v1602 = vpop.f32.mrf.mxu0
  %v1603 = vadd.f32 0.0, %v1602
  %v1604 = vpop.f32.mrf.mxu0
  %v1605 = vpop.f32.mrf.mxu0
  %1606 = vdwg.mxu0
  %1607 = vmatprep.subr.bf16.mxu0 %v1280
  %1608 = vmatpush1.bf16.msra.mxu0 %v1279
  %1609 = vmatprep.subr.bf16.mxu0 %v1270
  %1610 = vmatpush1.bf16.msra.mxu0 %v1269
  %1611 = vmatprep.subr.bf16.mxu0 %v1260
  %1612 = vmatpush1.bf16.msra.mxu0 %v1259
  %1613 = vmatprep.subr.bf16.mxu0 %v1250
  %1614 = vmatpush1.bf16.msra.mxu0 %v1249
  %1615 = vmatprep.subr.bf16.mxu0 %v1240
  %1616 = vmatpush1.bf16.msra.mxu0 %v1239
  %1617 = vmatprep.subr.bf16.mxu0 %v1230
  %1618 = vmatpush1.bf16.msra.mxu0 %v1229
  %1619 = vmatprep.subr.bf16.mxu0 %v1220
  %1620 = vmatpush1.bf16.msra.mxu0 %v1219
  %1621 = vmatprep.subr.bf16.mxu0 %v1210
  %1622 = vmatpush1.bf16.msra.mxu0 %v1209
  %1623 = vmatprep.subr.bf16.mxu0 %v1360
  %1624 = vmatpush2.bf16.msra.mxu0 %v1359
  %1625 = vmatprep.subr.bf16.mxu0 %v1350
  %1626 = vmatpush2.bf16.msra.mxu0 %v1349
  %1627 = vmatprep.subr.bf16.mxu0 %v1340
  %1628 = vmatpush2.bf16.msra.mxu0 %v1339
  %1629 = vmatprep.subr.bf16.mxu0 %v1330
  %1630 = vmatpush2.bf16.msra.mxu0 %v1329
  %1631 = vmatprep.subr.bf16.mxu0 %v1320
  %1632 = vmatpush2.bf16.msra.mxu0 %v1319
  %1633 = vmatprep.subr.bf16.mxu0 %v1310
  %1634 = vmatpush2.bf16.msra.mxu0 %v1309
  %1635 = vmatprep.subr.bf16.mxu0 %v1300
  %1636 = vmatpush2.bf16.msra.mxu0 %v1299
  %1637 = vmatprep.subr.bf16.mxu0 %v1290
  %1638 = vmatpush2.bf16.msra.mxu0 %v1289
  %1639 = vmatprep.mubr.bf16.mxu0 %v724
  %1640 = vmatmul.mubr.bf16.gmra.mxu0 %v723
  %v1641 = vpop.f32.mrf.mxu0
  %v1642 = vadd.f32 0.0, %v1641
  %v1643 = vpop.f32.mrf.mxu0
  %v1644 = vadd.f32 0.0, %v1643
  %v1645 = vpop.f32.mrf.mxu0
  %v1646 = vpop.f32.mrf.mxu0
  %1647 = vdwg.mxu0
  %1648 = vmatprep.subr.bf16.mxu0 %v1282
  %1649 = vmatpush1.bf16.msra.mxu0 %v1281
  %1650 = vmatprep.subr.bf16.mxu0 %v1272
  %1651 = vmatpush1.bf16.msra.mxu0 %v1271
  %1652 = vmatprep.subr.bf16.mxu0 %v1262
  %1653 = vmatpush1.bf16.msra.mxu0 %v1261
  %1654 = vmatprep.subr.bf16.mxu0 %v1252
  %1655 = vmatpush1.bf16.msra.mxu0 %v1251
  %1656 = vmatprep.subr.bf16.mxu0 %v1242
  %1657 = vmatpush1.bf16.msra.mxu0 %v1241
  %1658 = vmatprep.subr.bf16.mxu0 %v1232
  %1659 = vmatpush1.bf16.msra.mxu0 %v1231
  %1660 = vmatprep.subr.bf16.mxu0 %v1222
  %1661 = vmatpush1.bf16.msra.mxu0 %v1221
  %1662 = vmatprep.subr.bf16.mxu0 %v1212
  %1663 = vmatpush1.bf16.msra.mxu0 %v1211
  %1664 = vmatprep.subr.bf16.mxu0 %v1362
  %1665 = vmatpush2.bf16.msra.mxu0 %v1361
  %1666 = vmatprep.subr.bf16.mxu0 %v1352
  %1667 = vmatpush2.bf16.msra.mxu0 %v1351
  %1668 = vmatprep.subr.bf16.mxu0 %v1342
  %1669 = vmatpush2.bf16.msra.mxu0 %v1341
  %1670 = vmatprep.subr.bf16.mxu0 %v1332
  %1671 = vmatpush2.bf16.msra.mxu0 %v1331
  %1672 = vmatprep.subr.bf16.mxu0 %v1322
  %1673 = vmatpush2.bf16.msra.mxu0 %v1321
  %1674 = vmatprep.subr.bf16.mxu0 %v1312
  %1675 = vmatpush2.bf16.msra.mxu0 %v1311
  %1676 = vmatprep.subr.bf16.mxu0 %v1302
  %1677 = vmatpush2.bf16.msra.mxu0 %v1301
  %1678 = vmatprep.subr.bf16.mxu0 %v1292
  %1679 = vmatpush2.bf16.msra.mxu0 %v1291
  %1680 = vmatprep.mubr.bf16.mxu0 %v724
  %1681 = vmatmul.mubr.bf16.gmra.mxu0 %v723
  %v1682 = vpop.f32.mrf.mxu0
  %v1683 = vadd.f32 0.0, %v1682
  %v1684 = vpop.f32.mrf.mxu0
  %v1685 = vadd.f32 0.0, %v1684
  %v1686 = vpop.f32.mrf.mxu0
  %v1687 = vpop.f32.mrf.mxu0
  %1688 = vdwg.mxu0
  %1689 = vmatprep.subr.bf16.mxu0 %v1284
  %1690 = vmatpush1.bf16.msra.mxu0 %v1283
  %1691 = vmatprep.subr.bf16.mxu0 %v1274
  %1692 = vmatpush1.bf16.msra.mxu0 %v1273
  %1693 = vmatprep.subr.bf16.mxu0 %v1264
  %1694 = vmatpush1.bf16.msra.mxu0 %v1263
  %1695 = vmatprep.subr.bf16.mxu0 %v1254
  %1696 = vmatpush1.bf16.msra.mxu0 %v1253
  %1697 = vmatprep.subr.bf16.mxu0 %v1244
  %1698 = vmatpush1.bf16.msra.mxu0 %v1243
  %1699 = vmatprep.subr.bf16.mxu0 %v1234
  %1700 = vmatpush1.bf16.msra.mxu0 %v1233
  %1701 = vmatprep.subr.bf16.mxu0 %v1224
  %1702 = vmatpush1.bf16.msra.mxu0 %v1223
  %1703 = vmatprep.subr.bf16.mxu0 %v1214
  %1704 = vmatpush1.bf16.msra.mxu0 %v1213
  %1705 = vmatprep.subr.bf16.mxu0 %v1364
  %1706 = vmatpush2.bf16.msra.mxu0 %v1363
  %1707 = vmatprep.subr.bf16.mxu0 %v1354
  %1708 = vmatpush2.bf16.msra.mxu0 %v1353
  %1709 = vmatprep.subr.bf16.mxu0 %v1344
  %1710 = vmatpush2.bf16.msra.mxu0 %v1343
  %1711 = vmatprep.subr.bf16.mxu0 %v1334
  %1712 = vmatpush2.bf16.msra.mxu0 %v1333
  %1713 = vmatprep.subr.bf16.mxu0 %v1324
  %1714 = vmatpush2.bf16.msra.mxu0 %v1323
  %1715 = vmatprep.subr.bf16.mxu0 %v1314
  %1716 = vmatpush2.bf16.msra.mxu0 %v1313
  %1717 = vmatprep.subr.bf16.mxu0 %v1304
  %1718 = vmatpush2.bf16.msra.mxu0 %v1303
  %1719 = vmatprep.subr.bf16.mxu0 %v1294
  %1720 = vmatpush2.bf16.msra.mxu0 %v1293
  %1721 = vmatprep.mubr.bf16.mxu0 %v724
  %1722 = vmatmul.mubr.bf16.gmra.mxu0 %v723
  %v1723 = vpop.f32.mrf.mxu0
  %v1724 = vadd.f32 0.0, %v1723
  %v1725 = vpop.f32.mrf.mxu0
  %v1726 = vadd.f32 0.0, %v1725
  %v1727 = vpop.f32.mrf.mxu0
  %v1728 = vpop.f32.mrf.mxu0
  %1729 = vdwg.mxu0
  %v1730 = vrot.slane %v1560, 4
  %v1731 = vadd.f32 %v1560, %v1730
  %v1732 = vrot.slane %v1731, 2
  %v1733 = vadd.f32 %v1731, %v1732
  %v1734 = vrot.slane %v1733, 1
  %v1735 = vadd.f32 %v1733, %v1734
  %v1736 = vrot.slane %v1562, 4
  %v1737 = vadd.f32 %v1562, %v1736
  %v1738 = vrot.slane %v1737, 2
  %v1739 = vadd.f32 %v1737, %v1738
  %v1740 = vrot.slane %v1739, 1
  %v1741 = vadd.f32 %v1739, %v1740
  %v1742 = vrot.slane %v1601, 4
  %v1743 = vadd.f32 %v1601, %v1742
  %v1744 = vrot.slane %v1743, 2
  %v1745 = vadd.f32 %v1743, %v1744
  %v1746 = vrot.slane %v1745, 1
  %v1747 = vadd.f32 %v1745, %v1746
  %v1748 = vrot.slane %v1603, 4
  %v1749 = vadd.f32 %v1603, %v1748
  %v1750 = vrot.slane %v1749, 2
  %v1751 = vadd.f32 %v1749, %v1750
  %v1752 = vrot.slane %v1751, 1
  %v1753 = vadd.f32 %v1751, %v1752
  %v1754 = vrot.slane %v1642, 4
  %v1755 = vadd.f32 %v1642, %v1754
  %v1756 = vrot.slane %v1755, 2
  %v1757 = vadd.f32 %v1755, %v1756
  %v1758 = vrot.slane %v1757, 1
  %v1759 = vadd.f32 %v1757, %v1758
  %v1760 = vrot.slane %v1644, 4
  %v1761 = vadd.f32 %v1644, %v1760
  %v1762 = vrot.slane %v1761, 2
  %v1763 = vadd.f32 %v1761, %v1762
  %v1764 = vrot.slane %v1763, 1
  %v1765 = vadd.f32 %v1763, %v1764
  %v1766 = vrot.slane %v1683, 4
  %v1767 = vadd.f32 %v1683, %v1766
  %v1768 = vrot.slane %v1767, 2
  %v1769 = vadd.f32 %v1767, %v1768
  %v1770 = vrot.slane %v1769, 1
  %v1771 = vadd.f32 %v1769, %v1770
  %v1772 = vrot.slane %v1685, 4
  %v1773 = vadd.f32 %v1685, %v1772
  %v1774 = vrot.slane %v1773, 2
  %v1775 = vadd.f32 %v1773, %v1774
  %v1776 = vrot.slane %v1775, 1
  %v1777 = vadd.f32 %v1775, %v1776
  %v1778 = vrot.slane %v1724, 4
  %v1779 = vadd.f32 %v1724, %v1778
  %v1780 = vrot.slane %v1779, 2
  %v1781 = vadd.f32 %v1779, %v1780
  %v1782 = vrot.slane %v1781, 1
  %v1783 = vadd.f32 %v1781, %v1782
  %v1784 = vrot.slane %v1726, 4
  %v1785 = vadd.f32 %v1726, %v1784
  %v1786 = vrot.slane %v1785, 2
  %v1787 = vadd.f32 %v1785, %v1786
  %v1788 = vrot.slane %v1787, 1
  %v1789 = vadd.f32 %v1787, %v1788
  %v1790 = vmul.f32 %v1560, %v1560
  %v1791 = vmul.f32 %v1562, %v1562
  %v1792 = vmul.f32 %v1601, %v1601
  %v1793 = vmul.f32 %v1603, %v1603
  %v1794 = vmul.f32 %v1642, %v1642
  %v1795 = vmul.f32 %v1644, %v1644
  %v1796 = vmul.f32 %v1683, %v1683
  %v1797 = vmul.f32 %v1685, %v1685
  %v1798 = vmul.f32 %v1724, %v1724
  %v1799 = vmul.f32 %v1726, %v1726
  %v1800 = vrot.slane %v1790, 4
  %v1801 = vadd.f32 %v1790, %v1800
  %v1802 = vrot.slane %v1801, 2
  %v1803 = vadd.f32 %v1801, %v1802
  %v1804 = vrot.slane %v1803, 1
  %v1805 = vadd.f32 %v1803, %v1804
  %v1806 = vrot.slane %v1791, 4
  %v1807 = vadd.f32 %v1791, %v1806
  %v1808 = vrot.slane %v1807, 2
  %v1809 = vadd.f32 %v1807, %v1808
  %v1810 = vrot.slane %v1809, 1
  %v1811 = vadd.f32 %v1809, %v1810
  %v1812 = vrot.slane %v1792, 4
  %v1813 = vadd.f32 %v1792, %v1812
  %v1814 = vrot.slane %v1813, 2
  %v1815 = vadd.f32 %v1813, %v1814
  %v1816 = vrot.slane %v1815, 1
  %v1817 = vadd.f32 %v1815, %v1816
  %v1818 = vrot.slane %v1793, 4
  %v1819 = vadd.f32 %v1793, %v1818
  %v1820 = vrot.slane %v1819, 2
  %v1821 = vadd.f32 %v1819, %v1820
  %v1822 = vrot.slane %v1821, 1
  %v1823 = vadd.f32 %v1821, %v1822
  %v1824 = vrot.slane %v1794, 4
  %v1825 = vadd.f32 %v1794, %v1824
  %v1826 = vrot.slane %v1825, 2
  %v1827 = vadd.f32 %v1825, %v1826
  %v1828 = vrot.slane %v1827, 1
  %v1829 = vadd.f32 %v1827, %v1828
  %v1830 = vrot.slane %v1795, 4
  %v1831 = vadd.f32 %v1795, %v1830
  %v1832 = vrot.slane %v1831, 2
  %v1833 = vadd.f32 %v1831, %v1832
  %v1834 = vrot.slane %v1833, 1
  %v1835 = vadd.f32 %v1833, %v1834
  %v1836 = vrot.slane %v1796, 4
  %v1837 = vadd.f32 %v1796, %v1836
  %v1838 = vrot.slane %v1837, 2
  %v1839 = vadd.f32 %v1837, %v1838
  %v1840 = vrot.slane %v1839, 1
  %v1841 = vadd.f32 %v1839, %v1840
  %v1842 = vrot.slane %v1797, 4
  %v1843 = vadd.f32 %v1797, %v1842
  %v1844 = vrot.slane %v1843, 2
  %v1845 = vadd.f32 %v1843, %v1844
  %v1846 = vrot.slane %v1845, 1
  %v1847 = vadd.f32 %v1845, %v1846
  %v1848 = vrot.slane %v1798, 4
  %v1849 = vadd.f32 %v1798, %v1848
  %v1850 = vrot.slane %v1849, 2
  %v1851 = vadd.f32 %v1849, %v1850
  %v1852 = vrot.slane %v1851, 1
  %v1853 = vadd.f32 %v1851, %v1852
  %v1854 = vrot.slane %v1799, 4
  %v1855 = vadd.f32 %v1799, %v1854
  %v1856 = vrot.slane %v1855, 2
  %v1857 = vadd.f32 %v1855, %v1856
  %v1858 = vrot.slane %v1857, 1
  %v1859 = vadd.f32 %v1857, %v1858
  %v1860 = vpack.c.bf16 %v1735, %v1735
  %v1861 = vpack.c.bf16 %v1741, %v1741
  %v1862 = vpack.c.bf16 %v1747, %v1747
  %v1863 = vpack.c.bf16 %v1753, %v1753
  %v1864 = vpack.c.bf16 %v1759, %v1759
  %v1865 = vpack.c.bf16 %v1765, %v1765
  %v1866 = vpack.c.bf16 %v1771, %v1771
  %v1867 = vpack.c.bf16 %v1777, %v1777
  %v1868 = vpack.c.bf16 %v1783, %v1783
  %v1869 = vpack.c.bf16 %v1789, %v1789
  %v2030 = vunpack.c.l.b16 %v270
  %v2031 = vunpack.c.l.b16 %v271
  %v2032 = vunpack.c.l.b16 %v272
  %v2033 = vunpack.c.l.b16 %v273
  %v2034 = vunpack.c.l.b16 %v274
  %v2035 = vunpack.c.l.b16 %v275
  %v2036 = vunpack.c.l.b16 %v276
  %v2037 = vunpack.c.l.b16 %v277
  %v2038 = vunpack.c.l.b16 %v278
  %v2039 = vunpack.c.l.b16 %v279
  %v2040 = vunpack.c.l.b16 %v280
  %v2041 = vunpack.c.l.b16 %v281
  %v2042 = vunpack.c.l.b16 %v282
  %v2043 = vunpack.c.l.b16 %v283
  %v2044 = vunpack.c.l.b16 %v284
  %v2045 = vunpack.c.l.b16 %v285
  %v2046 = vunpack.c.l.b16 %v286
  %v2047 = vunpack.c.l.b16 %v287
  %v2048 = vunpack.c.l.b16 %v288
  %v2049 = vunpack.c.l.b16 %v289
  %v2050 = vunpack.c.l.b16 %v290
  %v2051 = vunpack.c.l.b16 %v291
  %v2052 = vunpack.c.l.b16 %v292
  %v2053 = vunpack.c.l.b16 %v293
  %v2054 = vunpack.c.l.b16 %v294
  %v2055 = vunpack.c.l.b16 %v295
  %v2056 = vunpack.c.l.b16 %v296
  %v2057 = vunpack.c.l.b16 %v297
  %v2058 = vunpack.c.l.b16 %v298
  %v2059 = vunpack.c.l.b16 %v299
  %v2060 = vunpack.c.l.b16 %v300
  %v2061 = vunpack.c.l.b16 %v301
  %v2062 = vunpack.c.l.b16 %v302
  %v2063 = vunpack.c.l.b16 %v303
  %v2064 = vunpack.c.l.b16 %v304
  %v2065 = vunpack.c.l.b16 %v305
  %v2066 = vunpack.c.l.b16 %v306
  %v2067 = vunpack.c.l.b16 %v307
  %v2068 = vunpack.c.l.b16 %v308
  %v2069 = vunpack.c.l.b16 %v309
  %v2070 = vunpack.c.l.b16 %v310
  %v2071 = vunpack.c.l.b16 %v311
  %v2072 = vunpack.c.l.b16 %v312
  %v2073 = vunpack.c.l.b16 %v313
  %v2074 = vunpack.c.l.b16 %v314
  %v2075 = vunpack.c.l.b16 %v315
  %v2076 = vunpack.c.l.b16 %v316
  %v2077 = vunpack.c.l.b16 %v317
  %v2078 = vunpack.c.l.b16 %v318
  %v2079 = vunpack.c.l.b16 %v319
  %v2080 = vunpack.c.l.b16 %v320
  %v2081 = vunpack.c.l.b16 %v321
  %v2082 = vunpack.c.l.b16 %v322
  %v2083 = vunpack.c.l.b16 %v323
  %v2084 = vunpack.c.l.b16 %v324
  %v2085 = vunpack.c.l.b16 %v325
  %v2086 = vunpack.c.l.b16 %v326
  %v2087 = vunpack.c.l.b16 %v327
  %v2088 = vunpack.c.l.b16 %v328
  %v2089 = vunpack.c.l.b16 %v329
  %v2090 = vunpack.c.l.b16 %v330
  %v2091 = vunpack.c.l.b16 %v331
  %v2092 = vunpack.c.l.b16 %v332
  %v2093 = vunpack.c.l.b16 %v333
  %v2094 = vunpack.c.l.b16 %v334
  %v2095 = vunpack.c.l.b16 %v335
  %v2096 = vunpack.c.l.b16 %v336
  %v2097 = vunpack.c.l.b16 %v337
  %v2098 = vunpack.c.l.b16 %v338
  %v2099 = vunpack.c.l.b16 %v339
  %v2100 = vunpack.c.l.b16 %v340
  %v2101 = vunpack.c.l.b16 %v341
  %v2102 = vunpack.c.l.b16 %v342
  %v2103 = vunpack.c.l.b16 %v343
  %v2104 = vunpack.c.l.b16 %v344
  %v2105 = vunpack.c.l.b16 %v345
  %v2106 = vunpack.c.l.b16 %v346
  %v2107 = vunpack.c.l.b16 %v347
  %v2108 = vunpack.c.l.b16 %v348
  %v2109 = vunpack.c.l.b16 %v349
  %v2110 = vunpack.c.l.b16 %v350
  %v2111 = vunpack.c.l.b16 %v351
  %v2112 = vunpack.c.l.b16 %v352
  %v2113 = vunpack.c.l.b16 %v353
  %v2114 = vunpack.c.l.b16 %v354
  %v2115 = vunpack.c.l.b16 %v355
  %v2116 = vunpack.c.l.b16 %v356
  %v2117 = vunpack.c.l.b16 %v357
  %v2118 = vunpack.c.l.b16 %v358
  %v2119 = vunpack.c.l.b16 %v359
  %v2120 = vunpack.c.l.b16 %v360
  %v2121 = vunpack.c.l.b16 %v361
  %v2122 = vunpack.c.l.b16 %v362
  %v2123 = vunpack.c.l.b16 %v363
  %v2124 = vunpack.c.l.b16 %v364
  %v2125 = vunpack.c.l.b16 %v365
  %v2126 = vunpack.c.l.b16 %v366
  %v2127 = vunpack.c.l.b16 %v367
  %v2128 = vunpack.c.l.b16 %v368
  %v2129 = vunpack.c.l.b16 %v369
  %v2130 = vunpack.c.l.b16 %v370
  %v2131 = vunpack.c.l.b16 %v371
  %v2132 = vunpack.c.l.b16 %v372
  %v2133 = vunpack.c.l.b16 %v373
  %v2134 = vunpack.c.l.b16 %v374
  %v2135 = vunpack.c.l.b16 %v375
  %v2136 = vunpack.c.l.b16 %v376
  %v2137 = vunpack.c.l.b16 %v377
  %v2138 = vunpack.c.l.b16 %v378
  %v2139 = vunpack.c.l.b16 %v379
  %v2140 = vunpack.c.l.b16 %v380
  %v2141 = vunpack.c.l.b16 %v381
  %v2142 = vunpack.c.l.b16 %v382
  %v2143 = vunpack.c.l.b16 %v383
  %v2144 = vunpack.c.l.b16 %v384
  %v2145 = vunpack.c.l.b16 %v385
  %v2146 = vunpack.c.l.b16 %v386
  %v2147 = vunpack.c.l.b16 %v387
  %v2148 = vunpack.c.l.b16 %v388
  %v2149 = vunpack.c.l.b16 %v389
  %v2150 = vunpack.c.l.b16 %v390
  %v2151 = vunpack.c.l.b16 %v391
  %v2152 = vunpack.c.l.b16 %v392
  %v2153 = vunpack.c.l.b16 %v393
  %v2154 = vunpack.c.l.b16 %v394
  %v2155 = vunpack.c.l.b16 %v395
  %v2156 = vunpack.c.l.b16 %v396
  %v2157 = vunpack.c.l.b16 %v397
  %v2158 = vunpack.c.l.b16 %v398
  %v2159 = vunpack.c.l.b16 %v399
  %v2160 = vunpack.c.l.b16 %v400
  %v2161 = vunpack.c.l.b16 %v401
  %v2162 = vunpack.c.l.b16 %v402
  %v2163 = vunpack.c.l.b16 %v403
  %v2164 = vunpack.c.l.b16 %v404
  %v2165 = vunpack.c.l.b16 %v405
  %v2166 = vunpack.c.l.b16 %v406
  %v2167 = vunpack.c.l.b16 %v407
  %v2168 = vunpack.c.l.b16 %v408
  %v2169 = vunpack.c.l.b16 %v409
  %v2170 = vunpack.c.l.b16 %v410
  %v2171 = vunpack.c.l.b16 %v411
  %v2172 = vunpack.c.l.b16 %v412
  %v2173 = vunpack.c.l.b16 %v413
  %v2174 = vunpack.c.l.b16 %v414
  %v2175 = vunpack.c.l.b16 %v415
  %v2176 = vunpack.c.l.b16 %v416
  %v2177 = vunpack.c.l.b16 %v417
  %v2178 = vunpack.c.l.b16 %v418
  %v2179 = vunpack.c.l.b16 %v419
  %v2180 = vunpack.c.l.b16 %v420
  %v2181 = vunpack.c.l.b16 %v421
  %v2182 = vunpack.c.l.b16 %v422
  %v2183 = vunpack.c.l.b16 %v423
  %v2184 = vunpack.c.l.b16 %v424
  %v2185 = vunpack.c.l.b16 %v425
  %v2186 = vunpack.c.l.b16 %v426
  %v2187 = vunpack.c.l.b16 %v427
  %v2188 = vunpack.c.l.b16 %v428
  %v2189 = vunpack.c.l.b16 %v429
  %v2190 = vpack.c.b16 %v2031, %v2030
  %v2191 = vpack.c.b16 %v2033, %v2032
  %v2192 = vpack.c.b16 %v2035, %v2034
  %v2193 = vpack.c.b16 %v2037, %v2036
  %v2194 = vpack.c.b16 %v2039, %v2038
  %v2195 = vpack.c.b16 %v2041, %v2040
  %v2196 = vpack.c.b16 %v2043, %v2042
  %v2197 = vpack.c.b16 %v2045, %v2044
  %v2198 = vpack.c.b16 %v2047, %v2046
  %v2199 = vpack.c.b16 %v2049, %v2048
  %v2200 = vpack.c.b16 %v2051, %v2050
  %v2201 = vpack.c.b16 %v2053, %v2052
  %v2202 = vpack.c.b16 %v2055, %v2054
  %v2203 = vpack.c.b16 %v2057, %v2056
  %v2204 = vpack.c.b16 %v2059, %v2058
  %v2205 = vpack.c.b16 %v2061, %v2060
  %v2206 = vpack.c.b16 %v2063, %v2062
  %v2207 = vpack.c.b16 %v2065, %v2064
  %v2208 = vpack.c.b16 %v2067, %v2066
  %v2209 = vpack.c.b16 %v2069, %v2068
  %v2210 = vpack.c.b16 %v2071, %v2070
  %v2211 = vpack.c.b16 %v2073, %v2072
  %v2212 = vpack.c.b16 %v2075, %v2074
  %v2213 = vpack.c.b16 %v2077, %v2076
  %v2214 = vpack.c.b16 %v2079, %v2078
  %v2215 = vpack.c.b16 %v2081, %v2080
  %v2216 = vpack.c.b16 %v2083, %v2082
  %v2217 = vpack.c.b16 %v2085, %v2084
  %v2218 = vpack.c.b16 %v2087, %v2086
  %v2219 = vpack.c.b16 %v2089, %v2088
  %v2220 = vpack.c.b16 %v2091, %v2090
  %v2221 = vpack.c.b16 %v2093, %v2092
  %v2222 = vpack.c.b16 %v2095, %v2094
  %v2223 = vpack.c.b16 %v2097, %v2096
  %v2224 = vpack.c.b16 %v2099, %v2098
  %v2225 = vpack.c.b16 %v2101, %v2100
  %v2226 = vpack.c.b16 %v2103, %v2102
  %v2227 = vpack.c.b16 %v2105, %v2104
  %v2228 = vpack.c.b16 %v2107, %v2106
  %v2229 = vpack.c.b16 %v2109, %v2108
  %v2230 = vpack.c.b16 %v2111, %v2110
  %v2231 = vpack.c.b16 %v2113, %v2112
  %v2232 = vpack.c.b16 %v2115, %v2114
  %v2233 = vpack.c.b16 %v2117, %v2116
  %v2234 = vpack.c.b16 %v2119, %v2118
  %v2235 = vpack.c.b16 %v2121, %v2120
  %v2236 = vpack.c.b16 %v2123, %v2122
  %v2237 = vpack.c.b16 %v2125, %v2124
  %v2238 = vpack.c.b16 %v2127, %v2126
  %v2239 = vpack.c.b16 %v2129, %v2128
  %v2240 = vpack.c.b16 %v2131, %v2130
  %v2241 = vpack.c.b16 %v2133, %v2132
  %v2242 = vpack.c.b16 %v2135, %v2134
  %v2243 = vpack.c.b16 %v2137, %v2136
  %v2244 = vpack.c.b16 %v2139, %v2138
  %v2245 = vpack.c.b16 %v2141, %v2140
  %v2246 = vpack.c.b16 %v2143, %v2142
  %v2247 = vpack.c.b16 %v2145, %v2144
  %v2248 = vpack.c.b16 %v2147, %v2146
  %v2249 = vpack.c.b16 %v2149, %v2148
  %v2250 = vpack.c.b16 %v2151, %v2150
  %v2251 = vpack.c.b16 %v2153, %v2152
  %v2252 = vpack.c.b16 %v2155, %v2154
  %v2253 = vpack.c.b16 %v2157, %v2156
  %v2254 = vpack.c.b16 %v2159, %v2158
  %v2255 = vpack.c.b16 %v2161, %v2160
  %v2256 = vpack.c.b16 %v2163, %v2162
  %v2257 = vpack.c.b16 %v2165, %v2164
  %v2258 = vpack.c.b16 %v2167, %v2166
  %v2259 = vpack.c.b16 %v2169, %v2168
  %v2260 = vpack.c.b16 %v2171, %v2170
  %v2261 = vpack.c.b16 %v2173, %v2172
  %v2262 = vpack.c.b16 %v2175, %v2174
  %v2263 = vpack.c.b16 %v2177, %v2176
  %v2264 = vpack.c.b16 %v2179, %v2178
  %v2265 = vpack.c.b16 %v2181, %v2180
  %v2266 = vpack.c.b16 %v2183, %v2182
  %v2267 = vpack.c.b16 %v2185, %v2184
  %v2268 = vpack.c.b16 %v2187, %v2186
  %v2269 = vpack.c.b16 %v2189, %v2188
  %2350 = vmatprep.subr.bf16.mxu0 0
  %2351 = vmatpush1.bf16.msra.mxu0 %v2197
  %2352 = vmatprep.subr.bf16.mxu0 0
  %2353 = vmatpush1.bf16.msra.mxu0 %v2196
  %2354 = vmatprep.subr.bf16.mxu0 0
  %2355 = vmatpush1.bf16.msra.mxu0 %v2195
  %2356 = vmatprep.subr.bf16.mxu0 0
  %2357 = vmatpush1.bf16.msra.mxu0 %v2194
  %2358 = vmatprep.subr.bf16.mxu0 0
  %2359 = vmatpush1.bf16.msra.mxu0 %v2193
  %2360 = vmatprep.subr.bf16.mxu0 0
  %2361 = vmatpush1.bf16.msra.mxu0 %v2192
  %2362 = vmatprep.subr.bf16.mxu0 0
  %2363 = vmatpush1.bf16.msra.mxu0 %v2191
  %2364 = vmatprep.subr.bf16.mxu0 0
  %2365 = vmatpush1.bf16.msra.mxu0 %v2190
  %2366 = vmatprep.subr.bf16.mxu0 0
  %2367 = vmatpush2.bf16.msra.mxu0 %v2205
  %2368 = vmatprep.subr.bf16.mxu0 0
  %2369 = vmatpush2.bf16.msra.mxu0 %v2204
  %2370 = vmatprep.subr.bf16.mxu0 0
  %2371 = vmatpush2.bf16.msra.mxu0 %v2203
  %2372 = vmatprep.subr.bf16.mxu0 0
  %2373 = vmatpush2.bf16.msra.mxu0 %v2202
  %2374 = vmatprep.subr.bf16.mxu0 0
  %2375 = vmatpush2.bf16.msra.mxu0 %v2201
  %2376 = vmatprep.subr.bf16.mxu0 0
  %2377 = vmatpush2.bf16.msra.mxu0 %v2200
  %2378 = vmatprep.subr.bf16.mxu0 0
  %2379 = vmatpush2.bf16.msra.mxu0 %v2199
  %2380 = vmatprep.subr.bf16.mxu0 0
  %2381 = vmatpush2.bf16.msra.mxu0 %v2198
  %2382 = vmatprep.mubr.bf16.mxu0 %v1861
  %2383 = vmatmul.mubr.bf16.gmra.mxu0 %v1860
  %v2384 = vpop.f32.mrf.mxu0
  %v2385 = vadd.f32 0.0, %v2384
  %v2386 = vpop.f32.mrf.mxu0
  %v2387 = vpop.f32.mrf.mxu0
  %v2388 = vpop.f32.mrf.mxu0
  %2389 = vdwg.mxu0
  %2390 = vmatprep.subr.bf16.mxu0 0
  %2391 = vmatpush1.bf16.msra.mxu0 %v2213
  %2392 = vmatprep.subr.bf16.mxu0 0
  %2393 = vmatpush1.bf16.msra.mxu0 %v2212
  %2394 = vmatprep.subr.bf16.mxu0 0
  %2395 = vmatpush1.bf16.msra.mxu0 %v2211
  %2396 = vmatprep.subr.bf16.mxu0 0
  %2397 = vmatpush1.bf16.msra.mxu0 %v2210
  %2398 = vmatprep.subr.bf16.mxu0 0
  %2399 = vmatpush1.bf16.msra.mxu0 %v2209
  %2400 = vmatprep.subr.bf16.mxu0 0
  %2401 = vmatpush1.bf16.msra.mxu0 %v2208
  %2402 = vmatprep.subr.bf16.mxu0 0
  %2403 = vmatpush1.bf16.msra.mxu0 %v2207
  %2404 = vmatprep.subr.bf16.mxu0 0
  %2405 = vmatpush1.bf16.msra.mxu0 %v2206
  %2406 = vmatprep.subr.bf16.mxu0 0
  %2407 = vmatpush2.bf16.msra.mxu0 %v2221
  %2408 = vmatprep.subr.bf16.mxu0 0
  %2409 = vmatpush2.bf16.msra.mxu0 %v2220
  %2410 = vmatprep.subr.bf16.mxu0 0
  %2411 = vmatpush2.bf16.msra.mxu0 %v2219
  %2412 = vmatprep.subr.bf16.mxu0 0
  %2413 = vmatpush2.bf16.msra.mxu0 %v2218
  %2414 = vmatprep.subr.bf16.mxu0 0
  %2415 = vmatpush2.bf16.msra.mxu0 %v2217
  %2416 = vmatprep.subr.bf16.mxu0 0
  %2417 = vmatpush2.bf16.msra.mxu0 %v2216
  %2418 = vmatprep.subr.bf16.mxu0 0
  %2419 = vmatpush2.bf16.msra.mxu0 %v2215
  %2420 = vmatprep.subr.bf16.mxu0 0
  %2421 = vmatpush2.bf16.msra.mxu0 %v2214
  %2422 = vmatprep.mubr.bf16.mxu0 %v1863
  %2423 = vmatmul.mubr.bf16.gmra.mxu0 %v1862
  %v2424 = vpop.f32.mrf.mxu0
  %v2425 = vadd.f32 %v2385, %v2424
  %v2426 = vpop.f32.mrf.mxu0
  %v2427 = vpop.f32.mrf.mxu0
  %v2428 = vpop.f32.mrf.mxu0
  %2429 = vdwg.mxu0
  %2430 = vmatprep.subr.bf16.mxu0 0
  %2431 = vmatpush1.bf16.msra.mxu0 %v2229
  %2432 = vmatprep.subr.bf16.mxu0 0
  %2433 = vmatpush1.bf16.msra.mxu0 %v2228
  %2434 = vmatprep.subr.bf16.mxu0 0
  %2435 = vmatpush1.bf16.msra.mxu0 %v2227
  %2436 = vmatprep.subr.bf16.mxu0 0
  %2437 = vmatpush1.bf16.msra.mxu0 %v2226
  %2438 = vmatprep.subr.bf16.mxu0 0
  %2439 = vmatpush1.bf16.msra.mxu0 %v2225
  %2440 = vmatprep.subr.bf16.mxu0 0
  %2441 = vmatpush1.bf16.msra.mxu0 %v2224
  %2442 = vmatprep.subr.bf16.mxu0 0
  %2443 = vmatpush1.bf16.msra.mxu0 %v2223
  %2444 = vmatprep.subr.bf16.mxu0 0
  %2445 = vmatpush1.bf16.msra.mxu0 %v2222
  %2446 = vmatprep.subr.bf16.mxu0 0
  %2447 = vmatpush2.bf16.msra.mxu0 %v2237
  %2448 = vmatprep.subr.bf16.mxu0 0
  %2449 = vmatpush2.bf16.msra.mxu0 %v2236
  %2450 = vmatprep.subr.bf16.mxu0 0
  %2451 = vmatpush2.bf16.msra.mxu0 %v2235
  %2452 = vmatprep.subr.bf16.mxu0 0
  %2453 = vmatpush2.bf16.msra.mxu0 %v2234
  %2454 = vmatprep.subr.bf16.mxu0 0
  %2455 = vmatpush2.bf16.msra.mxu0 %v2233
  %2456 = vmatprep.subr.bf16.mxu0 0
  %2457 = vmatpush2.bf16.msra.mxu0 %v2232
  %2458 = vmatprep.subr.bf16.mxu0 0
  %2459 = vmatpush2.bf16.msra.mxu0 %v2231
  %2460 = vmatprep.subr.bf16.mxu0 0
  %2461 = vmatpush2.bf16.msra.mxu0 %v2230
  %2462 = vmatprep.mubr.bf16.mxu0 %v1865
  %2463 = vmatmul.mubr.bf16.gmra.mxu0 %v1864
  %v2464 = vpop.f32.mrf.mxu0
  %v2465 = vadd.f32 %v2425, %v2464
  %v2466 = vpop.f32.mrf.mxu0
  %v2467 = vpop.f32.mrf.mxu0
  %v2468 = vpop.f32.mrf.mxu0
  %2469 = vdwg.mxu0
  %2470 = vmatprep.subr.bf16.mxu0 0
  %2471 = vmatpush1.bf16.msra.mxu0 %v2245
  %2472 = vmatprep.subr.bf16.mxu0 0
  %2473 = vmatpush1.bf16.msra.mxu0 %v2244
  %2474 = vmatprep.subr.bf16.mxu0 0
  %2475 = vmatpush1.bf16.msra.mxu0 %v2243
  %2476 = vmatprep.subr.bf16.mxu0 0
  %2477 = vmatpush1.bf16.msra.mxu0 %v2242
  %2478 = vmatprep.subr.bf16.mxu0 0
  %2479 = vmatpush1.bf16.msra.mxu0 %v2241
  %2480 = vmatprep.subr.bf16.mxu0 0
  %2481 = vmatpush1.bf16.msra.mxu0 %v2240
  %2482 = vmatprep.subr.bf16.mxu0 0
  %2483 = vmatpush1.bf16.msra.mxu0 %v2239
  %2484 = vmatprep.subr.bf16.mxu0 0
  %2485 = vmatpush1.bf16.msra.mxu0 %v2238
  %2486 = vmatprep.subr.bf16.mxu0 0
  %2487 = vmatpush2.bf16.msra.mxu0 %v2253
  %2488 = vmatprep.subr.bf16.mxu0 0
  %2489 = vmatpush2.bf16.msra.mxu0 %v2252
  %2490 = vmatprep.subr.bf16.mxu0 0
  %2491 = vmatpush2.bf16.msra.mxu0 %v2251
  %2492 = vmatprep.subr.bf16.mxu0 0
  %2493 = vmatpush2.bf16.msra.mxu0 %v2250
  %2494 = vmatprep.subr.bf16.mxu0 0
  %2495 = vmatpush2.bf16.msra.mxu0 %v2249
  %2496 = vmatprep.subr.bf16.mxu0 0
  %2497 = vmatpush2.bf16.msra.mxu0 %v2248
  %2498 = vmatprep.subr.bf16.mxu0 0
  %2499 = vmatpush2.bf16.msra.mxu0 %v2247
  %2500 = vmatprep.subr.bf16.mxu0 0
  %2501 = vmatpush2.bf16.msra.mxu0 %v2246
  %2502 = vmatprep.mubr.bf16.mxu0 %v1867
  %2503 = vmatmul.mubr.bf16.gmra.mxu0 %v1866
  %v2504 = vpop.f32.mrf.mxu0
  %v2505 = vadd.f32 %v2465, %v2504
  %v2506 = vpop.f32.mrf.mxu0
  %v2507 = vpop.f32.mrf.mxu0
  %v2508 = vpop.f32.mrf.mxu0
  %2509 = vdwg.mxu0
  %2510 = vmatprep.subr.bf16.mxu0 0
  %2511 = vmatpush1.bf16.msra.mxu0 %v2261
  %2512 = vmatprep.subr.bf16.mxu0 0
  %2513 = vmatpush1.bf16.msra.mxu0 %v2260
  %2514 = vmatprep.subr.bf16.mxu0 0
  %2515 = vmatpush1.bf16.msra.mxu0 %v2259
  %2516 = vmatprep.subr.bf16.mxu0 0
  %2517 = vmatpush1.bf16.msra.mxu0 %v2258
  %2518 = vmatprep.subr.bf16.mxu0 0
  %2519 = vmatpush1.bf16.msra.mxu0 %v2257
  %2520 = vmatprep.subr.bf16.mxu0 0
  %2521 = vmatpush1.bf16.msra.mxu0 %v2256
  %2522 = vmatprep.subr.bf16.mxu0 0
  %2523 = vmatpush1.bf16.msra.mxu0 %v2255
  %2524 = vmatprep.subr.bf16.mxu0 0
  %2525 = vmatpush1.bf16.msra.mxu0 %v2254
  %2526 = vmatprep.subr.bf16.mxu0 0
  %2527 = vmatpush2.bf16.msra.mxu0 %v2269
  %2528 = vmatprep.subr.bf16.mxu0 0
  %2529 = vmatpush2.bf16.msra.mxu0 %v2268
  %2530 = vmatprep.subr.bf16.mxu0 0
  %2531 = vmatpush2.bf16.msra.mxu0 %v2267
  %2532 = vmatprep.subr.bf16.mxu0 0
  %2533 = vmatpush2.bf16.msra.mxu0 %v2266
  %2534 = vmatprep.subr.bf16.mxu0 0
  %2535 = vmatpush2.bf16.msra.mxu0 %v2265
  %2536 = vmatprep.subr.bf16.mxu0 0
  %2537 = vmatpush2.bf16.msra.mxu0 %v2264
  %2538 = vmatprep.subr.bf16.mxu0 0
  %2539 = vmatpush2.bf16.msra.mxu0 %v2263
  %2540 = vmatprep.subr.bf16.mxu0 0
  %2541 = vmatpush2.bf16.msra.mxu0 %v2262
  %2542 = vmatprep.mubr.bf16.mxu0 %v1869
  %2543 = vmatmul.mubr.bf16.gmra.mxu0 %v1868
  %v2544 = vpop.f32.mrf.mxu0
  %v2545 = vadd.f32 %v2505, %v2544
  %v2546 = vpop.f32.mrf.mxu0
  %v2547 = vpop.f32.mrf.mxu0
  %v2548 = vpop.f32.mrf.mxu0
  %2549 = vdwg.mxu0
  %v2550 = vmul.f32 %v2545, 0.0078125
  %v2551 = vpack.c.bf16 %v1805, %v1805
  %v2552 = vpack.c.bf16 %v1811, %v1811
  %v2553 = vpack.c.bf16 %v1817, %v1817
  %v2554 = vpack.c.bf16 %v1823, %v1823
  %v2555 = vpack.c.bf16 %v1829, %v1829
  %v2556 = vpack.c.bf16 %v1835, %v1835
  %v2557 = vpack.c.bf16 %v1841, %v1841
  %v2558 = vpack.c.bf16 %v1847, %v1847
  %v2559 = vpack.c.bf16 %v1853, %v1853
  %v2560 = vpack.c.bf16 %v1859, %v1859
  %2561 = vmatprep.subr.bf16.mxu0 0
  %2562 = vmatpush1.bf16.msra.mxu0 %v2197
  %2563 = vmatprep.subr.bf16.mxu0 0
  %2564 = vmatpush1.bf16.msra.mxu0 %v2196
  %2565 = vmatprep.subr.bf16.mxu0 0
  %2566 = vmatpush1.bf16.msra.mxu0 %v2195
  %2567 = vmatprep.subr.bf16.mxu0 0
  %2568 = vmatpush1.bf16.msra.mxu0 %v2194
  %2569 = vmatprep.subr.bf16.mxu0 0
  %2570 = vmatpush1.bf16.msra.mxu0 %v2193
  %2571 = vmatprep.subr.bf16.mxu0 0
  %2572 = vmatpush1.bf16.msra.mxu0 %v2192
  %2573 = vmatprep.subr.bf16.mxu0 0
  %2574 = vmatpush1.bf16.msra.mxu0 %v2191
  %2575 = vmatprep.subr.bf16.mxu0 0
  %2576 = vmatpush1.bf16.msra.mxu0 %v2190
  %2577 = vmatprep.subr.bf16.mxu0 0
  %2578 = vmatpush2.bf16.msra.mxu0 %v2205
  %2579 = vmatprep.subr.bf16.mxu0 0
  %2580 = vmatpush2.bf16.msra.mxu0 %v2204
  %2581 = vmatprep.subr.bf16.mxu0 0
  %2582 = vmatpush2.bf16.msra.mxu0 %v2203
  %2583 = vmatprep.subr.bf16.mxu0 0
  %2584 = vmatpush2.bf16.msra.mxu0 %v2202
  %2585 = vmatprep.subr.bf16.mxu0 0
  %2586 = vmatpush2.bf16.msra.mxu0 %v2201
  %2587 = vmatprep.subr.bf16.mxu0 0
  %2588 = vmatpush2.bf16.msra.mxu0 %v2200
  %2589 = vmatprep.subr.bf16.mxu0 0
  %2590 = vmatpush2.bf16.msra.mxu0 %v2199
  %2591 = vmatprep.subr.bf16.mxu0 0
  %2592 = vmatpush2.bf16.msra.mxu0 %v2198
  %2593 = vmatprep.mubr.bf16.mxu0 %v2552
  %2594 = vmatmul.mubr.bf16.gmra.mxu0 %v2551
  %v2595 = vpop.f32.mrf.mxu0
  %v2596 = vadd.f32 0.0, %v2595
  %v2597 = vpop.f32.mrf.mxu0
  %v2598 = vpop.f32.mrf.mxu0
  %v2599 = vpop.f32.mrf.mxu0
  %2600 = vdwg.mxu0
  %2601 = vmatprep.subr.bf16.mxu0 0
  %2602 = vmatpush1.bf16.msra.mxu0 %v2213
  %2603 = vmatprep.subr.bf16.mxu0 0
  %2604 = vmatpush1.bf16.msra.mxu0 %v2212
  %2605 = vmatprep.subr.bf16.mxu0 0
  %2606 = vmatpush1.bf16.msra.mxu0 %v2211
  %2607 = vmatprep.subr.bf16.mxu0 0
  %2608 = vmatpush1.bf16.msra.mxu0 %v2210
  %2609 = vmatprep.subr.bf16.mxu0 0
  %2610 = vmatpush1.bf16.msra.mxu0 %v2209
  %2611 = vmatprep.subr.bf16.mxu0 0
  %2612 = vmatpush1.bf16.msra.mxu0 %v2208
  %2613 = vmatprep.subr.bf16.mxu0 0
  %2614 = vmatpush1.bf16.msra.mxu0 %v2207
  %2615 = vmatprep.subr.bf16.mxu0 0
  %2616 = vmatpush1.bf16.msra.mxu0 %v2206
  %2617 = vmatprep.subr.bf16.mxu0 0
  %2618 = vmatpush2.bf16.msra.mxu0 %v2221
  %2619 = vmatprep.subr.bf16.mxu0 0
  %2620 = vmatpush2.bf16.msra.mxu0 %v2220
  %2621 = vmatprep.subr.bf16.mxu0 0
  %2622 = vmatpush2.bf16.msra.mxu0 %v2219
  %2623 = vmatprep.subr.bf16.mxu0 0
  %2624 = vmatpush2.bf16.msra.mxu0 %v2218
  %2625 = vmatprep.subr.bf16.mxu0 0
  %2626 = vmatpush2.bf16.msra.mxu0 %v2217
  %2627 = vmatprep.subr.bf16.mxu0 0
  %2628 = vmatpush2.bf16.msra.mxu0 %v2216
  %2629 = vmatprep.subr.bf16.mxu0 0
  %2630 = vmatpush2.bf16.msra.mxu0 %v2215
  %2631 = vmatprep.subr.bf16.mxu0 0
  %2632 = vmatpush2.bf16.msra.mxu0 %v2214
  %2633 = vmatprep.mubr.bf16.mxu0 %v2554
  %2634 = vmatmul.mubr.bf16.gmra.mxu0 %v2553
  %v2635 = vpop.f32.mrf.mxu0
  %v2636 = vadd.f32 %v2596, %v2635
  %v2637 = vpop.f32.mrf.mxu0
  %v2638 = vpop.f32.mrf.mxu0
  %v2639 = vpop.f32.mrf.mxu0
  %2640 = vdwg.mxu0
  %2641 = vmatprep.subr.bf16.mxu0 0
  %2642 = vmatpush1.bf16.msra.mxu0 %v2229
  %2643 = vmatprep.subr.bf16.mxu0 0
  %2644 = vmatpush1.bf16.msra.mxu0 %v2228
  %2645 = vmatprep.subr.bf16.mxu0 0
  %2646 = vmatpush1.bf16.msra.mxu0 %v2227
  %2647 = vmatprep.subr.bf16.mxu0 0
  %2648 = vmatpush1.bf16.msra.mxu0 %v2226
  %2649 = vmatprep.subr.bf16.mxu0 0
  %2650 = vmatpush1.bf16.msra.mxu0 %v2225
  %2651 = vmatprep.subr.bf16.mxu0 0
  %2652 = vmatpush1.bf16.msra.mxu0 %v2224
  %2653 = vmatprep.subr.bf16.mxu0 0
  %2654 = vmatpush1.bf16.msra.mxu0 %v2223
  %2655 = vmatprep.subr.bf16.mxu0 0
  %2656 = vmatpush1.bf16.msra.mxu0 %v2222
  %2657 = vmatprep.subr.bf16.mxu0 0
  %2658 = vmatpush2.bf16.msra.mxu0 %v2237
  %2659 = vmatprep.subr.bf16.mxu0 0
  %2660 = vmatpush2.bf16.msra.mxu0 %v2236
  %2661 = vmatprep.subr.bf16.mxu0 0
  %2662 = vmatpush2.bf16.msra.mxu0 %v2235
  %2663 = vmatprep.subr.bf16.mxu0 0
  %2664 = vmatpush2.bf16.msra.mxu0 %v2234
  %2665 = vmatprep.subr.bf16.mxu0 0
  %2666 = vmatpush2.bf16.msra.mxu0 %v2233
  %2667 = vmatprep.subr.bf16.mxu0 0
  %2668 = vmatpush2.bf16.msra.mxu0 %v2232
  %2669 = vmatprep.subr.bf16.mxu0 0
  %2670 = vmatpush2.bf16.msra.mxu0 %v2231
  %2671 = vmatprep.subr.bf16.mxu0 0
  %2672 = vmatpush2.bf16.msra.mxu0 %v2230
  %2673 = vmatprep.mubr.bf16.mxu0 %v2556
  %2674 = vmatmul.mubr.bf16.gmra.mxu0 %v2555
  %v2675 = vpop.f32.mrf.mxu0
  %v2676 = vadd.f32 %v2636, %v2675
  %v2677 = vpop.f32.mrf.mxu0
  %v2678 = vpop.f32.mrf.mxu0
  %v2679 = vpop.f32.mrf.mxu0
  %2680 = vdwg.mxu0
  %2681 = vmatprep.subr.bf16.mxu0 0
  %2682 = vmatpush1.bf16.msra.mxu0 %v2245
  %2683 = vmatprep.subr.bf16.mxu0 0
  %2684 = vmatpush1.bf16.msra.mxu0 %v2244
  %2685 = vmatprep.subr.bf16.mxu0 0
  %2686 = vmatpush1.bf16.msra.mxu0 %v2243
  %2687 = vmatprep.subr.bf16.mxu0 0
  %2688 = vmatpush1.bf16.msra.mxu0 %v2242
  %2689 = vmatprep.subr.bf16.mxu0 0
  %2690 = vmatpush1.bf16.msra.mxu0 %v2241
  %2691 = vmatprep.subr.bf16.mxu0 0
  %2692 = vmatpush1.bf16.msra.mxu0 %v2240
  %2693 = vmatprep.subr.bf16.mxu0 0
  %2694 = vmatpush1.bf16.msra.mxu0 %v2239
  %2695 = vmatprep.subr.bf16.mxu0 0
  %2696 = vmatpush1.bf16.msra.mxu0 %v2238
  %2697 = vmatprep.subr.bf16.mxu0 0
  %2698 = vmatpush2.bf16.msra.mxu0 %v2253
  %2699 = vmatprep.subr.bf16.mxu0 0
  %2700 = vmatpush2.bf16.msra.mxu0 %v2252
  %2701 = vmatprep.subr.bf16.mxu0 0
  %2702 = vmatpush2.bf16.msra.mxu0 %v2251
  %2703 = vmatprep.subr.bf16.mxu0 0
  %2704 = vmatpush2.bf16.msra.mxu0 %v2250
  %2705 = vmatprep.subr.bf16.mxu0 0
  %2706 = vmatpush2.bf16.msra.mxu0 %v2249
  %2707 = vmatprep.subr.bf16.mxu0 0
  %2708 = vmatpush2.bf16.msra.mxu0 %v2248
  %2709 = vmatprep.subr.bf16.mxu0 0
  %2710 = vmatpush2.bf16.msra.mxu0 %v2247
  %2711 = vmatprep.subr.bf16.mxu0 0
  %2712 = vmatpush2.bf16.msra.mxu0 %v2246
  %2713 = vmatprep.mubr.bf16.mxu0 %v2558
  %2714 = vmatmul.mubr.bf16.gmra.mxu0 %v2557
  %v2715 = vpop.f32.mrf.mxu0
  %v2716 = vadd.f32 %v2676, %v2715
  %v2717 = vpop.f32.mrf.mxu0
  %v2718 = vpop.f32.mrf.mxu0
  %v2719 = vpop.f32.mrf.mxu0
  %2720 = vdwg.mxu0
  %2721 = vmatprep.subr.bf16.mxu0 0
  %2722 = vmatpush1.bf16.msra.mxu0 %v2261
  %2723 = vmatprep.subr.bf16.mxu0 0
  %2724 = vmatpush1.bf16.msra.mxu0 %v2260
  %2725 = vmatprep.subr.bf16.mxu0 0
  %2726 = vmatpush1.bf16.msra.mxu0 %v2259
  %2727 = vmatprep.subr.bf16.mxu0 0
  %2728 = vmatpush1.bf16.msra.mxu0 %v2258
  %2729 = vmatprep.subr.bf16.mxu0 0
  %2730 = vmatpush1.bf16.msra.mxu0 %v2257
  %2731 = vmatprep.subr.bf16.mxu0 0
  %2732 = vmatpush1.bf16.msra.mxu0 %v2256
  %2733 = vmatprep.subr.bf16.mxu0 0
  %2734 = vmatpush1.bf16.msra.mxu0 %v2255
  %2735 = vmatprep.subr.bf16.mxu0 0
  %2736 = vmatpush1.bf16.msra.mxu0 %v2254
  %2737 = vmatprep.subr.bf16.mxu0 0
  %2738 = vmatpush2.bf16.msra.mxu0 %v2269
  %2739 = vmatprep.subr.bf16.mxu0 0
  %2740 = vmatpush2.bf16.msra.mxu0 %v2268
  %2741 = vmatprep.subr.bf16.mxu0 0
  %2742 = vmatpush2.bf16.msra.mxu0 %v2267
  %2743 = vmatprep.subr.bf16.mxu0 0
  %2744 = vmatpush2.bf16.msra.mxu0 %v2266
  %2745 = vmatprep.subr.bf16.mxu0 0
  %2746 = vmatpush2.bf16.msra.mxu0 %v2265
  %2747 = vmatprep.subr.bf16.mxu0 0
  %2748 = vmatpush2.bf16.msra.mxu0 %v2264
  %2749 = vmatprep.subr.bf16.mxu0 0
  %2750 = vmatpush2.bf16.msra.mxu0 %v2263
  %2751 = vmatprep.subr.bf16.mxu0 0
  %2752 = vmatpush2.bf16.msra.mxu0 %v2262
  %2753 = vmatprep.mubr.bf16.mxu0 %v2560
  %2754 = vmatmul.mubr.bf16.gmra.mxu0 %v2559
  %v2755 = vpop.f32.mrf.mxu0
  %v2756 = vadd.f32 %v2716, %v2755
  %v2757 = vpop.f32.mrf.mxu0
  %v2758 = vpop.f32.mrf.mxu0
  %v2759 = vpop.f32.mrf.mxu0
  %2760 = vdwg.mxu0
  %v2761 = vmul.f32 %v2756, 0.0078125
  %v2762 = vmul.f32 %v2550, %v2550
  %v2763 = vsub.f32 %v2761, %v2762
  %v2764 = vadd.f32 %v2763, 1e-05
  %v2765 = vrsqrt.pop %v2764
  %v2766 = vmul.f32 %v18, %v2765
  %v2767 = vmul.f32 %v2550, %v2766
  %v2768 = vsub.f32 %v19, %v2767
  %v2769 = vpack.c.bf16 %v2766, %v2766
  %v2850 = vunpack.c.l.b16 %v190
  %v2851 = vunpack.c.h.b16 %v190
  %v2852 = vunpack.c.l.b16 %v191
  %v2853 = vunpack.c.h.b16 %v191
  %v2854 = vunpack.c.l.b16 %v192
  %v2855 = vunpack.c.h.b16 %v192
  %v2856 = vunpack.c.l.b16 %v193
  %v2857 = vunpack.c.h.b16 %v193
  %v2858 = vunpack.c.l.b16 %v194
  %v2859 = vunpack.c.h.b16 %v194
  %v2860 = vunpack.c.l.b16 %v195
  %v2861 = vunpack.c.h.b16 %v195
  %v2862 = vunpack.c.l.b16 %v196
  %v2863 = vunpack.c.h.b16 %v196
  %v2864 = vunpack.c.l.b16 %v197
  %v2865 = vunpack.c.h.b16 %v197
  %v2866 = vunpack.c.l.b16 %v198
  %v2867 = vunpack.c.h.b16 %v198
  %v2868 = vunpack.c.l.b16 %v199
  %v2869 = vunpack.c.h.b16 %v199
  %v2870 = vunpack.c.l.b16 %v200
  %v2871 = vunpack.c.h.b16 %v200
  %v2872 = vunpack.c.l.b16 %v201
  %v2873 = vunpack.c.h.b16 %v201
  %v2874 = vunpack.c.l.b16 %v202
  %v2875 = vunpack.c.h.b16 %v202
  %v2876 = vunpack.c.l.b16 %v203
  %v2877 = vunpack.c.h.b16 %v203
  %v2878 = vunpack.c.l.b16 %v204
  %v2879 = vunpack.c.h.b16 %v204
  %v2880 = vunpack.c.l.b16 %v205
  %v2881 = vunpack.c.h.b16 %v205
  %v2882 = vunpack.c.l.b16 %v206
  %v2883 = vunpack.c.h.b16 %v206
  %v2884 = vunpack.c.l.b16 %v207
  %v2885 = vunpack.c.h.b16 %v207
  %v2886 = vunpack.c.l.b16 %v208
  %v2887 = vunpack.c.h.b16 %v208
  %v2888 = vunpack.c.l.b16 %v209
  %v2889 = vunpack.c.h.b16 %v209
  %v2890 = vunpack.c.l.b16 %v210
  %v2891 = vunpack.c.h.b16 %v210
  %v2892 = vunpack.c.l.b16 %v211
  %v2893 = vunpack.c.h.b16 %v211
  %v2894 = vunpack.c.l.b16 %v212
  %v2895 = vunpack.c.h.b16 %v212
  %v2896 = vunpack.c.l.b16 %v213
  %v2897 = vunpack.c.h.b16 %v213
  %v2898 = vunpack.c.l.b16 %v214
  %v2899 = vunpack.c.h.b16 %v214
  %v2900 = vunpack.c.l.b16 %v215
  %v2901 = vunpack.c.h.b16 %v215
  %v2902 = vunpack.c.l.b16 %v216
  %v2903 = vunpack.c.h.b16 %v216
  %v2904 = vunpack.c.l.b16 %v217
  %v2905 = vunpack.c.h.b16 %v217
  %v2906 = vunpack.c.l.b16 %v218
  %v2907 = vunpack.c.h.b16 %v218
  %v2908 = vunpack.c.l.b16 %v219
  %v2909 = vunpack.c.h.b16 %v219
  %v2910 = vunpack.c.l.b16 %v220
  %v2911 = vunpack.c.h.b16 %v220
  %v2912 = vunpack.c.l.b16 %v221
  %v2913 = vunpack.c.h.b16 %v221
  %v2914 = vunpack.c.l.b16 %v222
  %v2915 = vunpack.c.h.b16 %v222
  %v2916 = vunpack.c.l.b16 %v223
  %v2917 = vunpack.c.h.b16 %v223
  %v2918 = vunpack.c.l.b16 %v224
  %v2919 = vunpack.c.h.b16 %v224
  %v2920 = vunpack.c.l.b16 %v225
  %v2921 = vunpack.c.h.b16 %v225
  %v2922 = vunpack.c.l.b16 %v226
  %v2923 = vunpack.c.h.b16 %v226
  %v2924 = vunpack.c.l.b16 %v227
  %v2925 = vunpack.c.h.b16 %v227
  %v2926 = vunpack.c.l.b16 %v228
  %v2927 = vunpack.c.h.b16 %v228
  %v2928 = vunpack.c.l.b16 %v229
  %v2929 = vunpack.c.h.b16 %v229
  %v2930 = vunpack.c.l.b16 %v230
  %v2931 = vunpack.c.h.b16 %v230
  %v2932 = vunpack.c.l.b16 %v231
  %v2933 = vunpack.c.h.b16 %v231
  %v2934 = vunpack.c.l.b16 %v232
  %v2935 = vunpack.c.h.b16 %v232
  %v2936 = vunpack.c.l.b16 %v233
  %v2937 = vunpack.c.h.b16 %v233
  %v2938 = vunpack.c.l.b16 %v234
  %v2939 = vunpack.c.h.b16 %v234
  %v2940 = vunpack.c.l.b16 %v235
  %v2941 = vunpack.c.h.b16 %v235
  %v2942 = vunpack.c.l.b16 %v236
  %v2943 = vunpack.c.h.b16 %v236
  %v2944 = vunpack.c.l.b16 %v237
  %v2945 = vunpack.c.h.b16 %v237
  %v2946 = vunpack.c.l.b16 %v238
  %v2947 = vunpack.c.h.b16 %v238
  %v2948 = vunpack.c.l.b16 %v239
  %v2949 = vunpack.c.h.b16 %v239
  %v2950 = vunpack.c.l.b16 %v240
  %v2951 = vunpack.c.h.b16 %v240
  %v2952 = vunpack.c.l.b16 %v241
  %v2953 = vunpack.c.h.b16 %v241
  %v2954 = vunpack.c.l.b16 %v242
  %v2955 = vunpack.c.h.b16 %v242
  %v2956 = vunpack.c.l.b16 %v243
  %v2957 = vunpack.c.h.b16 %v243
  %v2958 = vunpack.c.l.b16 %v244
  %v2959 = vunpack.c.h.b16 %v244
  %v2960 = vunpack.c.l.b16 %v245
  %v2961 = vunpack.c.h.b16 %v245
  %v2962 = vunpack.c.l.b16 %v246
  %v2963 = vunpack.c.h.b16 %v246
  %v2964 = vunpack.c.l.b16 %v247
  %v2965 = vunpack.c.h.b16 %v247
  %v2966 = vunpack.c.l.b16 %v248
  %v2967 = vunpack.c.h.b16 %v248
  %v2968 = vunpack.c.l.b16 %v249
  %v2969 = vunpack.c.h.b16 %v249
  %v2970 = vunpack.c.l.b16 %v250
  %v2971 = vunpack.c.h.b16 %v250
  %v2972 = vunpack.c.l.b16 %v251
  %v2973 = vunpack.c.h.b16 %v251
  %v2974 = vunpack.c.l.b16 %v252
  %v2975 = vunpack.c.h.b16 %v252
  %v2976 = vunpack.c.l.b16 %v253
  %v2977 = vunpack.c.h.b16 %v253
  %v2978 = vunpack.c.l.b16 %v254
  %v2979 = vunpack.c.h.b16 %v254
  %v2980 = vunpack.c.l.b16 %v255
  %v2981 = vunpack.c.h.b16 %v255
  %v2982 = vunpack.c.l.b16 %v256
  %v2983 = vunpack.c.h.b16 %v256
  %v2984 = vunpack.c.l.b16 %v257
  %v2985 = vunpack.c.h.b16 %v257
  %v2986 = vunpack.c.l.b16 %v258
  %v2987 = vunpack.c.h.b16 %v258
  %v2988 = vunpack.c.l.b16 %v259
  %v2989 = vunpack.c.h.b16 %v259
  %v2990 = vunpack.c.l.b16 %v260
  %v2991 = vunpack.c.h.b16 %v260
  %v2992 = vunpack.c.l.b16 %v261
  %v2993 = vunpack.c.h.b16 %v261
  %v2994 = vunpack.c.l.b16 %v262
  %v2995 = vunpack.c.h.b16 %v262
  %v2996 = vunpack.c.l.b16 %v263
  %v2997 = vunpack.c.h.b16 %v263
  %v2998 = vunpack.c.l.b16 %v264
  %v2999 = vunpack.c.h.b16 %v264
  %v3000 = vunpack.c.l.b16 %v265
  %v3001 = vunpack.c.h.b16 %v265
  %v3002 = vunpack.c.l.b16 %v266
  %v3003 = vunpack.c.h.b16 %v266
  %v3004 = vunpack.c.l.b16 %v267
  %v3005 = vunpack.c.h.b16 %v267
  %v3006 = vunpack.c.l.b16 %v268
  %v3007 = vunpack.c.h.b16 %v268
  %v3008 = vunpack.c.l.b16 %v269
  %v3009 = vunpack.c.h.b16 %v269
  %v3010 = vpack.c.b16 %v2860, %v2850
  %v3011 = vpack.c.b16 %v2861, %v2851
  %v3012 = vpack.c.b16 %v2862, %v2852
  %v3013 = vpack.c.b16 %v2863, %v2853
  %v3014 = vpack.c.b16 %v2864, %v2854
  %v3015 = vpack.c.b16 %v2865, %v2855
  %v3016 = vpack.c.b16 %v2866, %v2856
  %v3017 = vpack.c.b16 %v2867, %v2857
  %v3018 = vpack.c.b16 %v2868, %v2858
  %v3019 = vpack.c.b16 %v2869, %v2859
  %v3020 = vpack.c.b16 %v2880, %v2870
  %v3021 = vpack.c.b16 %v2881, %v2871
  %v3022 = vpack.c.b16 %v2882, %v2872
  %v3023 = vpack.c.b16 %v2883, %v2873
  %v3024 = vpack.c.b16 %v2884, %v2874
  %v3025 = vpack.c.b16 %v2885, %v2875
  %v3026 = vpack.c.b16 %v2886, %v2876
  %v3027 = vpack.c.b16 %v2887, %v2877
  %v3028 = vpack.c.b16 %v2888, %v2878
  %v3029 = vpack.c.b16 %v2889, %v2879
  %v3030 = vpack.c.b16 %v2900, %v2890
  %v3031 = vpack.c.b16 %v2901, %v2891
  %v3032 = vpack.c.b16 %v2902, %v2892
  %v3033 = vpack.c.b16 %v2903, %v2893
  %v3034 = vpack.c.b16 %v2904, %v2894
  %v3035 = vpack.c.b16 %v2905, %v2895
  %v3036 = vpack.c.b16 %v2906, %v2896
  %v3037 = vpack.c.b16 %v2907, %v2897
  %v3038 = vpack.c.b16 %v2908, %v2898
  %v3039 = vpack.c.b16 %v2909, %v2899
  %v3040 = vpack.c.b16 %v2920, %v2910
  %v3041 = vpack.c.b16 %v2921, %v2911
  %v3042 = vpack.c.b16 %v2922, %v2912
  %v3043 = vpack.c.b16 %v2923, %v2913
  %v3044 = vpack.c.b16 %v2924, %v2914
  %v3045 = vpack.c.b16 %v2925, %v2915
  %v3046 = vpack.c.b16 %v2926, %v2916
  %v3047 = vpack.c.b16 %v2927, %v2917
  %v3048 = vpack.c.b16 %v2928, %v2918
  %v3049 = vpack.c.b16 %v2929, %v2919
  %v3050 = vpack.c.b16 %v2940, %v2930
  %v3051 = vpack.c.b16 %v2941, %v2931
  %v3052 = vpack.c.b16 %v2942, %v2932
  %v3053 = vpack.c.b16 %v2943, %v2933
  %v3054 = vpack.c.b16 %v2944, %v2934
  %v3055 = vpack.c.b16 %v2945, %v2935
  %v3056 = vpack.c.b16 %v2946, %v2936
  %v3057 = vpack.c.b16 %v2947, %v2937
  %v3058 = vpack.c.b16 %v2948, %v2938
  %v3059 = vpack.c.b16 %v2949, %v2939
  %v3060 = vpack.c.b16 %v2960, %v2950
  %v3061 = vpack.c.b16 %v2961, %v2951
  %v3062 = vpack.c.b16 %v2962, %v2952
  %v3063 = vpack.c.b16 %v2963, %v2953
  %v3064 = vpack.c.b16 %v2964, %v2954
  %v3065 = vpack.c.b16 %v2965, %v2955
  %v3066 = vpack.c.b16 %v2966, %v2956
  %v3067 = vpack.c.b16 %v2967, %v2957
  %v3068 = vpack.c.b16 %v2968, %v2958
  %v3069 = vpack.c.b16 %v2969, %v2959
  %v3070 = vpack.c.b16 %v2980, %v2970
  %v3071 = vpack.c.b16 %v2981, %v2971
  %v3072 = vpack.c.b16 %v2982, %v2972
  %v3073 = vpack.c.b16 %v2983, %v2973
  %v3074 = vpack.c.b16 %v2984, %v2974
  %v3075 = vpack.c.b16 %v2985, %v2975
  %v3076 = vpack.c.b16 %v2986, %v2976
  %v3077 = vpack.c.b16 %v2987, %v2977
  %v3078 = vpack.c.b16 %v2988, %v2978
  %v3079 = vpack.c.b16 %v2989, %v2979
  %v3080 = vpack.c.b16 %v3000, %v2990
  %v3081 = vpack.c.b16 %v3001, %v2991
  %v3082 = vpack.c.b16 %v3002, %v2992
  %v3083 = vpack.c.b16 %v3003, %v2993
  %v3084 = vpack.c.b16 %v3004, %v2994
  %v3085 = vpack.c.b16 %v3005, %v2995
  %v3086 = vpack.c.b16 %v3006, %v2996
  %v3087 = vpack.c.b16 %v3007, %v2997
  %v3088 = vpack.c.b16 %v3008, %v2998
  %v3089 = vpack.c.b16 %v3009, %v2999
  %3170 = vmatprep.subr.bf16.mxu0 %v3081
  %3171 = vmatpush1.bf16.msra.mxu0 %v3080
  %3172 = vmatprep.subr.bf16.mxu0 %v3071
  %3173 = vmatpush1.bf16.msra.mxu0 %v3070
  %3174 = vmatprep.subr.bf16.mxu0 %v3061
  %3175 = vmatpush1.bf16.msra.mxu0 %v3060
  %3176 = vmatprep.subr.bf16.mxu0 %v3051
  %3177 = vmatpush1.bf16.msra.mxu0 %v3050
  %3178 = vmatprep.subr.bf16.mxu0 %v3041
  %3179 = vmatpush1.bf16.msra.mxu0 %v3040
  %3180 = vmatprep.subr.bf16.mxu0 %v3031
  %3181 = vmatpush1.bf16.msra.mxu0 %v3030
  %3182 = vmatprep.subr.bf16.mxu0 %v3021
  %3183 = vmatpush1.bf16.msra.mxu0 %v3020
  %3184 = vmatprep.subr.bf16.mxu0 %v3011
  %3185 = vmatpush1.bf16.msra.mxu0 %v3010
  %3186 = vmatprep.subr.bf16.mxu0 0
  %3187 = vmatpush2.bf16.msra.mxu0 0
  %3188 = vmatprep.subr.bf16.mxu0 0
  %3189 = vmatpush2.bf16.msra.mxu0 0
  %3190 = vmatprep.subr.bf16.mxu0 0
  %3191 = vmatpush2.bf16.msra.mxu0 0
  %3192 = vmatprep.subr.bf16.mxu0 0
  %3193 = vmatpush2.bf16.msra.mxu0 0
  %3194 = vmatprep.subr.bf16.mxu0 0
  %3195 = vmatpush2.bf16.msra.mxu0 0
  %3196 = vmatprep.subr.bf16.mxu0 0
  %3197 = vmatpush2.bf16.msra.mxu0 0
  %3198 = vmatprep.subr.bf16.mxu0 0
  %3199 = vmatpush2.bf16.msra.mxu0 0
  %3200 = vmatprep.subr.bf16.mxu0 0
  %3201 = vmatpush2.bf16.msra.mxu0 0
  %3202 = vmatprep.mubr.bf16.mxu0 0
  %3203 = vmatmul.mubr.bf16.gmra.mxu0 %v2769
  %v3204 = vpop.f32.mrf.mxu0
  %v3205 = vadd.f32 0.0, %v3204
  %v3206 = vpop.f32.mrf.mxu0
  %v3207 = vadd.f32 0.0, %v3206
  %v3208 = vpop.f32.mrf.mxu0
  %v3209 = vpop.f32.mrf.mxu0
  %3210 = vdwg.mxu0
  %3211 = vmatprep.subr.bf16.mxu0 %v3083
  %3212 = vmatpush1.bf16.msra.mxu0 %v3082
  %3213 = vmatprep.subr.bf16.mxu0 %v3073
  %3214 = vmatpush1.bf16.msra.mxu0 %v3072
  %3215 = vmatprep.subr.bf16.mxu0 %v3063
  %3216 = vmatpush1.bf16.msra.mxu0 %v3062
  %3217 = vmatprep.subr.bf16.mxu0 %v3053
  %3218 = vmatpush1.bf16.msra.mxu0 %v3052
  %3219 = vmatprep.subr.bf16.mxu0 %v3043
  %3220 = vmatpush1.bf16.msra.mxu0 %v3042
  %3221 = vmatprep.subr.bf16.mxu0 %v3033
  %3222 = vmatpush1.bf16.msra.mxu0 %v3032
  %3223 = vmatprep.subr.bf16.mxu0 %v3023
  %3224 = vmatpush1.bf16.msra.mxu0 %v3022
  %3225 = vmatprep.subr.bf16.mxu0 %v3013
  %3226 = vmatpush1.bf16.msra.mxu0 %v3012
  %3227 = vmatprep.subr.bf16.mxu0 0
  %3228 = vmatpush2.bf16.msra.mxu0 0
  %3229 = vmatprep.subr.bf16.mxu0 0
  %3230 = vmatpush2.bf16.msra.mxu0 0
  %3231 = vmatprep.subr.bf16.mxu0 0
  %3232 = vmatpush2.bf16.msra.mxu0 0
  %3233 = vmatprep.subr.bf16.mxu0 0
  %3234 = vmatpush2.bf16.msra.mxu0 0
  %3235 = vmatprep.subr.bf16.mxu0 0
  %3236 = vmatpush2.bf16.msra.mxu0 0
  %3237 = vmatprep.subr.bf16.mxu0 0
  %3238 = vmatpush2.bf16.msra.mxu0 0
  %3239 = vmatprep.subr.bf16.mxu0 0
  %3240 = vmatpush2.bf16.msra.mxu0 0
  %3241 = vmatprep.subr.bf16.mxu0 0
  %3242 = vmatpush2.bf16.msra.mxu0 0
  %3243 = vmatprep.mubr.bf16.mxu0 0
  %3244 = vmatmul.mubr.bf16.gmra.mxu0 %v2769
  %v3245 = vpop.f32.mrf.mxu0
  %v3246 = vadd.f32 0.0, %v3245
  %v3247 = vpop.f32.mrf.mxu0
  %v3248 = vadd.f32 0.0, %v3247
  %v3249 = vpop.f32.mrf.mxu0
  %v3250 = vpop.f32.mrf.mxu0
  %3251 = vdwg.mxu0
  %3252 = vmatprep.subr.bf16.mxu0 %v3085
  %3253 = vmatpush1.bf16.msra.mxu0 %v3084
  %3254 = vmatprep.subr.bf16.mxu0 %v3075
  %3255 = vmatpush1.bf16.msra.mxu0 %v3074
  %3256 = vmatprep.subr.bf16.mxu0 %v3065
  %3257 = vmatpush1.bf16.msra.mxu0 %v3064
  %3258 = vmatprep.subr.bf16.mxu0 %v3055
  %3259 = vmatpush1.bf16.msra.mxu0 %v3054
  %3260 = vmatprep.subr.bf16.mxu0 %v3045
  %3261 = vmatpush1.bf16.msra.mxu0 %v3044
  %3262 = vmatprep.subr.bf16.mxu0 %v3035
  %3263 = vmatpush1.bf16.msra.mxu0 %v3034
  %3264 = vmatprep.subr.bf16.mxu0 %v3025
  %3265 = vmatpush1.bf16.msra.mxu0 %v3024
  %3266 = vmatprep.subr.bf16.mxu0 %v3015
  %3267 = vmatpush1.bf16.msra.mxu0 %v3014
  %3268 = vmatprep.subr.bf16.mxu0 0
  %3269 = vmatpush2.bf16.msra.mxu0 0
  %3270 = vmatprep.subr.bf16.mxu0 0
  %3271 = vmatpush2.bf16.msra.mxu0 0
  %3272 = vmatprep.subr.bf16.mxu0 0
  %3273 = vmatpush2.bf16.msra.mxu0 0
  %3274 = vmatprep.subr.bf16.mxu0 0
  %3275 = vmatpush2.bf16.msra.mxu0 0
  %3276 = vmatprep.subr.bf16.mxu0 0
  %3277 = vmatpush2.bf16.msra.mxu0 0
  %3278 = vmatprep.subr.bf16.mxu0 0
  %3279 = vmatpush2.bf16.msra.mxu0 0
  %3280 = vmatprep.subr.bf16.mxu0 0
  %3281 = vmatpush2.bf16.msra.mxu0 0
  %3282 = vmatprep.subr.bf16.mxu0 0
  %3283 = vmatpush2.bf16.msra.mxu0 0
  %3284 = vmatprep.mubr.bf16.mxu0 0
  %3285 = vmatmul.mubr.bf16.gmra.mxu0 %v2769
  %v3286 = vpop.f32.mrf.mxu0
  %v3287 = vadd.f32 0.0, %v3286
  %v3288 = vpop.f32.mrf.mxu0
  %v3289 = vadd.f32 0.0, %v3288
  %v3290 = vpop.f32.mrf.mxu0
  %v3291 = vpop.f32.mrf.mxu0
  %3292 = vdwg.mxu0
  %3293 = vmatprep.subr.bf16.mxu0 %v3087
  %3294 = vmatpush1.bf16.msra.mxu0 %v3086
  %3295 = vmatprep.subr.bf16.mxu0 %v3077
  %3296 = vmatpush1.bf16.msra.mxu0 %v3076
  %3297 = vmatprep.subr.bf16.mxu0 %v3067
  %3298 = vmatpush1.bf16.msra.mxu0 %v3066
  %3299 = vmatprep.subr.bf16.mxu0 %v3057
  %3300 = vmatpush1.bf16.msra.mxu0 %v3056
  %3301 = vmatprep.subr.bf16.mxu0 %v3047
  %3302 = vmatpush1.bf16.msra.mxu0 %v3046
  %3303 = vmatprep.subr.bf16.mxu0 %v3037
  %3304 = vmatpush1.bf16.msra.mxu0 %v3036
  %3305 = vmatprep.subr.bf16.mxu0 %v3027
  %3306 = vmatpush1.bf16.msra.mxu0 %v3026
  %3307 = vmatprep.subr.bf16.mxu0 %v3017
  %3308 = vmatpush1.bf16.msra.mxu0 %v3016
  %3309 = vmatprep.subr.bf16.mxu0 0
  %3310 = vmatpush2.bf16.msra.mxu0 0
  %3311 = vmatprep.subr.bf16.mxu0 0
  %3312 = vmatpush2.bf16.msra.mxu0 0
  %3313 = vmatprep.subr.bf16.mxu0 0
  %3314 = vmatpush2.bf16.msra.mxu0 0
  %3315 = vmatprep.subr.bf16.mxu0 0
  %3316 = vmatpush2.bf16.msra.mxu0 0
  %3317 = vmatprep.subr.bf16.mxu0 0
  %3318 = vmatpush2.bf16.msra.mxu0 0
  %3319 = vmatprep.subr.bf16.mxu0 0
  %3320 = vmatpush2.bf16.msra.mxu0 0
  %3321 = vmatprep.subr.bf16.mxu0 0
  %3322 = vmatpush2.bf16.msra.mxu0 0
  %3323 = vmatprep.subr.bf16.mxu0 0
  %3324 = vmatpush2.bf16.msra.mxu0 0
  %3325 = vmatprep.mubr.bf16.mxu0 0
  %3326 = vmatmul.mubr.bf16.gmra.mxu0 %v2769
  %v3327 = vpop.f32.mrf.mxu0
  %v3328 = vadd.f32 0.0, %v3327
  %v3329 = vpop.f32.mrf.mxu0
  %v3330 = vadd.f32 0.0, %v3329
  %v3331 = vpop.f32.mrf.mxu0
  %v3332 = vpop.f32.mrf.mxu0
  %3333 = vdwg.mxu0
  %3334 = vmatprep.subr.bf16.mxu0 %v3089
  %3335 = vmatpush1.bf16.msra.mxu0 %v3088
  %3336 = vmatprep.subr.bf16.mxu0 %v3079
  %3337 = vmatpush1.bf16.msra.mxu0 %v3078
  %3338 = vmatprep.subr.bf16.mxu0 %v3069
  %3339 = vmatpush1.bf16.msra.mxu0 %v3068
  %3340 = vmatprep.subr.bf16.mxu0 %v3059
  %3341 = vmatpush1.bf16.msra.mxu0 %v3058
  %3342 = vmatprep.subr.bf16.mxu0 %v3049
  %3343 = vmatpush1.bf16.msra.mxu0 %v3048
  %3344 = vmatprep.subr.bf16.mxu0 %v3039
  %3345 = vmatpush1.bf16.msra.mxu0 %v3038
  %3346 = vmatprep.subr.bf16.mxu0 %v3029
  %3347 = vmatpush1.bf16.msra.mxu0 %v3028
  %3348 = vmatprep.subr.bf16.mxu0 %v3019
  %3349 = vmatpush1.bf16.msra.mxu0 %v3018
  %3350 = vmatprep.subr.bf16.mxu0 0
  %3351 = vmatpush2.bf16.msra.mxu0 0
  %3352 = vmatprep.subr.bf16.mxu0 0
  %3353 = vmatpush2.bf16.msra.mxu0 0
  %3354 = vmatprep.subr.bf16.mxu0 0
  %3355 = vmatpush2.bf16.msra.mxu0 0
  %3356 = vmatprep.subr.bf16.mxu0 0
  %3357 = vmatpush2.bf16.msra.mxu0 0
  %3358 = vmatprep.subr.bf16.mxu0 0
  %3359 = vmatpush2.bf16.msra.mxu0 0
  %3360 = vmatprep.subr.bf16.mxu0 0
  %3361 = vmatpush2.bf16.msra.mxu0 0
  %3362 = vmatprep.subr.bf16.mxu0 0
  %3363 = vmatpush2.bf16.msra.mxu0 0
  %3364 = vmatprep.subr.bf16.mxu0 0
  %3365 = vmatpush2.bf16.msra.mxu0 0
  %3366 = vmatprep.mubr.bf16.mxu0 0
  %3367 = vmatmul.mubr.bf16.gmra.mxu0 %v2769
  %v3368 = vpop.f32.mrf.mxu0
  %v3369 = vadd.f32 0.0, %v3368
  %v3370 = vpop.f32.mrf.mxu0
  %v3371 = vadd.f32 0.0, %v3370
  %v3372 = vpop.f32.mrf.mxu0
  %v3373 = vpop.f32.mrf.mxu0
  %3374 = vdwg.mxu0
  %v3375 = vlaneseq
  %v3376 = vshrl.u32 %v3375, 7
  %v3377 = vsub.s32 0, %v3376
  %v3378 = vrot.slane %v3205, %v3377
  %v3379 = vlaneseq
  %v3380 = vshrl.u32 %v3379, 7
  %v3381 = vsub.s32 0, %v3380
  %v3382 = vrot.slane %v3207, %v3381
  %v3383 = vlaneseq
  %v3384 = vshrl.u32 %v3383, 7
  %v3385 = vsub.s32 0, %v3384
  %v3386 = vrot.slane %v3246, %v3385
  %v3387 = vlaneseq
  %v3388 = vshrl.u32 %v3387, 7
  %v3389 = vsub.s32 0, %v3388
  %v3390 = vrot.slane %v3248, %v3389
  %v3391 = vlaneseq
  %v3392 = vshrl.u32 %v3391, 7
  %v3393 = vsub.s32 0, %v3392
  %v3394 = vrot.slane %v3287, %v3393
  %v3395 = vlaneseq
  %v3396 = vshrl.u32 %v3395, 7
  %v3397 = vsub.s32 0, %v3396
  %v3398 = vrot.slane %v3289, %v3397
  %v3399 = vlaneseq
  %v3400 = vshrl.u32 %v3399, 7
  %v3401 = vsub.s32 0, %v3400
  %v3402 = vrot.slane %v3328, %v3401
  %v3403 = vlaneseq
  %v3404 = vshrl.u32 %v3403, 7
  %v3405 = vsub.s32 0, %v3404
  %v3406 = vrot.slane %v3330, %v3405
  %v3407 = vlaneseq
  %v3408 = vshrl.u32 %v3407, 7
  %v3409 = vsub.s32 0, %v3408
  %v3410 = vrot.slane %v3369, %v3409
  %v3411 = vlaneseq
  %v3412 = vshrl.u32 %v3411, 7
  %v3413 = vsub.s32 0, %v3412
  %v3414 = vrot.slane %v3371, %v3413
  %v3415 = vmul.f32 %v1560, %v3378
  %v3416 = vmul.f32 %v1562, %v3382
  %v3417 = vmul.f32 %v1601, %v3386
  %v3418 = vmul.f32 %v1603, %v3390
  %v3419 = vmul.f32 %v1642, %v3394
  %v3420 = vmul.f32 %v1644, %v3398
  %v3421 = vmul.f32 %v1683, %v3402
  %v3422 = vmul.f32 %v1685, %v3406
  %v3423 = vmul.f32 %v1724, %v3410
  %v3424 = vmul.f32 %v1726, %v3414
  %v3425 = vpack.c.bf16 %v2768, %v2768
  %3426 = vmatprep.subr.bf16.mxu0 %v3081
  %3427 = vmatpush1.bf16.msra.mxu0 %v3080
  %3428 = vmatprep.subr.bf16.mxu0 %v3071
  %3429 = vmatpush1.bf16.msra.mxu0 %v3070
  %3430 = vmatprep.subr.bf16.mxu0 %v3061
  %3431 = vmatpush1.bf16.msra.mxu0 %v3060
  %3432 = vmatprep.subr.bf16.mxu0 %v3051
  %3433 = vmatpush1.bf16.msra.mxu0 %v3050
  %3434 = vmatprep.subr.bf16.mxu0 %v3041
  %3435 = vmatpush1.bf16.msra.mxu0 %v3040
  %3436 = vmatprep.subr.bf16.mxu0 %v3031
  %3437 = vmatpush1.bf16.msra.mxu0 %v3030
  %3438 = vmatprep.subr.bf16.mxu0 %v3021
  %3439 = vmatpush1.bf16.msra.mxu0 %v3020
  %3440 = vmatprep.subr.bf16.mxu0 %v3011
  %3441 = vmatpush1.bf16.msra.mxu0 %v3010
  %3442 = vmatprep.subr.bf16.mxu0 0
  %3443 = vmatpush2.bf16.msra.mxu0 0
  %3444 = vmatprep.subr.bf16.mxu0 0
  %3445 = vmatpush2.bf16.msra.mxu0 0
  %3446 = vmatprep.subr.bf16.mxu0 0
  %3447 = vmatpush2.bf16.msra.mxu0 0
  %3448 = vmatprep.subr.bf16.mxu0 0
  %3449 = vmatpush2.bf16.msra.mxu0 0
  %3450 = vmatprep.subr.bf16.mxu0 0
  %3451 = vmatpush2.bf16.msra.mxu0 0
  %3452 = vmatprep.subr.bf16.mxu0 0
  %3453 = vmatpush2.bf16.msra.mxu0 0
  %3454 = vmatprep.subr.bf16.mxu0 0
  %3455 = vmatpush2.bf16.msra.mxu0 0
  %3456 = vmatprep.subr.bf16.mxu0 0
  %3457 = vmatpush2.bf16.msra.mxu0 0
  %3458 = vmatprep.mubr.bf16.mxu0 0
  %3459 = vmatmul.mubr.bf16.gmra.mxu0 %v3425
  %v3460 = vpop.f32.mrf.mxu0
  %v3461 = vadd.f32 0.0, %v3460
  %v3462 = vpop.f32.mrf.mxu0
  %v3463 = vadd.f32 0.0, %v3462
  %v3464 = vpop.f32.mrf.mxu0
  %v3465 = vpop.f32.mrf.mxu0
  %3466 = vdwg.mxu0
  %3467 = vmatprep.subr.bf16.mxu0 %v3083
  %3468 = vmatpush1.bf16.msra.mxu0 %v3082
  %3469 = vmatprep.subr.bf16.mxu0 %v3073
  %3470 = vmatpush1.bf16.msra.mxu0 %v3072
  %3471 = vmatprep.subr.bf16.mxu0 %v3063
  %3472 = vmatpush1.bf16.msra.mxu0 %v3062
  %3473 = vmatprep.subr.bf16.mxu0 %v3053
  %3474 = vmatpush1.bf16.msra.mxu0 %v3052
  %3475 = vmatprep.subr.bf16.mxu0 %v3043
  %3476 = vmatpush1.bf16.msra.mxu0 %v3042
  %3477 = vmatprep.subr.bf16.mxu0 %v3033
  %3478 = vmatpush1.bf16.msra.mxu0 %v3032
  %3479 = vmatprep.subr.bf16.mxu0 %v3023
  %3480 = vmatpush1.bf16.msra.mxu0 %v3022
  %3481 = vmatprep.subr.bf16.mxu0 %v3013
  %3482 = vmatpush1.bf16.msra.mxu0 %v3012
  %3483 = vmatprep.subr.bf16.mxu0 0
  %3484 = vmatpush2.bf16.msra.mxu0 0
  %3485 = vmatprep.subr.bf16.mxu0 0
  %3486 = vmatpush2.bf16.msra.mxu0 0
  %3487 = vmatprep.subr.bf16.mxu0 0
  %3488 = vmatpush2.bf16.msra.mxu0 0
  %3489 = vmatprep.subr.bf16.mxu0 0
  %3490 = vmatpush2.bf16.msra.mxu0 0
  %3491 = vmatprep.subr.bf16.mxu0 0
  %3492 = vmatpush2.bf16.msra.mxu0 0
  %3493 = vmatprep.subr.bf16.mxu0 0
  %3494 = vmatpush2.bf16.msra.mxu0 0
  %3495 = vmatprep.subr.bf16.mxu0 0
  %3496 = vmatpush2.bf16.msra.mxu0 0
  %3497 = vmatprep.subr.bf16.mxu0 0
  %3498 = vmatpush2.bf16.msra.mxu0 0
  %3499 = vmatprep.mubr.bf16.mxu0 0
  %3500 = vmatmul.mubr.bf16.gmra.mxu0 %v3425
  %v3501 = vpop.f32.mrf.mxu0
  %v3502 = vadd.f32 0.0, %v3501
  %v3503 = vpop.f32.mrf.mxu0
  %v3504 = vadd.f32 0.0, %v3503
  %v3505 = vpop.f32.mrf.mxu0
  %v3506 = vpop.f32.mrf.mxu0
  %3507 = vdwg.mxu0
  %3508 = vmatprep.subr.bf16.mxu0 %v3085
  %3509 = vmatpush1.bf16.msra.mxu0 %v3084
  %3510 = vmatprep.subr.bf16.mxu0 %v3075
  %3511 = vmatpush1.bf16.msra.mxu0 %v3074
  %3512 = vmatprep.subr.bf16.mxu0 %v3065
  %3513 = vmatpush1.bf16.msra.mxu0 %v3064
  %3514 = vmatprep.subr.bf16.mxu0 %v3055
  %3515 = vmatpush1.bf16.msra.mxu0 %v3054
  %3516 = vmatprep.subr.bf16.mxu0 %v3045
  %3517 = vmatpush1.bf16.msra.mxu0 %v3044
  %3518 = vmatprep.subr.bf16.mxu0 %v3035
  %3519 = vmatpush1.bf16.msra.mxu0 %v3034
  %3520 = vmatprep.subr.bf16.mxu0 %v3025
  %3521 = vmatpush1.bf16.msra.mxu0 %v3024
  %3522 = vmatprep.subr.bf16.mxu0 %v3015
  %3523 = vmatpush1.bf16.msra.mxu0 %v3014
  %3524 = vmatprep.subr.bf16.mxu0 0
  %3525 = vmatpush2.bf16.msra.mxu0 0
  %3526 = vmatprep.subr.bf16.mxu0 0
  %3527 = vmatpush2.bf16.msra.mxu0 0
  %3528 = vmatprep.subr.bf16.mxu0 0
  %3529 = vmatpush2.bf16.msra.mxu0 0
  %3530 = vmatprep.subr.bf16.mxu0 0
  %3531 = vmatpush2.bf16.msra.mxu0 0
  %3532 = vmatprep.subr.bf16.mxu0 0
  %3533 = vmatpush2.bf16.msra.mxu0 0
  %3534 = vmatprep.subr.bf16.mxu0 0
  %3535 = vmatpush2.bf16.msra.mxu0 0
  %3536 = vmatprep.subr.bf16.mxu0 0
  %3537 = vmatpush2.bf16.msra.mxu0 0
  %3538 = vmatprep.subr.bf16.mxu0 0
  %3539 = vmatpush2.bf16.msra.mxu0 0
  %3540 = vmatprep.mubr.bf16.mxu0 0
  %3541 = vmatmul.mubr.bf16.gmra.mxu0 %v3425
  %v3542 = vpop.f32.mrf.mxu0
  %v3543 = vadd.f32 0.0, %v3542
  %v3544 = vpop.f32.mrf.mxu0
  %v3545 = vadd.f32 0.0, %v3544
  %v3546 = vpop.f32.mrf.mxu0
  %v3547 = vpop.f32.mrf.mxu0
  %3548 = vdwg.mxu0
  %3549 = vmatprep.subr.bf16.mxu0 %v3087
  %3550 = vmatpush1.bf16.msra.mxu0 %v3086
  %3551 = vmatprep.subr.bf16.mxu0 %v3077
  %3552 = vmatpush1.bf16.msra.mxu0 %v3076
  %3553 = vmatprep.subr.bf16.mxu0 %v3067
  %3554 = vmatpush1.bf16.msra.mxu0 %v3066
  %3555 = vmatprep.subr.bf16.mxu0 %v3057
  %3556 = vmatpush1.bf16.msra.mxu0 %v3056
  %3557 = vmatprep.subr.bf16.mxu0 %v3047
  %3558 = vmatpush1.bf16.msra.mxu0 %v3046
  %3559 = vmatprep.subr.bf16.mxu0 %v3037
  %3560 = vmatpush1.bf16.msra.mxu0 %v3036
  %3561 = vmatprep.subr.bf16.mxu0 %v3027
  %3562 = vmatpush1.bf16.msra.mxu0 %v3026
  %3563 = vmatprep.subr.bf16.mxu0 %v3017
  %3564 = vmatpush1.bf16.msra.mxu0 %v3016
  %3565 = vmatprep.subr.bf16.mxu0 0
  %3566 = vmatpush2.bf16.msra.mxu0 0
  %3567 = vmatprep.subr.bf16.mxu0 0
  %3568 = vmatpush2.bf16.msra.mxu0 0
  %3569 = vmatprep.subr.bf16.mxu0 0
  %3570 = vmatpush2.bf16.msra.mxu0 0
  %3571 = vmatprep.subr.bf16.mxu0 0
  %3572 = vmatpush2.bf16.msra.mxu0 0
  %3573 = vmatprep.subr.bf16.mxu0 0
  %3574 = vmatpush2.bf16.msra.mxu0 0
  %3575 = vmatprep.subr.bf16.mxu0 0
  %3576 = vmatpush2.bf16.msra.mxu0 0
  %3577 = vmatprep.subr.bf16.mxu0 0
  %3578 = vmatpush2.bf16.msra.mxu0 0
  %3579 = vmatprep.subr.bf16.mxu0 0
  %3580 = vmatpush2.bf16.msra.mxu0 0
  %3581 = vmatprep.mubr.bf16.mxu0 0
  %3582 = vmatmul.mubr.bf16.gmra.mxu0 %v3425
  %v3583 = vpop.f32.mrf.mxu0
  %v3584 = vadd.f32 0.0, %v3583
  %v3585 = vpop.f32.mrf.mxu0
  %v3586 = vadd.f32 0.0, %v3585
  %v3587 = vpop.f32.mrf.mxu0
  %v3588 = vpop.f32.mrf.mxu0
  %3589 = vdwg.mxu0
  %3590 = vmatprep.subr.bf16.mxu0 %v3089
  %3591 = vmatpush1.bf16.msra.mxu0 %v3088
  %3592 = vmatprep.subr.bf16.mxu0 %v3079
  %3593 = vmatpush1.bf16.msra.mxu0 %v3078
  %3594 = vmatprep.subr.bf16.mxu0 %v3069
  %3595 = vmatpush1.bf16.msra.mxu0 %v3068
  %3596 = vmatprep.subr.bf16.mxu0 %v3059
  %3597 = vmatpush1.bf16.msra.mxu0 %v3058
  %3598 = vmatprep.subr.bf16.mxu0 %v3049
  %3599 = vmatpush1.bf16.msra.mxu0 %v3048
  %3600 = vmatprep.subr.bf16.mxu0 %v3039
  %3601 = vmatpush1.bf16.msra.mxu0 %v3038
  %3602 = vmatprep.subr.bf16.mxu0 %v3029
  %3603 = vmatpush1.bf16.msra.mxu0 %v3028
  %3604 = vmatprep.subr.bf16.mxu0 %v3019
  %3605 = vmatpush1.bf16.msra.mxu0 %v3018
  %3606 = vmatprep.subr.bf16.mxu0 0
  %3607 = vmatpush2.bf16.msra.mxu0 0
  %3608 = vmatprep.subr.bf16.mxu0 0
  %3609 = vmatpush2.bf16.msra.mxu0 0
  %3610 = vmatprep.subr.bf16.mxu0 0
  %3611 = vmatpush2.bf16.msra.mxu0 0
  %3612 = vmatprep.subr.bf16.mxu0 0
  %3613 = vmatpush2.bf16.msra.mxu0 0
  %3614 = vmatprep.subr.bf16.mxu0 0
  %3615 = vmatpush2.bf16.msra.mxu0 0
  %3616 = vmatprep.subr.bf16.mxu0 0
  %3617 = vmatpush2.bf16.msra.mxu0 0
  %3618 = vmatprep.subr.bf16.mxu0 0
  %3619 = vmatpush2.bf16.msra.mxu0 0
  %3620 = vmatprep.subr.bf16.mxu0 0
  %3621 = vmatpush2.bf16.msra.mxu0 0
  %3622 = vmatprep.mubr.bf16.mxu0 0
  %3623 = vmatmul.mubr.bf16.gmra.mxu0 %v3425
  %v3624 = vpop.f32.mrf.mxu0
  %v3625 = vadd.f32 0.0, %v3624
  %v3626 = vpop.f32.mrf.mxu0
  %v3627 = vadd.f32 0.0, %v3626
  %v3628 = vpop.f32.mrf.mxu0
  %v3629 = vpop.f32.mrf.mxu0
  %3630 = vdwg.mxu0
  %v3631 = vlaneseq
  %v3632 = vshrl.u32 %v3631, 7
  %v3633 = vsub.s32 0, %v3632
  %v3634 = vrot.slane %v3461, %v3633
  %v3635 = vlaneseq
  %v3636 = vshrl.u32 %v3635, 7
  %v3637 = vsub.s32 0, %v3636
  %v3638 = vrot.slane %v3463, %v3637
  %v3639 = vlaneseq
  %v3640 = vshrl.u32 %v3639, 7
  %v3641 = vsub.s32 0, %v3640
  %v3642 = vrot.slane %v3502, %v3641
  %v3643 = vlaneseq
  %v3644 = vshrl.u32 %v3643, 7
  %v3645 = vsub.s32 0, %v3644
  %v3646 = vrot.slane %v3504, %v3645
  %v3647 = vlaneseq
  %v3648 = vshrl.u32 %v3647, 7
  %v3649 = vsub.s32 0, %v3648
  %v3650 = vrot.slane %v3543, %v3649
  %v3651 = vlaneseq
  %v3652 = vshrl.u32 %v3651, 7
  %v3653 = vsub.s32 0, %v3652
  %v3654 = vrot.slane %v3545, %v3653
  %v3655 = vlaneseq
  %v3656 = vshrl.u32 %v3655, 7
  %v3657 = vsub.s32 0, %v3656
  %v3658 = vrot.slane %v3584, %v3657
  %v3659 = vlaneseq
  %v3660 = vshrl.u32 %v3659, 7
  %v3661 = vsub.s32 0, %v3660
  %v3662 = vrot.slane %v3586, %v3661
  %v3663 = vlaneseq
  %v3664 = vshrl.u32 %v3663, 7
  %v3665 = vsub.s32 0, %v3664
  %v3666 = vrot.slane %v3625, %v3665
  %v3667 = vlaneseq
  %v3668 = vshrl.u32 %v3667, 7
  %v3669 = vsub.s32 0, %v3668
  %v3670 = vrot.slane %v3627, %v3669
  %v3671 = vadd.f32 %v3415, %v3634
  %v3672 = vadd.f32 %v3416, %v3638
  %v3673 = vadd.f32 %v3417, %v3642
  %v3674 = vadd.f32 %v3418, %v3646
  %v3675 = vadd.f32 %v3419, %v3650
  %v3676 = vadd.f32 %v3420, %v3654
  %v3677 = vadd.f32 %v3421, %v3658
  %v3678 = vadd.f32 %v3422, %v3662
  %v3679 = vadd.f32 %v3423, %v3666
  %v3680 = vadd.f32 %v3424, %v3670
  %vm3681 = vcmp.ge.f32.partialorder %v3671, 0.0
  %vm3682 = vcmp.ge.f32.partialorder %v3672, 0.0
  %vm3683 = vcmp.ge.f32.partialorder %v3673, 0.0
  %vm3684 = vcmp.ge.f32.partialorder %v3674, 0.0
  %vm3685 = vcmp.ge.f32.partialorder %v3675, 0.0
  %vm3686 = vcmp.ge.f32.partialorder %v3676, 0.0
  %vm3687 = vcmp.ge.f32.partialorder %v3677, 0.0
  %vm3688 = vcmp.ge.f32.partialorder %v3678, 0.0
  %vm3689 = vcmp.ge.f32.partialorder %v3679, 0.0
  %vm3690 = vcmp.ge.f32.partialorder %v3680, 0.0
  %v3691 = vmul.f32 %v3671, 0.01
  %v3692 = vmul.f32 %v3672, 0.01
  %v3693 = vmul.f32 %v3673, 0.01
  %v3694 = vmul.f32 %v3674, 0.01
  %v3695 = vmul.f32 %v3675, 0.01
  %v3696 = vmul.f32 %v3676, 0.01
  %v3697 = vmul.f32 %v3677, 0.01
  %v3698 = vmul.f32 %v3678, 0.01
  %v3699 = vmul.f32 %v3679, 0.01
  %v3700 = vmul.f32 %v3680, 0.01
  %v3701 = vsel %vm3681, %v3671, %v3691
  %v3702 = vsel %vm3682, %v3672, %v3692
  %v3703 = vsel %vm3683, %v3673, %v3693
  %v3704 = vsel %vm3684, %v3674, %v3694
  %v3705 = vsel %vm3685, %v3675, %v3695
  %v3706 = vsel %vm3686, %v3676, %v3696
  %v3707 = vsel %vm3687, %v3677, %v3697
  %v3708 = vsel %vm3688, %v3678, %v3698
  %v3709 = vsel %vm3689, %v3679, %v3699
  %v3710 = vsel %vm3690, %v3680, %v3700
  %v3711 = vpack.c.bf16 %v3701, %v3701
  %v3712 = vpack.c.bf16 %v3702, %v3702
  %v3713 = vpack.c.bf16 %v3703, %v3703
  %v3714 = vpack.c.bf16 %v3704, %v3704
  %v3715 = vpack.c.bf16 %v3705, %v3705
  %v3716 = vpack.c.bf16 %v3706, %v3706
  %v3717 = vpack.c.bf16 %v3707, %v3707
  %v3718 = vpack.c.bf16 %v3708, %v3708
  %v3719 = vpack.c.bf16 %v3709, %v3709
  %v3720 = vpack.c.bf16 %v3710, %v3710
  %v3721 = vlaneseq
  %v3722 = vshrl.u32 %v3721, 7
  %v3723 = vsub.s32 0, %v3722
  %v3724 = vrot.slane %v20, %v3723
  %v3885 = vunpack.c.l.b16 %v430
  %v3886 = vunpack.c.l.b16 %v431
  %v3887 = vunpack.c.l.b16 %v432
  %v3888 = vunpack.c.l.b16 %v433
  %v3889 = vunpack.c.l.b16 %v434
  %v3890 = vunpack.c.l.b16 %v435
  %v3891 = vunpack.c.l.b16 %v436
  %v3892 = vunpack.c.l.b16 %v437
  %v3893 = vunpack.c.l.b16 %v438
  %v3894 = vunpack.c.l.b16 %v439
  %v3895 = vunpack.c.l.b16 %v440
  %v3896 = vunpack.c.l.b16 %v441
  %v3897 = vunpack.c.l.b16 %v442
  %v3898 = vunpack.c.l.b16 %v443
  %v3899 = vunpack.c.l.b16 %v444
  %v3900 = vunpack.c.l.b16 %v445
  %v3901 = vunpack.c.l.b16 %v446
  %v3902 = vunpack.c.l.b16 %v447
  %v3903 = vunpack.c.l.b16 %v448
  %v3904 = vunpack.c.l.b16 %v449
  %v3905 = vunpack.c.l.b16 %v450
  %v3906 = vunpack.c.l.b16 %v451
  %v3907 = vunpack.c.l.b16 %v452
  %v3908 = vunpack.c.l.b16 %v453
  %v3909 = vunpack.c.l.b16 %v454
  %v3910 = vunpack.c.l.b16 %v455
  %v3911 = vunpack.c.l.b16 %v456
  %v3912 = vunpack.c.l.b16 %v457
  %v3913 = vunpack.c.l.b16 %v458
  %v3914 = vunpack.c.l.b16 %v459
  %v3915 = vunpack.c.l.b16 %v460
  %v3916 = vunpack.c.l.b16 %v461
  %v3917 = vunpack.c.l.b16 %v462
  %v3918 = vunpack.c.l.b16 %v463
  %v3919 = vunpack.c.l.b16 %v464
  %v3920 = vunpack.c.l.b16 %v465
  %v3921 = vunpack.c.l.b16 %v466
  %v3922 = vunpack.c.l.b16 %v467
  %v3923 = vunpack.c.l.b16 %v468
  %v3924 = vunpack.c.l.b16 %v469
  %v3925 = vunpack.c.l.b16 %v470
  %v3926 = vunpack.c.l.b16 %v471
  %v3927 = vunpack.c.l.b16 %v472
  %v3928 = vunpack.c.l.b16 %v473
  %v3929 = vunpack.c.l.b16 %v474
  %v3930 = vunpack.c.l.b16 %v475
  %v3931 = vunpack.c.l.b16 %v476
  %v3932 = vunpack.c.l.b16 %v477
  %v3933 = vunpack.c.l.b16 %v478
  %v3934 = vunpack.c.l.b16 %v479
  %v3935 = vunpack.c.l.b16 %v480
  %v3936 = vunpack.c.l.b16 %v481
  %v3937 = vunpack.c.l.b16 %v482
  %v3938 = vunpack.c.l.b16 %v483
  %v3939 = vunpack.c.l.b16 %v484
  %v3940 = vunpack.c.l.b16 %v485
  %v3941 = vunpack.c.l.b16 %v486
  %v3942 = vunpack.c.l.b16 %v487
  %v3943 = vunpack.c.l.b16 %v488
  %v3944 = vunpack.c.l.b16 %v489
  %v3945 = vunpack.c.l.b16 %v490
  %v3946 = vunpack.c.l.b16 %v491
  %v3947 = vunpack.c.l.b16 %v492
  %v3948 = vunpack.c.l.b16 %v493
  %v3949 = vunpack.c.l.b16 %v494
  %v3950 = vunpack.c.l.b16 %v495
  %v3951 = vunpack.c.l.b16 %v496
  %v3952 = vunpack.c.l.b16 %v497
  %v3953 = vunpack.c.l.b16 %v498
  %v3954 = vunpack.c.l.b16 %v499
  %v3955 = vunpack.c.l.b16 %v500
  %v3956 = vunpack.c.l.b16 %v501
  %v3957 = vunpack.c.l.b16 %v502
  %v3958 = vunpack.c.l.b16 %v503
  %v3959 = vunpack.c.l.b16 %v504
  %v3960 = vunpack.c.l.b16 %v505
  %v3961 = vunpack.c.l.b16 %v506
  %v3962 = vunpack.c.l.b16 %v507
  %v3963 = vunpack.c.l.b16 %v508
  %v3964 = vunpack.c.l.b16 %v509
  %v3965 = vunpack.c.l.b16 %v510
  %v3966 = vunpack.c.l.b16 %v511
  %v3967 = vunpack.c.l.b16 %v512
  %v3968 = vunpack.c.l.b16 %v513
  %v3969 = vunpack.c.l.b16 %v514
  %v3970 = vunpack.c.l.b16 %v515
  %v3971 = vunpack.c.l.b16 %v516
  %v3972 = vunpack.c.l.b16 %v517
  %v3973 = vunpack.c.l.b16 %v518
  %v3974 = vunpack.c.l.b16 %v519
  %v3975 = vunpack.c.l.b16 %v520
  %v3976 = vunpack.c.l.b16 %v521
  %v3977 = vunpack.c.l.b16 %v522
  %v3978 = vunpack.c.l.b16 %v523
  %v3979 = vunpack.c.l.b16 %v524
  %v3980 = vunpack.c.l.b16 %v525
  %v3981 = vunpack.c.l.b16 %v526
  %v3982 = vunpack.c.l.b16 %v527
  %v3983 = vunpack.c.l.b16 %v528
  %v3984 = vunpack.c.l.b16 %v529
  %v3985 = vunpack.c.l.b16 %v530
  %v3986 = vunpack.c.l.b16 %v531
  %v3987 = vunpack.c.l.b16 %v532
  %v3988 = vunpack.c.l.b16 %v533
  %v3989 = vunpack.c.l.b16 %v534
  %v3990 = vunpack.c.l.b16 %v535
  %v3991 = vunpack.c.l.b16 %v536
  %v3992 = vunpack.c.l.b16 %v537
  %v3993 = vunpack.c.l.b16 %v538
  %v3994 = vunpack.c.l.b16 %v539
  %v3995 = vunpack.c.l.b16 %v540
  %v3996 = vunpack.c.l.b16 %v541
  %v3997 = vunpack.c.l.b16 %v542
  %v3998 = vunpack.c.l.b16 %v543
  %v3999 = vunpack.c.l.b16 %v544
  %v4000 = vunpack.c.l.b16 %v545
  %v4001 = vunpack.c.l.b16 %v546
  %v4002 = vunpack.c.l.b16 %v547
  %v4003 = vunpack.c.l.b16 %v548
  %v4004 = vunpack.c.l.b16 %v549
  %v4005 = vunpack.c.l.b16 %v550
  %v4006 = vunpack.c.l.b16 %v551
  %v4007 = vunpack.c.l.b16 %v552
  %v4008 = vunpack.c.l.b16 %v553
  %v4009 = vunpack.c.l.b16 %v554
  %v4010 = vunpack.c.l.b16 %v555
  %v4011 = vunpack.c.l.b16 %v556
  %v4012 = vunpack.c.l.b16 %v557
  %v4013 = vunpack.c.l.b16 %v558
  %v4014 = vunpack.c.l.b16 %v559
  %v4015 = vunpack.c.l.b16 %v560
  %v4016 = vunpack.c.l.b16 %v561
  %v4017 = vunpack.c.l.b16 %v562
  %v4018 = vunpack.c.l.b16 %v563
  %v4019 = vunpack.c.l.b16 %v564
  %v4020 = vunpack.c.l.b16 %v565
  %v4021 = vunpack.c.l.b16 %v566
  %v4022 = vunpack.c.l.b16 %v567
  %v4023 = vunpack.c.l.b16 %v568
  %v4024 = vunpack.c.l.b16 %v569
  %v4025 = vunpack.c.l.b16 %v570
  %v4026 = vunpack.c.l.b16 %v571
  %v4027 = vunpack.c.l.b16 %v572
  %v4028 = vunpack.c.l.b16 %v573
  %v4029 = vunpack.c.l.b16 %v574
  %v4030 = vunpack.c.l.b16 %v575
  %v4031 = vunpack.c.l.b16 %v576
  %v4032 = vunpack.c.l.b16 %v577
  %v4033 = vunpack.c.l.b16 %v578
  %v4034 = vunpack.c.l.b16 %v579
  %v4035 = vunpack.c.l.b16 %v580
  %v4036 = vunpack.c.l.b16 %v581
  %v4037 = vunpack.c.l.b16 %v582
  %v4038 = vunpack.c.l.b16 %v583
  %v4039 = vunpack.c.l.b16 %v584
  %v4040 = vunpack.c.l.b16 %v585
  %v4041 = vunpack.c.l.b16 %v586
  %v4042 = vunpack.c.l.b16 %v587
  %v4043 = vunpack.c.l.b16 %v588
  %v4044 = vunpack.c.l.b16 %v589
  %v4045 = vpack.c.b16 %v3886, %v3885
  %v4046 = vpack.c.b16 %v3888, %v3887
  %v4047 = vpack.c.b16 %v3890, %v3889
  %v4048 = vpack.c.b16 %v3892, %v3891
  %v4049 = vpack.c.b16 %v3894, %v3893
  %v4050 = vpack.c.b16 %v3896, %v3895
  %v4051 = vpack.c.b16 %v3898, %v3897
  %v4052 = vpack.c.b16 %v3900, %v3899
  %v4053 = vpack.c.b16 %v3902, %v3901
  %v4054 = vpack.c.b16 %v3904, %v3903
  %v4055 = vpack.c.b16 %v3906, %v3905
  %v4056 = vpack.c.b16 %v3908, %v3907
  %v4057 = vpack.c.b16 %v3910, %v3909
  %v4058 = vpack.c.b16 %v3912, %v3911
  %v4059 = vpack.c.b16 %v3914, %v3913
  %v4060 = vpack.c.b16 %v3916, %v3915
  %v4061 = vpack.c.b16 %v3918, %v3917
  %v4062 = vpack.c.b16 %v3920, %v3919
  %v4063 = vpack.c.b16 %v3922, %v3921
  %v4064 = vpack.c.b16 %v3924, %v3923
  %v4065 = vpack.c.b16 %v3926, %v3925
  %v4066 = vpack.c.b16 %v3928, %v3927
  %v4067 = vpack.c.b16 %v3930, %v3929
  %v4068 = vpack.c.b16 %v3932, %v3931
  %v4069 = vpack.c.b16 %v3934, %v3933
  %v4070 = vpack.c.b16 %v3936, %v3935
  %v4071 = vpack.c.b16 %v3938, %v3937
  %v4072 = vpack.c.b16 %v3940, %v3939
  %v4073 = vpack.c.b16 %v3942, %v3941
  %v4074 = vpack.c.b16 %v3944, %v3943
  %v4075 = vpack.c.b16 %v3946, %v3945
  %v4076 = vpack.c.b16 %v3948, %v3947
  %v4077 = vpack.c.b16 %v3950, %v3949
  %v4078 = vpack.c.b16 %v3952, %v3951
  %v4079 = vpack.c.b16 %v3954, %v3953
  %v4080 = vpack.c.b16 %v3956, %v3955
  %v4081 = vpack.c.b16 %v3958, %v3957
  %v4082 = vpack.c.b16 %v3960, %v3959
  %v4083 = vpack.c.b16 %v3962, %v3961
  %v4084 = vpack.c.b16 %v3964, %v3963
  %v4085 = vpack.c.b16 %v3966, %v3965
  %v4086 = vpack.c.b16 %v3968, %v3967
  %v4087 = vpack.c.b16 %v3970, %v3969
  %v4088 = vpack.c.b16 %v3972, %v3971
  %v4089 = vpack.c.b16 %v3974, %v3973
  %v4090 = vpack.c.b16 %v3976, %v3975
  %v4091 = vpack.c.b16 %v3978, %v3977
  %v4092 = vpack.c.b16 %v3980, %v3979
  %v4093 = vpack.c.b16 %v3982, %v3981
  %v4094 = vpack.c.b16 %v3984, %v3983
  %v4095 = vpack.c.b16 %v3986, %v3985
  %v4096 = vpack.c.b16 %v3988, %v3987
  %v4097 = vpack.c.b16 %v3990, %v3989
  %v4098 = vpack.c.b16 %v3992, %v3991
  %v4099 = vpack.c.b16 %v3994, %v3993
  %v4100 = vpack.c.b16 %v3996, %v3995
  %v4101 = vpack.c.b16 %v3998, %v3997
  %v4102 = vpack.c.b16 %v4000, %v3999
  %v4103 = vpack.c.b16 %v4002, %v4001
  %v4104 = vpack.c.b16 %v4004, %v4003
  %v4105 = vpack.c.b16 %v4006, %v4005
  %v4106 = vpack.c.b16 %v4008, %v4007
  %v4107 = vpack.c.b16 %v4010, %v4009
  %v4108 = vpack.c.b16 %v4012, %v4011
  %v4109 = vpack.c.b16 %v4014, %v4013
  %v4110 = vpack.c.b16 %v4016, %v4015
  %v4111 = vpack.c.b16 %v4018, %v4017
  %v4112 = vpack.c.b16 %v4020, %v4019
  %v4113 = vpack.c.b16 %v4022, %v4021
  %v4114 = vpack.c.b16 %v4024, %v4023
  %v4115 = vpack.c.b16 %v4026, %v4025
  %v4116 = vpack.c.b16 %v4028, %v4027
  %v4117 = vpack.c.b16 %v4030, %v4029
  %v4118 = vpack.c.b16 %v4032, %v4031
  %v4119 = vpack.c.b16 %v4034, %v4033
  %v4120 = vpack.c.b16 %v4036, %v4035
  %v4121 = vpack.c.b16 %v4038, %v4037
  %v4122 = vpack.c.b16 %v4040, %v4039
  %v4123 = vpack.c.b16 %v4042, %v4041
  %v4124 = vpack.c.b16 %v4044, %v4043
  %4205 = vmatprep.subr.bf16.mxu0 0
  %4206 = vmatpush1.bf16.msra.mxu0 %v4052
  %4207 = vmatprep.subr.bf16.mxu0 0
  %4208 = vmatpush1.bf16.msra.mxu0 %v4051
  %4209 = vmatprep.subr.bf16.mxu0 0
  %4210 = vmatpush1.bf16.msra.mxu0 %v4050
  %4211 = vmatprep.subr.bf16.mxu0 0
  %4212 = vmatpush1.bf16.msra.mxu0 %v4049
  %4213 = vmatprep.subr.bf16.mxu0 0
  %4214 = vmatpush1.bf16.msra.mxu0 %v4048
  %4215 = vmatprep.subr.bf16.mxu0 0
  %4216 = vmatpush1.bf16.msra.mxu0 %v4047
  %4217 = vmatprep.subr.bf16.mxu0 0
  %4218 = vmatpush1.bf16.msra.mxu0 %v4046
  %4219 = vmatprep.subr.bf16.mxu0 0
  %4220 = vmatpush1.bf16.msra.mxu0 %v4045
  %4221 = vmatprep.subr.bf16.mxu0 0
  %4222 = vmatpush2.bf16.msra.mxu0 %v4060
  %4223 = vmatprep.subr.bf16.mxu0 0
  %4224 = vmatpush2.bf16.msra.mxu0 %v4059
  %4225 = vmatprep.subr.bf16.mxu0 0
  %4226 = vmatpush2.bf16.msra.mxu0 %v4058
  %4227 = vmatprep.subr.bf16.mxu0 0
  %4228 = vmatpush2.bf16.msra.mxu0 %v4057
  %4229 = vmatprep.subr.bf16.mxu0 0
  %4230 = vmatpush2.bf16.msra.mxu0 %v4056
  %4231 = vmatprep.subr.bf16.mxu0 0
  %4232 = vmatpush2.bf16.msra.mxu0 %v4055
  %4233 = vmatprep.subr.bf16.mxu0 0
  %4234 = vmatpush2.bf16.msra.mxu0 %v4054
  %4235 = vmatprep.subr.bf16.mxu0 0
  %4236 = vmatpush2.bf16.msra.mxu0 %v4053
  %4237 = vmatprep.mubr.bf16.mxu0 %v3712
  %4238 = vmatmul.mubr.bf16.gmra.mxu0 %v3711
  %v4239 = vpop.f32.mrf.mxu0
  %v4240 = vadd.f32 %v3724, %v4239
  %v4241 = vpop.f32.mrf.mxu0
  %v4242 = vpop.f32.mrf.mxu0
  %v4243 = vpop.f32.mrf.mxu0
  %4244 = vdwg.mxu0
  %4245 = vmatprep.subr.bf16.mxu0 0
  %4246 = vmatpush1.bf16.msra.mxu0 %v4068
  %4247 = vmatprep.subr.bf16.mxu0 0
  %4248 = vmatpush1.bf16.msra.mxu0 %v4067
  %4249 = vmatprep.subr.bf16.mxu0 0
  %4250 = vmatpush1.bf16.msra.mxu0 %v4066
  %4251 = vmatprep.subr.bf16.mxu0 0
  %4252 = vmatpush1.bf16.msra.mxu0 %v4065
  %4253 = vmatprep.subr.bf16.mxu0 0
  %4254 = vmatpush1.bf16.msra.mxu0 %v4064
  %4255 = vmatprep.subr.bf16.mxu0 0
  %4256 = vmatpush1.bf16.msra.mxu0 %v4063
  %4257 = vmatprep.subr.bf16.mxu0 0
  %4258 = vmatpush1.bf16.msra.mxu0 %v4062
  %4259 = vmatprep.subr.bf16.mxu0 0
  %4260 = vmatpush1.bf16.msra.mxu0 %v4061
  %4261 = vmatprep.subr.bf16.mxu0 0
  %4262 = vmatpush2.bf16.msra.mxu0 %v4076
  %4263 = vmatprep.subr.bf16.mxu0 0
  %4264 = vmatpush2.bf16.msra.mxu0 %v4075
  %4265 = vmatprep.subr.bf16.mxu0 0
  %4266 = vmatpush2.bf16.msra.mxu0 %v4074
  %4267 = vmatprep.subr.bf16.mxu0 0
  %4268 = vmatpush2.bf16.msra.mxu0 %v4073
  %4269 = vmatprep.subr.bf16.mxu0 0
  %4270 = vmatpush2.bf16.msra.mxu0 %v4072
  %4271 = vmatprep.subr.bf16.mxu0 0
  %4272 = vmatpush2.bf16.msra.mxu0 %v4071
  %4273 = vmatprep.subr.bf16.mxu0 0
  %4274 = vmatpush2.bf16.msra.mxu0 %v4070
  %4275 = vmatprep.subr.bf16.mxu0 0
  %4276 = vmatpush2.bf16.msra.mxu0 %v4069
  %4277 = vmatprep.mubr.bf16.mxu0 %v3714
  %4278 = vmatmul.mubr.bf16.gmra.mxu0 %v3713
  %v4279 = vpop.f32.mrf.mxu0
  %v4280 = vadd.f32 %v4240, %v4279
  %v4281 = vpop.f32.mrf.mxu0
  %v4282 = vpop.f32.mrf.mxu0
  %v4283 = vpop.f32.mrf.mxu0
  %4284 = vdwg.mxu0
  %4285 = vmatprep.subr.bf16.mxu0 0
  %4286 = vmatpush1.bf16.msra.mxu0 %v4084
  %4287 = vmatprep.subr.bf16.mxu0 0
  %4288 = vmatpush1.bf16.msra.mxu0 %v4083
  %4289 = vmatprep.subr.bf16.mxu0 0
  %4290 = vmatpush1.bf16.msra.mxu0 %v4082
  %4291 = vmatprep.subr.bf16.mxu0 0
  %4292 = vmatpush1.bf16.msra.mxu0 %v4081
  %4293 = vmatprep.subr.bf16.mxu0 0
  %4294 = vmatpush1.bf16.msra.mxu0 %v4080
  %4295 = vmatprep.subr.bf16.mxu0 0
  %4296 = vmatpush1.bf16.msra.mxu0 %v4079
  %4297 = vmatprep.subr.bf16.mxu0 0
  %4298 = vmatpush1.bf16.msra.mxu0 %v4078
  %4299 = vmatprep.subr.bf16.mxu0 0
  %4300 = vmatpush1.bf16.msra.mxu0 %v4077
  %4301 = vmatprep.subr.bf16.mxu0 0
  %4302 = vmatpush2.bf16.msra.mxu0 %v4092
  %4303 = vmatprep.subr.bf16.mxu0 0
  %4304 = vmatpush2.bf16.msra.mxu0 %v4091
  %4305 = vmatprep.subr.bf16.mxu0 0
  %4306 = vmatpush2.bf16.msra.mxu0 %v4090
  %4307 = vmatprep.subr.bf16.mxu0 0
  %4308 = vmatpush2.bf16.msra.mxu0 %v4089
  %4309 = vmatprep.subr.bf16.mxu0 0
  %4310 = vmatpush2.bf16.msra.mxu0 %v4088
  %4311 = vmatprep.subr.bf16.mxu0 0
  %4312 = vmatpush2.bf16.msra.mxu0 %v4087
  %4313 = vmatprep.subr.bf16.mxu0 0
  %4314 = vmatpush2.bf16.msra.mxu0 %v4086
  %4315 = vmatprep.subr.bf16.mxu0 0
  %4316 = vmatpush2.bf16.msra.mxu0 %v4085
  %4317 = vmatprep.mubr.bf16.mxu0 %v3716
  %4318 = vmatmul.mubr.bf16.gmra.mxu0 %v3715
  %v4319 = vpop.f32.mrf.mxu0
  %v4320 = vadd.f32 %v4280, %v4319
  %v4321 = vpop.f32.mrf.mxu0
  %v4322 = vpop.f32.mrf.mxu0
  %v4323 = vpop.f32.mrf.mxu0
  %4324 = vdwg.mxu0
  %4325 = vmatprep.subr.bf16.mxu0 0
  %4326 = vmatpush1.bf16.msra.mxu0 %v4100
  %4327 = vmatprep.subr.bf16.mxu0 0
  %4328 = vmatpush1.bf16.msra.mxu0 %v4099
  %4329 = vmatprep.subr.bf16.mxu0 0
  %4330 = vmatpush1.bf16.msra.mxu0 %v4098
  %4331 = vmatprep.subr.bf16.mxu0 0
  %4332 = vmatpush1.bf16.msra.mxu0 %v4097
  %4333 = vmatprep.subr.bf16.mxu0 0
  %4334 = vmatpush1.bf16.msra.mxu0 %v4096
  %4335 = vmatprep.subr.bf16.mxu0 0
  %4336 = vmatpush1.bf16.msra.mxu0 %v4095
  %4337 = vmatprep.subr.bf16.mxu0 0
  %4338 = vmatpush1.bf16.msra.mxu0 %v4094
  %4339 = vmatprep.subr.bf16.mxu0 0
  %4340 = vmatpush1.bf16.msra.mxu0 %v4093
  %4341 = vmatprep.subr.bf16.mxu0 0
  %4342 = vmatpush2.bf16.msra.mxu0 %v4108
  %4343 = vmatprep.subr.bf16.mxu0 0
  %4344 = vmatpush2.bf16.msra.mxu0 %v4107
  %4345 = vmatprep.subr.bf16.mxu0 0
  %4346 = vmatpush2.bf16.msra.mxu0 %v4106
  %4347 = vmatprep.subr.bf16.mxu0 0
  %4348 = vmatpush2.bf16.msra.mxu0 %v4105
  %4349 = vmatprep.subr.bf16.mxu0 0
  %4350 = vmatpush2.bf16.msra.mxu0 %v4104
  %4351 = vmatprep.subr.bf16.mxu0 0
  %4352 = vmatpush2.bf16.msra.mxu0 %v4103
  %4353 = vmatprep.subr.bf16.mxu0 0
  %4354 = vmatpush2.bf16.msra.mxu0 %v4102
  %4355 = vmatprep.subr.bf16.mxu0 0
  %4356 = vmatpush2.bf16.msra.mxu0 %v4101
  %4357 = vmatprep.mubr.bf16.mxu0 %v3718
  %4358 = vmatmul.mubr.bf16.gmra.mxu0 %v3717
  %v4359 = vpop.f32.mrf.mxu0
  %v4360 = vadd.f32 %v4320, %v4359
  %v4361 = vpop.f32.mrf.mxu0
  %v4362 = vpop.f32.mrf.mxu0
  %v4363 = vpop.f32.mrf.mxu0
  %4364 = vdwg.mxu0
  %4365 = vmatprep.subr.bf16.mxu0 0
  %4366 = vmatpush1.bf16.msra.mxu0 %v4116
  %4367 = vmatprep.subr.bf16.mxu0 0
  %4368 = vmatpush1.bf16.msra.mxu0 %v4115
  %4369 = vmatprep.subr.bf16.mxu0 0
  %4370 = vmatpush1.bf16.msra.mxu0 %v4114
  %4371 = vmatprep.subr.bf16.mxu0 0
  %4372 = vmatpush1.bf16.msra.mxu0 %v4113
  %4373 = vmatprep.subr.bf16.mxu0 0
  %4374 = vmatpush1.bf16.msra.mxu0 %v4112
  %4375 = vmatprep.subr.bf16.mxu0 0
  %4376 = vmatpush1.bf16.msra.mxu0 %v4111
  %4377 = vmatprep.subr.bf16.mxu0 0
  %4378 = vmatpush1.bf16.msra.mxu0 %v4110
  %4379 = vmatprep.subr.bf16.mxu0 0
  %4380 = vmatpush1.bf16.msra.mxu0 %v4109
  %4381 = vmatprep.subr.bf16.mxu0 0
  %4382 = vmatpush2.bf16.msra.mxu0 %v4124
  %4383 = vmatprep.subr.bf16.mxu0 0
  %4384 = vmatpush2.bf16.msra.mxu0 %v4123
  %4385 = vmatprep.subr.bf16.mxu0 0
  %4386 = vmatpush2.bf16.msra.mxu0 %v4122
  %4387 = vmatprep.subr.bf16.mxu0 0
  %4388 = vmatpush2.bf16.msra.mxu0 %v4121
  %4389 = vmatprep.subr.bf16.mxu0 0
  %4390 = vmatpush2.bf16.msra.mxu0 %v4120
  %4391 = vmatprep.subr.bf16.mxu0 0
  %4392 = vmatpush2.bf16.msra.mxu0 %v4119
  %4393 = vmatprep.subr.bf16.mxu0 0
  %4394 = vmatpush2.bf16.msra.mxu0 %v4118
  %4395 = vmatprep.subr.bf16.mxu0 0
  %4396 = vmatpush2.bf16.msra.mxu0 %v4117
  %4397 = vmatprep.mubr.bf16.mxu0 %v3720
  %4398 = vmatmul.mubr.bf16.gmra.mxu0 %v3719
  %v4399 = vpop.f32.mrf.mxu0
  %v4400 = vadd.f32 %v4360, %v4399
  %v4401 = vpop.f32.mrf.mxu0
  %v4402 = vpop.f32.mrf.mxu0
  %v4403 = vpop.f32.mrf.mxu0
  %4404 = vdwg.mxu0
  %v4405 = vsub.f32 %v720, %v721
  %v4406 = vmul.f32 %v720, %v720
  %v4407 = vpack.c.bf16 %v4406, %v4406
  %v4424 = vunpack.c.l.b16 %v590
  %v4425 = vunpack.c.l.b16 %v591
  %v4426 = vunpack.c.l.b16 %v592
  %v4427 = vunpack.c.l.b16 %v593
  %v4428 = vunpack.c.l.b16 %v594
  %v4429 = vunpack.c.l.b16 %v595
  %v4430 = vunpack.c.l.b16 %v596
  %v4431 = vunpack.c.l.b16 %v597
  %v4432 = vunpack.c.l.b16 %v598
  %v4433 = vunpack.c.l.b16 %v599
  %v4434 = vunpack.c.l.b16 %v600
  %v4435 = vunpack.c.l.b16 %v601
  %v4436 = vunpack.c.l.b16 %v602
  %v4437 = vunpack.c.l.b16 %v603
  %v4438 = vunpack.c.l.b16 %v604
  %v4439 = vunpack.c.l.b16 %v605
  %v4440 = vpack.c.b16 %v4425, %v4424
  %v4441 = vpack.c.b16 %v4427, %v4426
  %v4442 = vpack.c.b16 %v4429, %v4428
  %v4443 = vpack.c.b16 %v4431, %v4430
  %v4444 = vpack.c.b16 %v4433, %v4432
  %v4445 = vpack.c.b16 %v4435, %v4434
  %v4446 = vpack.c.b16 %v4437, %v4436
  %v4447 = vpack.c.b16 %v4439, %v4438
  %4456 = vmatprep.subr.bf16.mxu0 0
  %4457 = vmatpush1.bf16.msra.mxu0 %v4447
  %4458 = vmatprep.subr.bf16.mxu0 0
  %4459 = vmatpush1.bf16.msra.mxu0 %v4446
  %4460 = vmatprep.subr.bf16.mxu0 0
  %4461 = vmatpush1.bf16.msra.mxu0 %v4445
  %4462 = vmatprep.subr.bf16.mxu0 0
  %4463 = vmatpush1.bf16.msra.mxu0 %v4444
  %4464 = vmatprep.subr.bf16.mxu0 0
  %4465 = vmatpush1.bf16.msra.mxu0 %v4443
  %4466 = vmatprep.subr.bf16.mxu0 0
  %4467 = vmatpush1.bf16.msra.mxu0 %v4442
  %4468 = vmatprep.subr.bf16.mxu0 0
  %4469 = vmatpush1.bf16.msra.mxu0 %v4441
  %4470 = vmatprep.subr.bf16.mxu0 0
  %4471 = vmatpush1.bf16.msra.mxu0 %v4440
  %4472 = vmatprep.subr.bf16.mxu0 0
  %4473 = vmatpush2.bf16.msra.mxu0 0
  %4474 = vmatprep.subr.bf16.mxu0 0
  %4475 = vmatpush2.bf16.msra.mxu0 0
  %4476 = vmatprep.subr.bf16.mxu0 0
  %4477 = vmatpush2.bf16.msra.mxu0 0
  %4478 = vmatprep.subr.bf16.mxu0 0
  %4479 = vmatpush2.bf16.msra.mxu0 0
  %4480 = vmatprep.subr.bf16.mxu0 0
  %4481 = vmatpush2.bf16.msra.mxu0 0
  %4482 = vmatprep.subr.bf16.mxu0 0
  %4483 = vmatpush2.bf16.msra.mxu0 0
  %4484 = vmatprep.subr.bf16.mxu0 0
  %4485 = vmatpush2.bf16.msra.mxu0 0
  %4486 = vmatprep.subr.bf16.mxu0 0
  %4487 = vmatpush2.bf16.msra.mxu0 0
  %4488 = vmatprep.mubr.bf16.mxu0 0
  %4489 = vmatmul.mubr.bf16.gmra.mxu0 %v4407
  %v4490 = vpop.f32.mrf.mxu0
  %v4491 = vadd.f32 0.0, %v4490
  %v4492 = vpop.f32.mrf.mxu0
  %v4493 = vpop.f32.mrf.mxu0
  %v4494 = vpop.f32.mrf.mxu0
  %4495 = vdwg.mxu0
  %v4496 = vmul.f32 %v721, %v721
  %v4497 = vpack.c.bf16 %v4496, %v4496
  %4498 = vmatprep.subr.bf16.mxu0 0
  %4499 = vmatpush1.bf16.msra.mxu0 %v4447
  %4500 = vmatprep.subr.bf16.mxu0 0
  %4501 = vmatpush1.bf16.msra.mxu0 %v4446
  %4502 = vmatprep.subr.bf16.mxu0 0
  %4503 = vmatpush1.bf16.msra.mxu0 %v4445
  %4504 = vmatprep.subr.bf16.mxu0 0
  %4505 = vmatpush1.bf16.msra.mxu0 %v4444
  %4506 = vmatprep.subr.bf16.mxu0 0
  %4507 = vmatpush1.bf16.msra.mxu0 %v4443
  %4508 = vmatprep.subr.bf16.mxu0 0
  %4509 = vmatpush1.bf16.msra.mxu0 %v4442
  %4510 = vmatprep.subr.bf16.mxu0 0
  %4511 = vmatpush1.bf16.msra.mxu0 %v4441
  %4512 = vmatprep.subr.bf16.mxu0 0
  %4513 = vmatpush1.bf16.msra.mxu0 %v4440
  %4514 = vmatprep.subr.bf16.mxu0 0
  %4515 = vmatpush2.bf16.msra.mxu0 0
  %4516 = vmatprep.subr.bf16.mxu0 0
  %4517 = vmatpush2.bf16.msra.mxu0 0
  %4518 = vmatprep.subr.bf16.mxu0 0
  %4519 = vmatpush2.bf16.msra.mxu0 0
  %4520 = vmatprep.subr.bf16.mxu0 0
  %4521 = vmatpush2.bf16.msra.mxu0 0
  %4522 = vmatprep.subr.bf16.mxu0 0
  %4523 = vmatpush2.bf16.msra.mxu0 0
  %4524 = vmatprep.subr.bf16.mxu0 0
  %4525 = vmatpush2.bf16.msra.mxu0 0
  %4526 = vmatprep.subr.bf16.mxu0 0
  %4527 = vmatpush2.bf16.msra.mxu0 0
  %4528 = vmatprep.subr.bf16.mxu0 0
  %4529 = vmatpush2.bf16.msra.mxu0 0
  %4530 = vmatprep.mubr.bf16.mxu0 0
  %4531 = vmatmul.mubr.bf16.gmra.mxu0 %v4497
  %v4532 = vpop.f32.mrf.mxu0
  %v4533 = vadd.f32 0.0, %v4532
  %v4534 = vpop.f32.mrf.mxu0
  %v4535 = vpop.f32.mrf.mxu0
  %v4536 = vpop.f32.mrf.mxu0
  %4537 = vdwg.mxu0
  %v4538 = vmul.f32 %v721, %v720
  %v4539 = vmul.f32 %v4533, %v4491
  %v4540 = vlaneseq
  %v4541 = vshrl.u32 %v4540, 7
  %v4542 = vsub.s32 0, %v4541
  %v4543 = vrot.slane %v29, %v4542
  %v4544 = vadd.f32 %v4539, %v4543
  %v4545 = vrsqrt.pop %v4544
  %v4546 = vmul.f32 %v4538, %v4545
  %v4547 = vpack.c.bf16 %v4400, %v4400
  %v4548 = vpack.c.bf16 %v4405, %v4405
  %v4565 = vunpack.c.l.b16 %v622
  %v4566 = vunpack.c.l.b16 %v623
  %v4567 = vunpack.c.l.b16 %v624
  %v4568 = vunpack.c.l.b16 %v625
  %v4569 = vunpack.c.l.b16 %v626
  %v4570 = vunpack.c.l.b16 %v627
  %v4571 = vunpack.c.l.b16 %v628
  %v4572 = vunpack.c.l.b16 %v629
  %v4573 = vunpack.c.l.b16 %v630
  %v4574 = vunpack.c.l.b16 %v631
  %v4575 = vunpack.c.l.b16 %v632
  %v4576 = vunpack.c.l.b16 %v633
  %v4577 = vunpack.c.l.b16 %v634
  %v4578 = vunpack.c.l.b16 %v635
  %v4579 = vunpack.c.l.b16 %v636
  %v4580 = vunpack.c.l.b16 %v637
  %v4581 = vpack.c.b16 %v4566, %v4565
  %v4582 = vpack.c.b16 %v4568, %v4567
  %v4583 = vpack.c.b16 %v4570, %v4569
  %v4584 = vpack.c.b16 %v4572, %v4571
  %v4585 = vpack.c.b16 %v4574, %v4573
  %v4586 = vpack.c.b16 %v4576, %v4575
  %v4587 = vpack.c.b16 %v4578, %v4577
  %v4588 = vpack.c.b16 %v4580, %v4579
  %4597 = vmatprep.subr.bf16.mxu0 0
  %4598 = vmatpush1.bf16.msra.mxu0 %v4588
  %4599 = vmatprep.subr.bf16.mxu0 0
  %4600 = vmatpush1.bf16.msra.mxu0 %v4587
  %4601 = vmatprep.subr.bf16.mxu0 0
  %4602 = vmatpush1.bf16.msra.mxu0 %v4586
  %4603 = vmatprep.subr.bf16.mxu0 0
  %4604 = vmatpush1.bf16.msra.mxu0 %v4585
  %4605 = vmatprep.subr.bf16.mxu0 0
  %4606 = vmatpush1.bf16.msra.mxu0 %v4584
  %4607 = vmatprep.subr.bf16.mxu0 0
  %4608 = vmatpush1.bf16.msra.mxu0 %v4583
  %4609 = vmatprep.subr.bf16.mxu0 0
  %4610 = vmatpush1.bf16.msra.mxu0 %v4582
  %4611 = vmatprep.subr.bf16.mxu0 0
  %4612 = vmatpush1.bf16.msra.mxu0 %v4581
  %4613 = vmatprep.subr.bf16.mxu0 0
  %4614 = vmatpush2.bf16.msra.mxu0 0
  %4615 = vmatprep.subr.bf16.mxu0 0
  %4616 = vmatpush2.bf16.msra.mxu0 0
  %4617 = vmatprep.subr.bf16.mxu0 0
  %4618 = vmatpush2.bf16.msra.mxu0 0
  %4619 = vmatprep.subr.bf16.mxu0 0
  %4620 = vmatpush2.bf16.msra.mxu0 0
  %4621 = vmatprep.subr.bf16.mxu0 0
  %4622 = vmatpush2.bf16.msra.mxu0 0
  %4623 = vmatprep.subr.bf16.mxu0 0
  %4624 = vmatpush2.bf16.msra.mxu0 0
  %4625 = vmatprep.subr.bf16.mxu0 0
  %4626 = vmatpush2.bf16.msra.mxu0 0
  %4627 = vmatprep.subr.bf16.mxu0 0
  %4628 = vmatpush2.bf16.msra.mxu0 0
  %4629 = vmatprep.mubr.bf16.mxu0 0
  %4630 = vmatmul.mubr.bf16.gmra.mxu0 %v4548
  %v4631 = vpop.f32.mrf.mxu0
  %v4632 = vadd.f32 0.0, %v4631
  %v4633 = vpop.f32.mrf.mxu0
  %v4634 = vpop.f32.mrf.mxu0
  %v4635 = vpop.f32.mrf.mxu0
  %4636 = vdwg.mxu0
  %v4653 = vunpack.c.l.b16 %v606
  %v4654 = vunpack.c.l.b16 %v607
  %v4655 = vunpack.c.l.b16 %v608
  %v4656 = vunpack.c.l.b16 %v609
  %v4657 = vunpack.c.l.b16 %v610
  %v4658 = vunpack.c.l.b16 %v611
  %v4659 = vunpack.c.l.b16 %v612
  %v4660 = vunpack.c.l.b16 %v613
  %v4661 = vunpack.c.l.b16 %v614
  %v4662 = vunpack.c.l.b16 %v615
  %v4663 = vunpack.c.l.b16 %v616
  %v4664 = vunpack.c.l.b16 %v617
  %v4665 = vunpack.c.l.b16 %v618
  %v4666 = vunpack.c.l.b16 %v619
  %v4667 = vunpack.c.l.b16 %v620
  %v4668 = vunpack.c.l.b16 %v621
  %v4669 = vpack.c.b16 %v4654, %v4653
  %v4670 = vpack.c.b16 %v4656, %v4655
  %v4671 = vpack.c.b16 %v4658, %v4657
  %v4672 = vpack.c.b16 %v4660, %v4659
  %v4673 = vpack.c.b16 %v4662, %v4661
  %v4674 = vpack.c.b16 %v4664, %v4663
  %v4675 = vpack.c.b16 %v4666, %v4665
  %v4676 = vpack.c.b16 %v4668, %v4667
  %4685 = vmatprep.subr.bf16.mxu0 0
  %4686 = vmatpush1.bf16.msra.mxu0 %v4676
  %4687 = vmatprep.subr.bf16.mxu0 0
  %4688 = vmatpush1.bf16.msra.mxu0 %v4675
  %4689 = vmatprep.subr.bf16.mxu0 0
  %4690 = vmatpush1.bf16.msra.mxu0 %v4674
  %4691 = vmatprep.subr.bf16.mxu0 0
  %4692 = vmatpush1.bf16.msra.mxu0 %v4673
  %4693 = vmatprep.subr.bf16.mxu0 0
  %4694 = vmatpush1.bf16.msra.mxu0 %v4672
  %4695 = vmatprep.subr.bf16.mxu0 0
  %4696 = vmatpush1.bf16.msra.mxu0 %v4671
  %4697 = vmatprep.subr.bf16.mxu0 0
  %4698 = vmatpush1.bf16.msra.mxu0 %v4670
  %4699 = vmatprep.subr.bf16.mxu0 0
  %4700 = vmatpush1.bf16.msra.mxu0 %v4669
  %4701 = vmatprep.subr.bf16.mxu0 0
  %4702 = vmatpush2.bf16.msra.mxu0 0
  %4703 = vmatprep.subr.bf16.mxu0 0
  %4704 = vmatpush2.bf16.msra.mxu0 0
  %4705 = vmatprep.subr.bf16.mxu0 0
  %4706 = vmatpush2.bf16.msra.mxu0 0
  %4707 = vmatprep.subr.bf16.mxu0 0
  %4708 = vmatpush2.bf16.msra.mxu0 0
  %4709 = vmatprep.subr.bf16.mxu0 0
  %4710 = vmatpush2.bf16.msra.mxu0 0
  %4711 = vmatprep.subr.bf16.mxu0 0
  %4712 = vmatpush2.bf16.msra.mxu0 0
  %4713 = vmatprep.subr.bf16.mxu0 0
  %4714 = vmatpush2.bf16.msra.mxu0 0
  %4715 = vmatprep.subr.bf16.mxu0 0
  %4716 = vmatpush2.bf16.msra.mxu0 0
  %4717 = vmatprep.mubr.bf16.mxu0 0
  %4718 = vmatmul.mubr.bf16.gmra.mxu0 %v4547
  %v4719 = vpop.f32.mrf.mxu0
  %v4720 = vadd.f32 %v4632, %v4719
  %v4721 = vpop.f32.mrf.mxu0
  %v4722 = vpop.f32.mrf.mxu0
  %v4723 = vpop.f32.mrf.mxu0
  %4724 = vdwg.mxu0
  %v4725 = vpack.c.bf16 %v4546, %v4546
  %v4742 = vunpack.c.l.b16 %v638
  %v4743 = vunpack.c.l.b16 %v639
  %v4744 = vunpack.c.l.b16 %v640
  %v4745 = vunpack.c.l.b16 %v641
  %v4746 = vunpack.c.l.b16 %v642
  %v4747 = vunpack.c.l.b16 %v643
  %v4748 = vunpack.c.l.b16 %v644
  %v4749 = vunpack.c.l.b16 %v645
  %v4750 = vunpack.c.l.b16 %v646
  %v4751 = vunpack.c.l.b16 %v647
  %v4752 = vunpack.c.l.b16 %v648
  %v4753 = vunpack.c.l.b16 %v649
  %v4754 = vunpack.c.l.b16 %v650
  %v4755 = vunpack.c.l.b16 %v651
  %v4756 = vunpack.c.l.b16 %v652
  %v4757 = vunpack.c.l.b16 %v653
  %v4758 = vpack.c.b16 %v4743, %v4742
  %v4759 = vpack.c.b16 %v4745, %v4744
  %v4760 = vpack.c.b16 %v4747, %v4746
  %v4761 = vpack.c.b16 %v4749, %v4748
  %v4762 = vpack.c.b16 %v4751, %v4750
  %v4763 = vpack.c.b16 %v4753, %v4752
  %v4764 = vpack.c.b16 %v4755, %v4754
  %v4765 = vpack.c.b16 %v4757, %v4756
  %4774 = vmatprep.subr.bf16.mxu0 0
  %4775 = vmatpush1.bf16.msra.mxu0 %v4765
  %4776 = vmatprep.subr.bf16.mxu0 0
  %4777 = vmatpush1.bf16.msra.mxu0 %v4764
  %4778 = vmatprep.subr.bf16.mxu0 0
  %4779 = vmatpush1.bf16.msra.mxu0 %v4763
  %4780 = vmatprep.subr.bf16.mxu0 0
  %4781 = vmatpush1.bf16.msra.mxu0 %v4762
  %4782 = vmatprep.subr.bf16.mxu0 0
  %4783 = vmatpush1.bf16.msra.mxu0 %v4761
  %4784 = vmatprep.subr.bf16.mxu0 0
  %4785 = vmatpush1.bf16.msra.mxu0 %v4760
  %4786 = vmatprep.subr.bf16.mxu0 0
  %4787 = vmatpush1.bf16.msra.mxu0 %v4759
  %4788 = vmatprep.subr.bf16.mxu0 0
  %4789 = vmatpush1.bf16.msra.mxu0 %v4758
  %4790 = vmatprep.subr.bf16.mxu0 0
  %4791 = vmatpush2.bf16.msra.mxu0 0
  %4792 = vmatprep.subr.bf16.mxu0 0
  %4793 = vmatpush2.bf16.msra.mxu0 0
  %4794 = vmatprep.subr.bf16.mxu0 0
  %4795 = vmatpush2.bf16.msra.mxu0 0
  %4796 = vmatprep.subr.bf16.mxu0 0
  %4797 = vmatpush2.bf16.msra.mxu0 0
  %4798 = vmatprep.subr.bf16.mxu0 0
  %4799 = vmatpush2.bf16.msra.mxu0 0
  %4800 = vmatprep.subr.bf16.mxu0 0
  %4801 = vmatpush2.bf16.msra.mxu0 0
  %4802 = vmatprep.subr.bf16.mxu0 0
  %4803 = vmatpush2.bf16.msra.mxu0 0
  %4804 = vmatprep.subr.bf16.mxu0 0
  %4805 = vmatpush2.bf16.msra.mxu0 0
  %4806 = vmatprep.mubr.bf16.mxu0 0
  %4807 = vmatmul.mubr.bf16.gmra.mxu0 %v4725
  %v4808 = vpop.f32.mrf.mxu0
  %v4809 = vadd.f32 0.0, %v4808
  %v4810 = vpop.f32.mrf.mxu0
  %v4811 = vpop.f32.mrf.mxu0
  %v4812 = vpop.f32.mrf.mxu0
  %4813 = vdwg.mxu0
  %v4814 = vadd.f32 %v4720, %v4809
  %v4815 = vpack.c.bf16 %v722, %v722
  %v4832 = vunpack.c.l.b16 %v654
  %v4833 = vunpack.c.l.b16 %v655
  %v4834 = vunpack.c.l.b16 %v656
  %v4835 = vunpack.c.l.b16 %v657
  %v4836 = vunpack.c.l.b16 %v658
  %v4837 = vunpack.c.l.b16 %v659
  %v4838 = vunpack.c.l.b16 %v660
  %v4839 = vunpack.c.l.b16 %v661
  %v4840 = vunpack.c.l.b16 %v662
  %v4841 = vunpack.c.l.b16 %v663
  %v4842 = vunpack.c.l.b16 %v664
  %v4843 = vunpack.c.l.b16 %v665
  %v4844 = vunpack.c.l.b16 %v666
  %v4845 = vunpack.c.l.b16 %v667
  %v4846 = vunpack.c.l.b16 %v668
  %v4847 = vunpack.c.l.b16 %v669
  %v4848 = vpack.c.b16 %v4833, %v4832
  %v4849 = vpack.c.b16 %v4835, %v4834
  %v4850 = vpack.c.b16 %v4837, %v4836
  %v4851 = vpack.c.b16 %v4839, %v4838
  %v4852 = vpack.c.b16 %v4841, %v4840
  %v4853 = vpack.c.b16 %v4843, %v4842
  %v4854 = vpack.c.b16 %v4845, %v4844
  %v4855 = vpack.c.b16 %v4847, %v4846
  %4864 = vmatprep.subr.bf16.mxu0 0
  %4865 = vmatpush1.bf16.msra.mxu0 %v4855
  %4866 = vmatprep.subr.bf16.mxu0 0
  %4867 = vmatpush1.bf16.msra.mxu0 %v4854
  %4868 = vmatprep.subr.bf16.mxu0 0
  %4869 = vmatpush1.bf16.msra.mxu0 %v4853
  %4870 = vmatprep.subr.bf16.mxu0 0
  %4871 = vmatpush1.bf16.msra.mxu0 %v4852
  %4872 = vmatprep.subr.bf16.mxu0 0
  %4873 = vmatpush1.bf16.msra.mxu0 %v4851
  %4874 = vmatprep.subr.bf16.mxu0 0
  %4875 = vmatpush1.bf16.msra.mxu0 %v4850
  %4876 = vmatprep.subr.bf16.mxu0 0
  %4877 = vmatpush1.bf16.msra.mxu0 %v4849
  %4878 = vmatprep.subr.bf16.mxu0 0
  %4879 = vmatpush1.bf16.msra.mxu0 %v4848
  %4880 = vmatprep.subr.bf16.mxu0 0
  %4881 = vmatpush2.bf16.msra.mxu0 0
  %4882 = vmatprep.subr.bf16.mxu0 0
  %4883 = vmatpush2.bf16.msra.mxu0 0
  %4884 = vmatprep.subr.bf16.mxu0 0
  %4885 = vmatpush2.bf16.msra.mxu0 0
  %4886 = vmatprep.subr.bf16.mxu0 0
  %4887 = vmatpush2.bf16.msra.mxu0 0
  %4888 = vmatprep.subr.bf16.mxu0 0
  %4889 = vmatpush2.bf16.msra.mxu0 0
  %4890 = vmatprep.subr.bf16.mxu0 0
  %4891 = vmatpush2.bf16.msra.mxu0 0
  %4892 = vmatprep.subr.bf16.mxu0 0
  %4893 = vmatpush2.bf16.msra.mxu0 0
  %4894 = vmatprep.subr.bf16.mxu0 0
  %4895 = vmatpush2.bf16.msra.mxu0 0
  %4896 = vmatprep.mubr.bf16.mxu0 0
  %4897 = vmatmul.mubr.bf16.gmra.mxu0 %v4815
  %v4898 = vpop.f32.mrf.mxu0
  %v4899 = vadd.f32 0.0, %v4898
  %v4900 = vpop.f32.mrf.mxu0
  %v4901 = vpop.f32.mrf.mxu0
  %v4902 = vpop.f32.mrf.mxu0
  %4903 = vdwg.mxu0
  %v4904 = vadd.f32 %v4814, %v4899
  %v4905 = vlaneseq
  %v4906 = vshrl.u32 %v4905, 7
  %v4907 = vsub.s32 0, %v4906
  %v4908 = vrot.slane %v21, %v4907
  %v4909 = vadd.f32 %v4904, %v4908
  %v4910 = vrot.slane %v4909, 4
  %v4911 = vadd.f32 %v4909, %v4910
  %v4912 = vrot.slane %v4911, 2
  %v4913 = vadd.f32 %v4911, %v4912
  %v4914 = vrot.slane %v4913, 1
  %v4915 = vadd.f32 %v4913, %v4914
  %v4916 = vrcp.pop 8.0
  %v4917 = vmul.f32 %v4915, %v4916
  %v4918 = vsub.f32 %v4909, %v4917
  %v4919 = vmul.f32 %v4918, %v4918
  %v4920 = vrot.slane %v4919, 4
  %v4921 = vadd.f32 %v4919, %v4920
  %v4922 = vrot.slane %v4921, 2
  %v4923 = vadd.f32 %v4921, %v4922
  %v4924 = vrot.slane %v4923, 1
  %v4925 = vadd.f32 %v4923, %v4924
  %v4926 = vmul.f32 %v4925, %v4916
  %v4927 = vadd.f32 %v4926, 1e-05
  %v4928 = vrsqrt.pop %v4927
  %v4929 = vmul.f32 %v4918, %v4928
  %v4930 = vlaneseq
  %v4931 = vshrl.u32 %v4930, 7
  %v4932 = vsub.s32 0, %v4931
  %v4933 = vrot.slane %v22, %v4932
  %v4934 = vmul.f32 %v4929, %v4933
  %v4935 = vlaneseq
  %v4936 = vshrl.u32 %v4935, 7
  %v4937 = vsub.s32 0, %v4936
  %v4938 = vrot.slane %v23, %v4937
  %v4939 = vadd.f32 %v4934, %v4938
  %vm4940 = vcmp.ge.f32.partialorder %v4939, 0.0
  %v4941 = vmul.f32 %v4939, 0.01
  %v4942 = vsel %vm4940, %v4939, %v4941
  %v4943 = vpack.c.bf16 %v4942, %v4942
  %v4944 = vlaneseq
  %v4945 = vshrl.u32 %v4944, 7
  %v4946 = vsub.s32 0, %v4945
  %v4947 = vrot.slane %v24, %v4946
  %v4964 = vunpack.c.l.b16 %v670
  %v4965 = vunpack.c.l.b16 %v671
  %v4966 = vunpack.c.l.b16 %v672
  %v4967 = vunpack.c.l.b16 %v673
  %v4968 = vunpack.c.l.b16 %v674
  %v4969 = vunpack.c.l.b16 %v675
  %v4970 = vunpack.c.l.b16 %v676
  %v4971 = vunpack.c.l.b16 %v677
  %v4972 = vunpack.c.l.b16 %v678
  %v4973 = vunpack.c.l.b16 %v679
  %v4974 = vunpack.c.l.b16 %v680
  %v4975 = vunpack.c.l.b16 %v681
  %v4976 = vunpack.c.l.b16 %v682
  %v4977 = vunpack.c.l.b16 %v683
  %v4978 = vunpack.c.l.b16 %v684
  %v4979 = vunpack.c.l.b16 %v685
  %v4980 = vpack.c.b16 %v4965, %v4964
  %v4981 = vpack.c.b16 %v4967, %v4966
  %v4982 = vpack.c.b16 %v4969, %v4968
  %v4983 = vpack.c.b16 %v4971, %v4970
  %v4984 = vpack.c.b16 %v4973, %v4972
  %v4985 = vpack.c.b16 %v4975, %v4974
  %v4986 = vpack.c.b16 %v4977, %v4976
  %v4987 = vpack.c.b16 %v4979, %v4978
  %4996 = vmatprep.subr.bf16.mxu0 0
  %4997 = vmatpush1.bf16.msra.mxu0 %v4987
  %4998 = vmatprep.subr.bf16.mxu0 0
  %4999 = vmatpush1.bf16.msra.mxu0 %v4986
  %5000 = vmatprep.subr.bf16.mxu0 0
  %5001 = vmatpush1.bf16.msra.mxu0 %v4985
  %5002 = vmatprep.subr.bf16.mxu0 0
  %5003 = vmatpush1.bf16.msra.mxu0 %v4984
  %5004 = vmatprep.subr.bf16.mxu0 0
  %5005 = vmatpush1.bf16.msra.mxu0 %v4983
  %5006 = vmatprep.subr.bf16.mxu0 0
  %5007 = vmatpush1.bf16.msra.mxu0 %v4982
  %5008 = vmatprep.subr.bf16.mxu0 0
  %5009 = vmatpush1.bf16.msra.mxu0 %v4981
  %5010 = vmatprep.subr.bf16.mxu0 0
  %5011 = vmatpush1.bf16.msra.mxu0 %v4980
  %5012 = vmatprep.subr.bf16.mxu0 0
  %5013 = vmatpush2.bf16.msra.mxu0 0
  %5014 = vmatprep.subr.bf16.mxu0 0
  %5015 = vmatpush2.bf16.msra.mxu0 0
  %5016 = vmatprep.subr.bf16.mxu0 0
  %5017 = vmatpush2.bf16.msra.mxu0 0
  %5018 = vmatprep.subr.bf16.mxu0 0
  %5019 = vmatpush2.bf16.msra.mxu0 0
  %5020 = vmatprep.subr.bf16.mxu0 0
  %5021 = vmatpush2.bf16.msra.mxu0 0
  %5022 = vmatprep.subr.bf16.mxu0 0
  %5023 = vmatpush2.bf16.msra.mxu0 0
  %5024 = vmatprep.subr.bf16.mxu0 0
  %5025 = vmatpush2.bf16.msra.mxu0 0
  %5026 = vmatprep.subr.bf16.mxu0 0
  %5027 = vmatpush2.bf16.msra.mxu0 0
  %5028 = vmatprep.mubr.bf16.mxu0 0
  %5029 = vmatmul.mubr.bf16.gmra.mxu0 %v4943
  %v5030 = vpop.f32.mrf.mxu0
  %v5031 = vadd.f32 %v4947, %v5030
  %v5032 = vpop.f32.mrf.mxu0
  %v5033 = vpop.f32.mrf.mxu0
  %v5034 = vpop.f32.mrf.mxu0
  %5035 = vdwg.mxu0
  %vm5036 = vcmp.ge.f32.partialorder %v5031, 0.0
  %v5037 = vmul.f32 %v5031, 0.01
  %v5038 = vsel %vm5036, %v5031, %v5037
  %v5039 = vrot.slane %v5038, 4
  %v5040 = vadd.f32 %v5038, %v5039
  %v5041 = vrot.slane %v5040, 2
  %v5042 = vadd.f32 %v5040, %v5041
  %v5043 = vrot.slane %v5042, 1
  %v5044 = vadd.f32 %v5042, %v5043
  %v5045 = vmul.f32 %v5044, %v4916
  %v5046 = vsub.f32 %v5038, %v5045
  %v5047 = vmul.f32 %v5046, %v5046
  %v5048 = vrot.slane %v5047, 4
  %v5049 = vadd.f32 %v5047, %v5048
  %v5050 = vrot.slane %v5049, 2
  %v5051 = vadd.f32 %v5049, %v5050
  %v5052 = vrot.slane %v5051, 1
  %v5053 = vadd.f32 %v5051, %v5052
  %v5054 = vmul.f32 %v5053, %v4916
  %v5055 = vadd.f32 %v5054, 1e-05
  %v5056 = vrsqrt.pop %v5055
  %v5057 = vmul.f32 %v5046, %v5056
  %v5058 = vlaneseq
  %v5059 = vshrl.u32 %v5058, 7
  %v5060 = vsub.s32 0, %v5059
  %v5061 = vrot.slane %v25, %v5060
  %v5062 = vmul.f32 %v5057, %v5061
  %v5063 = vlaneseq
  %v5064 = vshrl.u32 %v5063, 7
  %v5065 = vsub.s32 0, %v5064
  %v5066 = vrot.slane %v26, %v5065
  %v5067 = vadd.f32 %v5062, %v5066
  %v5068 = vpack.c.bf16 %v5067, %v5067
  %v5069 = vlaneseq
  %v5070 = vshrl.u32 %v5069, 7
  %v5071 = vsub.s32 0, %v5070
  %v5072 = vrot.slane %v27, %v5071
  %v5089 = vunpack.c.l.b16 %v686
  %v5090 = vunpack.c.l.b16 %v687
  %v5091 = vunpack.c.l.b16 %v688
  %v5092 = vunpack.c.l.b16 %v689
  %v5093 = vunpack.c.l.b16 %v690
  %v5094 = vunpack.c.l.b16 %v691
  %v5095 = vunpack.c.l.b16 %v692
  %v5096 = vunpack.c.l.b16 %v693
  %v5097 = vunpack.c.l.b16 %v694
  %v5098 = vunpack.c.l.b16 %v695
  %v5099 = vunpack.c.l.b16 %v696
  %v5100 = vunpack.c.l.b16 %v697
  %v5101 = vunpack.c.l.b16 %v698
  %v5102 = vunpack.c.l.b16 %v699
  %v5103 = vunpack.c.l.b16 %v700
  %v5104 = vunpack.c.l.b16 %v701
  %v5105 = vpack.c.b16 %v5090, %v5089
  %v5106 = vpack.c.b16 %v5092, %v5091
  %v5107 = vpack.c.b16 %v5094, %v5093
  %v5108 = vpack.c.b16 %v5096, %v5095
  %v5109 = vpack.c.b16 %v5098, %v5097
  %v5110 = vpack.c.b16 %v5100, %v5099
  %v5111 = vpack.c.b16 %v5102, %v5101
  %v5112 = vpack.c.b16 %v5104, %v5103
  %5121 = vmatprep.subr.bf16.mxu0 0
  %5122 = vmatpush1.bf16.msra.mxu0 %v5112
  %5123 = vmatprep.subr.bf16.mxu0 0
  %5124 = vmatpush1.bf16.msra.mxu0 %v5111
  %5125 = vmatprep.subr.bf16.mxu0 0
  %5126 = vmatpush1.bf16.msra.mxu0 %v5110
  %5127 = vmatprep.subr.bf16.mxu0 0
  %5128 = vmatpush1.bf16.msra.mxu0 %v5109
  %5129 = vmatprep.subr.bf16.mxu0 0
  %5130 = vmatpush1.bf16.msra.mxu0 %v5108
  %5131 = vmatprep.subr.bf16.mxu0 0
  %5132 = vmatpush1.bf16.msra.mxu0 %v5107
  %5133 = vmatprep.subr.bf16.mxu0 0
  %5134 = vmatpush1.bf16.msra.mxu0 %v5106
  %5135 = vmatprep.subr.bf16.mxu0 0
  %5136 = vmatpush1.bf16.msra.mxu0 %v5105
  %5137 = vmatprep.subr.bf16.mxu0 0
  %5138 = vmatpush2.bf16.msra.mxu0 0
  %5139 = vmatprep.subr.bf16.mxu0 0
  %5140 = vmatpush2.bf16.msra.mxu0 0
  %5141 = vmatprep.subr.bf16.mxu0 0
  %5142 = vmatpush2.bf16.msra.mxu0 0
  %5143 = vmatprep.subr.bf16.mxu0 0
  %5144 = vmatpush2.bf16.msra.mxu0 0
  %5145 = vmatprep.subr.bf16.mxu0 0
  %5146 = vmatpush2.bf16.msra.mxu0 0
  %5147 = vmatprep.subr.bf16.mxu0 0
  %5148 = vmatpush2.bf16.msra.mxu0 0
  %5149 = vmatprep.subr.bf16.mxu0 0
  %5150 = vmatpush2.bf16.msra.mxu0 0
  %5151 = vmatprep.subr.bf16.mxu0 0
  %5152 = vmatpush2.bf16.msra.mxu0 0
  %5153 = vmatprep.mubr.bf16.mxu0 0
  %5154 = vmatmul.mubr.bf16.gmra.mxu0 %v5068
  %v5155 = vpop.f32.mrf.mxu0
  %v5156 = vadd.f32 %v5072, %v5155
  %v5157 = vpop.f32.mrf.mxu0
  %v5158 = vpop.f32.mrf.mxu0
  %v5159 = vpop.f32.mrf.mxu0
  %5160 = vdwg.mxu0
  %vm5161 = vcmp.ge.f32.partialorder %v5156, 0.0
  %v5162 = vmul.f32 %v5156, 0.01
  %v5163 = vsel %vm5161, %v5156, %v5162
  %v5164 = vpack.c.bf16 %v5163, %v5163
  %v5165 = vlaneseq
  %v5166 = vshrl.u32 %v5165, 7
  %v5167 = vsub.s32 0, %v5166
  %v5168 = vrot.slane %v28, %v5167
  %v5185 = vunpack.c.l.b16 %v702
  %v5186 = vunpack.c.l.b16 %v703
  %v5187 = vunpack.c.l.b16 %v704
  %v5188 = vunpack.c.l.b16 %v705
  %v5189 = vunpack.c.l.b16 %v706
  %v5190 = vunpack.c.l.b16 %v707
  %v5191 = vunpack.c.l.b16 %v708
  %v5192 = vunpack.c.l.b16 %v709
  %v5193 = vunpack.c.l.b16 %v710
  %v5194 = vunpack.c.l.b16 %v711
  %v5195 = vunpack.c.l.b16 %v712
  %v5196 = vunpack.c.l.b16 %v713
  %v5197 = vunpack.c.l.b16 %v714
  %v5198 = vunpack.c.l.b16 %v715
  %v5199 = vunpack.c.l.b16 %v716
  %v5200 = vunpack.c.l.b16 %v717
  %v5201 = vpack.c.b16 %v5186, %v5185
  %v5202 = vpack.c.b16 %v5188, %v5187
  %v5203 = vpack.c.b16 %v5190, %v5189
  %v5204 = vpack.c.b16 %v5192, %v5191
  %v5205 = vpack.c.b16 %v5194, %v5193
  %v5206 = vpack.c.b16 %v5196, %v5195
  %v5207 = vpack.c.b16 %v5198, %v5197
  %v5208 = vpack.c.b16 %v5200, %v5199
  %5217 = vmatprep.subr.bf16.mxu0 0
  %5218 = vmatpush1.bf16.msra.mxu0 %v5208
  %5219 = vmatprep.subr.bf16.mxu0 0
  %5220 = vmatpush1.bf16.msra.mxu0 %v5207
  %5221 = vmatprep.subr.bf16.mxu0 0
  %5222 = vmatpush1.bf16.msra.mxu0 %v5206
  %5223 = vmatprep.subr.bf16.mxu0 0
  %5224 = vmatpush1.bf16.msra.mxu0 %v5205
  %5225 = vmatprep.subr.bf16.mxu0 0
  %5226 = vmatpush1.bf16.msra.mxu0 %v5204
  %5227 = vmatprep.subr.bf16.mxu0 0
  %5228 = vmatpush1.bf16.msra.mxu0 %v5203
  %5229 = vmatprep.subr.bf16.mxu0 0
  %5230 = vmatpush1.bf16.msra.mxu0 %v5202
  %5231 = vmatprep.subr.bf16.mxu0 0
  %5232 = vmatpush1.bf16.msra.mxu0 %v5201
  %5233 = vmatprep.subr.bf16.mxu0 0
  %5234 = vmatpush2.bf16.msra.mxu0 0
  %5235 = vmatprep.subr.bf16.mxu0 0
  %5236 = vmatpush2.bf16.msra.mxu0 0
  %5237 = vmatprep.subr.bf16.mxu0 0
  %5238 = vmatpush2.bf16.msra.mxu0 0
  %5239 = vmatprep.subr.bf16.mxu0 0
  %5240 = vmatpush2.bf16.msra.mxu0 0
  %5241 = vmatprep.subr.bf16.mxu0 0
  %5242 = vmatpush2.bf16.msra.mxu0 0
  %5243 = vmatprep.subr.bf16.mxu0 0
  %5244 = vmatpush2.bf16.msra.mxu0 0
  %5245 = vmatprep.subr.bf16.mxu0 0
  %5246 = vmatpush2.bf16.msra.mxu0 0
  %5247 = vmatprep.subr.bf16.mxu0 0
  %5248 = vmatpush2.bf16.msra.mxu0 0
  %5249 = vmatprep.mubr.bf16.mxu0 0
  %5250 = vmatmul.mubr.bf16.gmra.mxu0 %v5164
  %v5251 = vpop.f32.mrf.mxu0
  %v5252 = vadd.f32 %v5168, %v5251
  %v5253 = vpop.f32.mrf.mxu0
  %v5254 = vpop.f32.mrf.mxu0
  %v5255 = vpop.f32.mrf.mxu0
  %5256 = vdwg.mxu0
  %5257 = vst [vmem:[%s4] sm:$0xff] %v5252
  // Predicated region
  $region18: #{exnet_forward_pallas.1} parent=0 // pred_check
    _
  $region19: #{exnet_forward_pallas.1} parent=0 // pred_check_branch
    %5259 = sbr.rel (0) target = $region21
  $region20: #{exnet_forward_pallas.1} parent=0 // pred_region
    _
  $region21: #{exnet_forward_pallas.1} parent=0 // pred_fallthru
    _
  // Predicated region
  $region22: #{exnet_forward_pallas.1} parent=0 // pred_check
    _
  $region23: #{exnet_forward_pallas.1} parent=0 // pred_check_branch
    %5261 = sbr.rel (0) target = $region25
  $region24: #{exnet_forward_pallas.1} parent=0 // pred_region
    _
  $region25: #{exnet_forward_pallas.1} parent=0 // pred_fallthru
    _

</llo_original>
